<compile_context>
chip_gen: v7x
topology: tpu7x:2x2x1
jax: 0.10.0
libtpu: 0.0.40
codegen_flags: <defaults>
</compile_context>

<pallas_src>
import numpy as np
import jax
import jax.numpy as jnp
from jax.experimental import pallas as pl
from jax.experimental.pallas import tpu as pltpu

# ---------------- module configuration (defaults of the nn.Module) ----------
PATHS = 3
INPUT_SIZE = 16
IN_HW = 4                       # sqrt(input_size)
OUT_H, OUT_W = 50, 41           # output_shape
L1_C, L2_C = 5, 10
K1, D1 = 5, 2                   # ConvTranspose2d(1 -> 5,  k=5,  dilation=2)
K2, D2 = 7, 2                   # ConvTranspose2d(5 -> 10, k=7,  dilation=2)
K3, D3 = 10, 3                  # ConvTranspose2d(10 -> 1, k=10, dilation=3)
H1 = IN_HW + D1 * (K1 - 1)      # 12
H2 = H1 + D2 * (K2 - 1)         # 24
H3 = H2 + D3 * (K3 - 1)         # 51  (> 50 and > 41, as asserted in __init__)

W1C1 = H1 * L1_C                # 60   valid lanes of layer-1 activations
W2C2 = H2 * L2_C                # 240  valid lanes of layer-2 activations
LP1, LP2, LP3 = 128, 256, 128   # per-tap slab widths (lane padded)


# ---------------- Pallas kernel (one path, one batch element per step) ------
def decoder_kernel(x_ref, g1_ref, b1_ref, g2_ref, b2_ref, g3_ref, b3_ref,
                   out_ref, s1, s2):
    f32 = jnp.float32

    # ---- layer 1: ConvTranspose2d(1 -> 5, k=5, d=2) + ReLU -----------------
    # single slab matmul: (4, 4) @ (4, 5*128); slab kh holds all kw taps.
    y1 = jnp.dot(x_ref[...], g1_ref[...], preferred_element_type=f32)
    s1[...] = jnp.broadcast_to(b1_ref[...], (H1, LP1))            # bias init
    for kh in range(K1):
        s1[pl.ds(D1 * kh, IN_HW), :] += y1[:, kh * LP1:(kh + 1) * LP1]
    a1 = jnp.maximum(s1[...], 0.0)[:, :W1C1]                      # (12, 60)

    # ---- layer 2: ConvTranspose2d(5 -> 10, k=7, d=2) + ReLU ----------------
    # single slab matmul: (12, 60) @ (60, 7*256)
    y2 = jnp.dot(a1, g2_ref[...], preferred_element_type=f32)
    s2[...] = jnp.broadcast_to(b2_ref[...], (H2, LP2))            # bias init
    for kh in range(K2):
        s2[pl.ds(D2 * kh, H1), :] += y2[:, kh * LP2:(kh + 1) * LP2]
    a2 = jnp.maximum(s2[...], 0.0)[:, :W2C2]                      # (24, 240)

    # ---- layer 3: ConvTranspose2d(10 -> 1, k=10, d=3), no ReLU -------------
    # single slab matmul: (24, 240) @ (240, 10*128), accumulate straight into
    # the lane-dense output block (rows cropped to OUT_H, cols cropped later).
    y3 = jnp.dot(a2, g3_ref[...], preferred_element_type=f32)
    out_ref[...] = jnp.broadcast_to(b3_ref[...], (OUT_H, LP3))    # bias init
    for kh in range(K3):
        lo = D3 * kh
        n = min(lo + H2, OUT_H) - lo                              # clip last tap
        out_ref[pl.ds(lo, n), :] += y3[:n, kh * LP3:(kh + 1) * LP3]


# ---------------- parameter pre-expansion (done once, not per forward) ------
def _expand_weights(w, d, win, wout, lane_pad):
    """w: (P, Cin, Cout, K, K) torch ConvTranspose2d layout ->
       G: (P, Win*Cin, K*lane_pad) with
       G[p, iw*Cin+ci, kh*lane_pad + ow*Cout+co] = w[p, ci, co, kh, kw]
       iff ow == iw + d*kw (kw taps + channel contraction folded per row tap).
    """
    P, cin, cout, K, _ = w.shape
    kw = jnp.arange(K)
    iw = jnp.arange(win)
    ow = jnp.arange(wout)
    S = (ow[None, None, :] == iw[None, :, None] + d * kw[:, None, None]
         ).astype(w.dtype)                                     # (K, Win, Wout)
    G = jnp.einsum('xio,pcdhx->phicod', S, w)                  # (P,K,Win,Cin,Wout,Cout)
    G = G.reshape(P, K, win * cin, wout * cout)
    G = jnp.pad(G, ((0, 0), (0, 0), (0, 0), (0, lane_pad - wout * cout)))
    G = jnp.transpose(G, (0, 2, 1, 3)).reshape(P, win * cin, K * lane_pad)
    return G.astype(jnp.float32)


def _bias_row(b, wout, lane_pad):
    """b: (P, Cout) -> (P, 1, lane_pad) with lane ow*Cout+co = b[p, co]."""
    P, cout = b.shape
    row = jnp.tile(b, (1, wout))                               # (P, wout*cout)
    row = jnp.pad(row, ((0, 0), (0, lane_pad - wout * cout)))
    return row.reshape(P, 1, lane_pad).astype(jnp.float32)


def prepare_params(params):
    """Parameter-only preprocessing (call once at init, not per forward)."""
    w1, b1, w2, b2, w3, b3 = params
    g1 = _expand_weights(w1, D1, IN_HW, H1, LP1)               # (P,   4,  640)
    g2 = _expand_weights(w2, D2, H1,    H2, LP2)               # (P,  60, 1792)
    g3 = _expand_weights(w3, D3, H2,    H3, LP3)               # (P, 240, 1280)
    br1 = _bias_row(b1, H1, LP1)                               # (P, 1, 128)
    br2 = _bias_row(b2, H2, LP2)                               # (P, 1, 256)
    br3 = _bias_row(b3, H3, LP3)                               # (P, 1, 128)
    return g1, br1, g2, br2, g3, br3


# ---------------- wrapper ----------------------------------------------------
@jax.jit
def decoder_forward(x, prepared):
    """x: (B, input_size) float32 -> (B, paths, 50, 41) float32."""
    g1, br1, g2, br2, g3, br3 = prepared
    B = x.shape[0]
    xk = x.reshape(B, IN_HW, IN_HW).astype(jnp.float32)        # (B, 4, 4)

    out = pl.pallas_call(
        decoder_kernel,
        out_shape=jax.ShapeDtypeStruct((PATHS, B, OUT_H, LP3), jnp.float32),
        grid_spec=pltpu.PrefetchScalarGridSpec(
            num_scalar_prefetch=0,
            grid=(PATHS, B),
            in_specs=[
                pl.BlockSpec((None, IN_HW, IN_HW), lambda p, b: (b, 0, 0)),
                pl.BlockSpec((None, IN_HW, K1 * LP1), lambda p, b: (p, 0, 0)),
                pl.BlockSpec((None, 1, LP1), lambda p, b: (p, 0, 0)),
                pl.BlockSpec((None, W1C1, K2 * LP2), lambda p, b: (p, 0, 0)),
                pl.BlockSpec((None, 1, LP2), lambda p, b: (p, 0, 0)),
                pl.BlockSpec((None, W2C2, K3 * LP3), lambda p, b: (p, 0, 0)),
                pl.BlockSpec((None, 1, LP3), lambda p, b: (p, 0, 0)),
            ],
            out_specs=pl.BlockSpec((None, None, OUT_H, LP3),
                                   lambda p, b: (p, b, 0, 0)),
            scratch_shapes=[
                pltpu.VMEM((H1, LP1), jnp.float32),
                pltpu.VMEM((H2, LP2), jnp.float32),
            ],
        ),
        compiler_params=pltpu.CompilerParams(
            dimension_semantics=("parallel", "parallel")),
    )(xk, g1, br1, g2, br2, g3, br3)

    out = jnp.transpose(out, (1, 0, 2, 3))[:, :, :OUT_H, :OUT_W]  # crop lanes
    return out


# ---------------- pure numpy reference (PyTorch semantics) -------------------
def reference_forward(x, params):
    w1, b1, w2, b2, w3, b3 = [np.asarray(p, np.float32) for p in params]
    xin = np.asarray(x, np.float32).reshape(-1, 1, IN_HW, IN_HW)

    def deconv(inp, w, b, d):
        Bn, Cin, H, W = inp.shape
        _, Cout, k, _ = w.shape
        out = np.zeros((Bn, Cout, H + d * (k - 1), W + d * (k - 1)), np.float32)
        for kh in range(k):
            for kw in range(k):
                out[:, :, d * kh:d * kh + H, d * kw:d * kw + W] += np.einsum(
                    'bchw,co->bohw', inp, w[:, :, kh, kw])
        return out + b.reshape(1, Cout, 1, 1)

    slices = []
    for p in range(PATHS):
        y = np.maximum(deconv(xin, w1[p], b1[p], D1), 0.0)
        y = np.maximum(deconv(y, w2[p], b2[p], D2), 0.0)
        y = deconv(y, w3[p], b3[p], D3)
        slices.append(y[:, 0, :OUT_H, :OUT_W])
    return np.transpose(np.stack(slices), (1, 0, 2, 3))        # (B, paths, 50, 41)


# ---------------- main --------------------------------------------------------
if __name__ == "__main__":
    key = jax.random.PRNGKey(0)
    k1, k2, k3, k4, k5, k6, k7 = jax.random.split(key, 7)

    # deterministic synthetic parameters, torch layout (Cin, Cout, kH, kW)
    w1 = jax.random.normal(k1, (PATHS, 1, L1_C, K1, K1), jnp.float32) * 0.2
    b1 = jax.random.normal(k2, (PATHS, L1_C), jnp.float32) * 0.1
    w2 = jax.random.normal(k3, (PATHS, L1_C, L2_C, K2, K2), jnp.float32) * 0.1
    b2 = jax.random.normal(k4, (PATHS, L2_C), jnp.float32) * 0.1
    w3 = jax.random.normal(k5, (PATHS, L2_C, 1, K3, K3), jnp.float32) * 0.05
    b3 = jax.random.normal(k6, (PATHS, 1), jnp.float32) * 0.1
    params = (w1, b1, w2, b2, w3, b3)

    B = 2
    x = jax.random.normal(k7, (B, INPUT_SIZE), jnp.float32)

    prepared = prepare_params(params)          # done once, not per forward

    out = decoder_forward(x, prepared)
    out = jax.block_until_ready(out)

    ref = reference_forward(x, params)
    assert out.shape == (B, PATHS, OUT_H, OUT_W), out.shape
    rel_err = float(np.max(np.abs(np.asarray(out) - ref))
                    / (np.max(np.abs(ref)) + 1e-6))
    assert rel_err < 1e-3, f"relative error too large: {rel_err}"

    print("KERNEL_OK")
</pallas_src>

<mosaic_0001>
module attributes {stable_mosaic.version = 11 : i64} {
  func.func @decoder_kernel(%arg0: i32, %arg1: i32, %arg2: memref<1x4x4xf32, #tpu.memory_space<vmem>>, %arg3: memref<1x4x640xf32, #tpu.memory_space<vmem>>, %arg4: memref<1x1x128xf32, #tpu.memory_space<vmem>>, %arg5: memref<1x60x1792xf32, #tpu.memory_space<vmem>>, %arg6: memref<1x1x256xf32, #tpu.memory_space<vmem>>, %arg7: memref<1x240x1280xf32, #tpu.memory_space<vmem>>, %arg8: memref<1x1x128xf32, #tpu.memory_space<vmem>>, %arg9: memref<1x1x50x128xf32, #tpu.memory_space<vmem>>, %arg10: memref<12x128xf32, #tpu.memory_space<vmem>>, %arg11: memref<24x256xf32, #tpu.memory_space<vmem>>) attributes {dimension_semantics = [#tpu.dimension_semantics<parallel>, #tpu.dimension_semantics<parallel>], iteration_bounds = array<i64: 3, 2>, scalar_prefetch = 0 : i64, scratch_operands = 2 : i64, tpu.core_type = #tpu.core_type<tc>, window_params = [{transform_indices = @transform_0, window_bounds = array<i64: 1, 4, 4>}, {transform_indices = @transform_1, window_bounds = array<i64: 1, 4, 640>}, {transform_indices = @transform_2, window_bounds = array<i64: 1, 1, 128>}, {transform_indices = @transform_3, window_bounds = array<i64: 1, 60, 1792>}, {transform_indices = @transform_4, window_bounds = array<i64: 1, 1, 256>}, {transform_indices = @transform_5, window_bounds = array<i64: 1, 240, 1280>}, {transform_indices = @transform_6, window_bounds = array<i64: 1, 1, 128>}, {transform_indices = @transform_7, window_bounds = array<i64: 1, 1, 50, 128>}]} {
    %c0 = arith.constant 0 : index
    %c0_0 = arith.constant 0 : index
    %c0_1 = arith.constant 0 : index
    %0 = vector.load %arg2[%c0, %c0_0, %c0_1] : memref<1x4x4xf32, #tpu.memory_space<vmem>>, vector<1x4x4xf32>
    %1 = vector.shape_cast %0 : vector<1x4x4xf32> to vector<4x4xf32>
    %c0_2 = arith.constant 0 : index
    %c0_3 = arith.constant 0 : index
    %c0_4 = arith.constant 0 : index
    %2 = vector.load %arg3[%c0_2, %c0_3, %c0_4] : memref<1x4x640xf32, #tpu.memory_space<vmem>>, vector<1x4x640xf32>
    %3 = vector.shape_cast %2 : vector<1x4x640xf32> to vector<4x640xf32>
    %cst = arith.constant dense<0.000000e+00> : vector<4x640xf32>
    %4 = tpu.matmul %1, %3, %cst {dimension_numbers = #tpu.dot_dimension_numbers<[1], [0], [0], [1], [0, 0, 1, 1], [], []>} : vector<4x4xf32>, vector<4x640xf32>, vector<4x640xf32> -> vector<4x640xf32>
    %c0_5 = arith.constant 0 : index
    %c0_6 = arith.constant 0 : index
    %c0_7 = arith.constant 0 : index
    %5 = vector.load %arg4[%c0_5, %c0_6, %c0_7] : memref<1x1x128xf32, #tpu.memory_space<vmem>>, vector<1x1x128xf32>
    %6 = vector.shape_cast %5 : vector<1x1x128xf32> to vector<1x128xf32>
    %7 = vector.shape_cast %6 : vector<1x128xf32> to vector<1x128xf32>
    %8 = vector.broadcast %7 : vector<1x128xf32> to vector<12x128xf32>
    %c0_8 = arith.constant 0 : index
    %c0_9 = arith.constant 0 : index
    %9 = vector.load %arg10[%c0_8, %c0_9] : memref<12x128xf32, #tpu.memory_space<vmem>>, vector<12x128xf32>
    tpu.vector_store %arg10[%c0_8, %c0_9], %8 {strides = array<i32>} : memref<12x128xf32, #tpu.memory_space<vmem>>, vector<12x128xf32>,
    %c0_10 = arith.constant 0 : index
    %c0_11 = arith.constant 0 : index
    %10 = vector.load %arg10[%c0_10, %c0_11] : memref<12x128xf32, #tpu.memory_space<vmem>>, vector<4x128xf32>
    %11 = vector.extract_strided_slice %4 {offsets = [0, 0], sizes = [4, 128], strides = [1, 1]} : vector<4x640xf32> to vector<4x128xf32>
    %12 = arith.addf %10, %11 : vector<4x128xf32>
    %c0_12 = arith.constant 0 : index
    %c0_13 = arith.constant 0 : index
    %13 = vector.load %arg10[%c0_12, %c0_13] : memref<12x128xf32, #tpu.memory_space<vmem>>, vector<4x128xf32>
    tpu.vector_store %arg10[%c0_12, %c0_13], %12 {strides = array<i32>} : memref<12x128xf32, #tpu.memory_space<vmem>>, vector<4x128xf32>,
    %c2 = arith.constant 2 : index
    %c0_14 = arith.constant 0 : index
    %14 = vector.load %arg10[%c2, %c0_14] : memref<12x128xf32, #tpu.memory_space<vmem>>, vector<4x128xf32>
    %15 = vector.extract_strided_slice %4 {offsets = [0, 128], sizes = [4, 128], strides = [1, 1]} : vector<4x640xf32> to vector<4x128xf32>
    %16 = arith.addf %14, %15 : vector<4x128xf32>
    %c2_15 = arith.constant 2 : index
    %c0_16 = arith.constant 0 : index
    %17 = vector.load %arg10[%c2_15, %c0_16] : memref<12x128xf32, #tpu.memory_space<vmem>>, vector<4x128xf32>
    tpu.vector_store %arg10[%c2_15, %c0_16], %16 {strides = array<i32>} : memref<12x128xf32, #tpu.memory_space<vmem>>, vector<4x128xf32>,
    %c4 = arith.constant 4 : index
    %c0_17 = arith.constant 0 : index
    %18 = vector.load %arg10[%c4, %c0_17] : memref<12x128xf32, #tpu.memory_space<vmem>>, vector<4x128xf32>
    %19 = vector.extract_strided_slice %4 {offsets = [0, 256], sizes = [4, 128], strides = [1, 1]} : vector<4x640xf32> to vector<4x128xf32>
    %20 = arith.addf %18, %19 : vector<4x128xf32>
    %c4_18 = arith.constant 4 : index
    %c0_19 = arith.constant 0 : index
    %21 = vector.load %arg10[%c4_18, %c0_19] : memref<12x128xf32, #tpu.memory_space<vmem>>, vector<4x128xf32>
    tpu.vector_store %arg10[%c4_18, %c0_19], %20 {strides = array<i32>} : memref<12x128xf32, #tpu.memory_space<vmem>>, vector<4x128xf32>,
    %c6 = arith.constant 6 : index
    %c0_20 = arith.constant 0 : index
    %22 = vector.load %arg10[%c6, %c0_20] : memref<12x128xf32, #tpu.memory_space<vmem>>, vector<4x128xf32>
    %23 = vector.extract_strided_slice %4 {offsets = [0, 384], sizes = [4, 128], strides = [1, 1]} : vector<4x640xf32> to vector<4x128xf32>
    %24 = arith.addf %22, %23 : vector<4x128xf32>
    %c6_21 = arith.constant 6 : index
    %c0_22 = arith.constant 0 : index
    %25 = vector.load %arg10[%c6_21, %c0_22] : memref<12x128xf32, #tpu.memory_space<vmem>>, vector<4x128xf32>
    tpu.vector_store %arg10[%c6_21, %c0_22], %24 {strides = array<i32>} : memref<12x128xf32, #tpu.memory_space<vmem>>, vector<4x128xf32>,
    %c8 = arith.constant 8 : index
    %c0_23 = arith.constant 0 : index
    %26 = vector.load %arg10[%c8, %c0_23] : memref<12x128xf32, #tpu.memory_space<vmem>>, vector<4x128xf32>
    %27 = vector.extract_strided_slice %4 {offsets = [0, 512], sizes = [4, 128], strides = [1, 1]} : vector<4x640xf32> to vector<4x128xf32>
    %28 = arith.addf %26, %27 : vector<4x128xf32>
    %c8_24 = arith.constant 8 : index
    %c0_25 = arith.constant 0 : index
    %29 = vector.load %arg10[%c8_24, %c0_25] : memref<12x128xf32, #tpu.memory_space<vmem>>, vector<4x128xf32>
    tpu.vector_store %arg10[%c8_24, %c0_25], %28 {strides = array<i32>} : memref<12x128xf32, #tpu.memory_space<vmem>>, vector<4x128xf32>,
    %c0_26 = arith.constant 0 : index
    %c0_27 = arith.constant 0 : index
    %30 = vector.load %arg10[%c0_26, %c0_27] : memref<12x128xf32, #tpu.memory_space<vmem>>, vector<12x128xf32>
    %cst_28 = arith.constant 0.000000e+00 : f32
    %31 = vector.broadcast %cst_28 : f32 to vector<12x128xf32>
    %32 = arith.maximumf %30, %31 : vector<12x128xf32>
    %33 = vector.extract_strided_slice %32 {offsets = [0, 0], sizes = [12, 60], strides = [1, 1]} : vector<12x128xf32> to vector<12x60xf32>
    %c0_29 = arith.constant 0 : index
    %c0_30 = arith.constant 0 : index
    %c0_31 = arith.constant 0 : index
    %34 = vector.load %arg5[%c0_29, %c0_30, %c0_31] : memref<1x60x1792xf32, #tpu.memory_space<vmem>>, vector<1x60x1792xf32>
    %35 = vector.shape_cast %34 : vector<1x60x1792xf32> to vector<60x1792xf32>
    %cst_32 = arith.constant dense<0.000000e+00> : vector<12x1792xf32>
    %36 = tpu.matmul %33, %35, %cst_32 {dimension_numbers = #tpu.dot_dimension_numbers<[1], [0], [0], [1], [0, 0, 1, 1], [], []>} : vector<12x60xf32>, vector<60x1792xf32>, vector<12x1792xf32> -> vector<12x1792xf32>
    %c0_33 = arith.constant 0 : index
    %c0_34 = arith.constant 0 : index
    %c0_35 = arith.constant 0 : index
    %37 = vector.load %arg6[%c0_33, %c0_34, %c0_35] : memref<1x1x256xf32, #tpu.memory_space<vmem>>, vector<1x1x256xf32>
    %38 = vector.shape_cast %37 : vector<1x1x256xf32> to vector<1x256xf32>
    %39 = vector.shape_cast %38 : vector<1x256xf32> to vector<1x256xf32>
    %40 = vector.broadcast %39 : vector<1x256xf32> to vector<24x256xf32>
    %c0_36 = arith.constant 0 : index
    %c0_37 = arith.constant 0 : index
    %41 = vector.load %arg11[%c0_36, %c0_37] : memref<24x256xf32, #tpu.memory_space<vmem>>, vector<24x256xf32>
    tpu.vector_store %arg11[%c0_36, %c0_37], %40 {strides = array<i32>} : memref<24x256xf32, #tpu.memory_space<vmem>>, vector<24x256xf32>,
    %c0_38 = arith.constant 0 : index
    %c0_39 = arith.constant 0 : index
    %42 = vector.load %arg11[%c0_38, %c0_39] : memref<24x256xf32, #tpu.memory_space<vmem>>, vector<12x256xf32>
    %43 = vector.extract_strided_slice %36 {offsets = [0, 0], sizes = [12, 256], strides = [1, 1]} : vector<12x1792xf32> to vector<12x256xf32>
    %44 = arith.addf %42, %43 : vector<12x256xf32>
    %c0_40 = arith.constant 0 : index
    %c0_41 = arith.constant 0 : index
    %45 = vector.load %arg11[%c0_40, %c0_41] : memref<24x256xf32, #tpu.memory_space<vmem>>, vector<12x256xf32>
    tpu.vector_store %arg11[%c0_40, %c0_41], %44 {strides = array<i32>} : memref<24x256xf32, #tpu.memory_space<vmem>>, vector<12x256xf32>,
    %c2_42 = arith.constant 2 : index
    %c0_43 = arith.constant 0 : index
    %46 = vector.load %arg11[%c2_42, %c0_43] : memref<24x256xf32, #tpu.memory_space<vmem>>, vector<12x256xf32>
    %47 = vector.extract_strided_slice %36 {offsets = [0, 256], sizes = [12, 256], strides = [1, 1]} : vector<12x1792xf32> to vector<12x256xf32>
    %48 = arith.addf %46, %47 : vector<12x256xf32>
    %c2_44 = arith.constant 2 : index
    %c0_45 = arith.constant 0 : index
    %49 = vector.load %arg11[%c2_44, %c0_45] : memref<24x256xf32, #tpu.memory_space<vmem>>, vector<12x256xf32>
    tpu.vector_store %arg11[%c2_44, %c0_45], %48 {strides = array<i32>} : memref<24x256xf32, #tpu.memory_space<vmem>>, vector<12x256xf32>,
    %c4_46 = arith.constant 4 : index
    %c0_47 = arith.constant 0 : index
    %50 = vector.load %arg11[%c4_46, %c0_47] : memref<24x256xf32, #tpu.memory_space<vmem>>, vector<12x256xf32>
    %51 = vector.extract_strided_slice %36 {offsets = [0, 512], sizes = [12, 256], strides = [1, 1]} : vector<12x1792xf32> to vector<12x256xf32>
    %52 = arith.addf %50, %51 : vector<12x256xf32>
    %c4_48 = arith.constant 4 : index
    %c0_49 = arith.constant 0 : index
    %53 = vector.load %arg11[%c4_48, %c0_49] : memref<24x256xf32, #tpu.memory_space<vmem>>, vector<12x256xf32>
    tpu.vector_store %arg11[%c4_48, %c0_49], %52 {strides = array<i32>} : memref<24x256xf32, #tpu.memory_space<vmem>>, vector<12x256xf32>,
    %c6_50 = arith.constant 6 : index
    %c0_51 = arith.constant 0 : index
    %54 = vector.load %arg11[%c6_50, %c0_51] : memref<24x256xf32, #tpu.memory_space<vmem>>, vector<12x256xf32>
    %55 = vector.extract_strided_slice %36 {offsets = [0, 768], sizes = [12, 256], strides = [1, 1]} : vector<12x1792xf32> to vector<12x256xf32>
    %56 = arith.addf %54, %55 : vector<12x256xf32>
    %c6_52 = arith.constant 6 : index
    %c0_53 = arith.constant 0 : index
    %57 = vector.load %arg11[%c6_52, %c0_53] : memref<24x256xf32, #tpu.memory_space<vmem>>, vector<12x256xf32>
    tpu.vector_store %arg11[%c6_52, %c0_53], %56 {strides = array<i32>} : memref<24x256xf32, #tpu.memory_space<vmem>>, vector<12x256xf32>,
    %c8_54 = arith.constant 8 : index
    %c0_55 = arith.constant 0 : index
    %58 = vector.load %arg11[%c8_54, %c0_55] : memref<24x256xf32, #tpu.memory_space<vmem>>, vector<12x256xf32>
    %59 = vector.extract_strided_slice %36 {offsets = [0, 1024], sizes = [12, 256], strides = [1, 1]} : vector<12x1792xf32> to vector<12x256xf32>
    %60 = arith.addf %58, %59 : vector<12x256xf32>
    %c8_56 = arith.constant 8 : index
    %c0_57 = arith.constant 0 : index
    %61 = vector.load %arg11[%c8_56, %c0_57] : memref<24x256xf32, #tpu.memory_space<vmem>>, vector<12x256xf32>
    tpu.vector_store %arg11[%c8_56, %c0_57], %60 {strides = array<i32>} : memref<24x256xf32, #tpu.memory_space<vmem>>, vector<12x256xf32>,
    %c10 = arith.constant 10 : index
    %c0_58 = arith.constant 0 : index
    %62 = vector.load %arg11[%c10, %c0_58] : memref<24x256xf32, #tpu.memory_space<vmem>>, vector<12x256xf32>
    %63 = vector.extract_strided_slice %36 {offsets = [0, 1280], sizes = [12, 256], strides = [1, 1]} : vector<12x1792xf32> to vector<12x256xf32>
    %64 = arith.addf %62, %63 : vector<12x256xf32>
    %c10_59 = arith.constant 10 : index
    %c0_60 = arith.constant 0 : index
    %65 = vector.load %arg11[%c10_59, %c0_60] : memref<24x256xf32, #tpu.memory_space<vmem>>, vector<12x256xf32>
    tpu.vector_store %arg11[%c10_59, %c0_60], %64 {strides = array<i32>} : memref<24x256xf32, #tpu.memory_space<vmem>>, vector<12x256xf32>,
    %c12 = arith.constant 12 : index
    %c0_61 = arith.constant 0 : index
    %66 = vector.load %arg11[%c12, %c0_61] : memref<24x256xf32, #tpu.memory_space<vmem>>, vector<12x256xf32>
    %67 = vector.extract_strided_slice %36 {offsets = [0, 1536], sizes = [12, 256], strides = [1, 1]} : vector<12x1792xf32> to vector<12x256xf32>
    %68 = arith.addf %66, %67 : vector<12x256xf32>
    %c12_62 = arith.constant 12 : index
    %c0_63 = arith.constant 0 : index
    %69 = vector.load %arg11[%c12_62, %c0_63] : memref<24x256xf32, #tpu.memory_space<vmem>>, vector<12x256xf32>
    tpu.vector_store %arg11[%c12_62, %c0_63], %68 {strides = array<i32>} : memref<24x256xf32, #tpu.memory_space<vmem>>, vector<12x256xf32>,
    %c0_64 = arith.constant 0 : index
    %c0_65 = arith.constant 0 : index
    %70 = vector.load %arg11[%c0_64, %c0_65] : memref<24x256xf32, #tpu.memory_space<vmem>>, vector<24x256xf32>
    %cst_66 = arith.constant 0.000000e+00 : f32
    %71 = vector.broadcast %cst_66 : f32 to vector<24x256xf32>
    %72 = arith.maximumf %70, %71 : vector<24x256xf32>
    %73 = vector.extract_strided_slice %72 {offsets = [0, 0], sizes = [24, 240], strides = [1, 1]} : vector<24x256xf32> to vector<24x240xf32>
    %c0_67 = arith.constant 0 : index
    %c0_68 = arith.constant 0 : index
    %c0_69 = arith.constant 0 : index
    %74 = vector.load %arg7[%c0_67, %c0_68, %c0_69] : memref<1x240x1280xf32, #tpu.memory_space<vmem>>, vector<1x240x1280xf32>
    %75 = vector.shape_cast %74 : vector<1x240x1280xf32> to vector<240x1280xf32>
    %cst_70 = arith.constant dense<0.000000e+00> : vector<24x1280xf32>
    %76 = tpu.matmul %73, %75, %cst_70 {dimension_numbers = #tpu.dot_dimension_numbers<[1], [0], [0], [1], [0, 0, 1, 1], [], []>} : vector<24x240xf32>, vector<240x1280xf32>, vector<24x1280xf32> -> vector<24x1280xf32>
    %c0_71 = arith.constant 0 : index
    %c0_72 = arith.constant 0 : index
    %c0_73 = arith.constant 0 : index
    %77 = vector.load %arg8[%c0_71, %c0_72, %c0_73] : memref<1x1x128xf32, #tpu.memory_space<vmem>>, vector<1x1x128xf32>
    %78 = vector.shape_cast %77 : vector<1x1x128xf32> to vector<1x128xf32>
    %79 = vector.shape_cast %78 : vector<1x128xf32> to vector<1x128xf32>
    %80 = vector.broadcast %79 : vector<1x128xf32> to vector<50x128xf32>
    %c0_74 = arith.constant 0 : index
    %c0_75 = arith.constant 0 : index
    %c0_76 = arith.constant 0 : index
    %c0_77 = arith.constant 0 : index
    %81 = vector.load %arg9[%c0_74, %c0_75, %c0_76, %c0_77] : memref<1x1x50x128xf32, #tpu.memory_space<vmem>>, vector<1x1x50x128xf32>
    %82 = vector.shape_cast %81 : vector<1x1x50x128xf32> to vector<50x128xf32>
    %83 = vector.shape_cast %80 : vector<50x128xf32> to vector<1x1x50x128xf32>
    tpu.vector_store %arg9[%c0_74, %c0_75, %c0_76, %c0_77], %83 {strides = array<i32>} : memref<1x1x50x128xf32, #tpu.memory_space<vmem>>, vector<1x1x50x128xf32>,
    %c0_78 = arith.constant 0 : index
    %c0_79 = arith.constant 0 : index
    %c0_80 = arith.constant 0 : index
    %c0_81 = arith.constant 0 : index
    %84 = vector.load %arg9[%c0_78, %c0_79, %c0_80, %c0_81] : memref<1x1x50x128xf32, #tpu.memory_space<vmem>>, vector<1x1x24x128xf32>
    %85 = vector.shape_cast %84 : vector<1x1x24x128xf32> to vector<24x128xf32>
    %86 = vector.extract_strided_slice %76 {offsets = [0, 0], sizes = [24, 128], strides = [1, 1]} : vector<24x1280xf32> to vector<24x128xf32>
    %87 = arith.addf %85, %86 : vector<24x128xf32>
    %c0_82 = arith.constant 0 : index
    %c0_83 = arith.constant 0 : index
    %c0_84 = arith.constant 0 : index
    %c0_85 = arith.constant 0 : index
    %88 = vector.load %arg9[%c0_82, %c0_83, %c0_84, %c0_85] : memref<1x1x50x128xf32, #tpu.memory_space<vmem>>, vector<1x1x24x128xf32>
    %89 = vector.shape_cast %88 : vector<1x1x24x128xf32> to vector<24x128xf32>
    %90 = vector.shape_cast %87 : vector<24x128xf32> to vector<1x1x24x128xf32>
    tpu.vector_store %arg9[%c0_82, %c0_83, %c0_84, %c0_85], %90 {strides = array<i32>} : memref<1x1x50x128xf32, #tpu.memory_space<vmem>>, vector<1x1x24x128xf32>,
    %c0_86 = arith.constant 0 : index
    %c0_87 = arith.constant 0 : index
    %c3 = arith.constant 3 : index
    %c0_88 = arith.constant 0 : index
    %91 = vector.load %arg9[%c0_86, %c0_87, %c3, %c0_88] : memref<1x1x50x128xf32, #tpu.memory_space<vmem>>, vector<1x1x24x128xf32>
    %92 = vector.shape_cast %91 : vector<1x1x24x128xf32> to vector<24x128xf32>
    %93 = vector.extract_strided_slice %76 {offsets = [0, 128], sizes = [24, 128], strides = [1, 1]} : vector<24x1280xf32> to vector<24x128xf32>
    %94 = arith.addf %92, %93 : vector<24x128xf32>
    %c0_89 = arith.constant 0 : index
    %c0_90 = arith.constant 0 : index
    %c3_91 = arith.constant 3 : index
    %c0_92 = arith.constant 0 : index
    %95 = vector.load %arg9[%c0_89, %c0_90, %c3_91, %c0_92] : memref<1x1x50x128xf32, #tpu.memory_space<vmem>>, vector<1x1x24x128xf32>
    %96 = vector.shape_cast %95 : vector<1x1x24x128xf32> to vector<24x128xf32>
    %97 = vector.shape_cast %94 : vector<24x128xf32> to vector<1x1x24x128xf32>
    tpu.vector_store %arg9[%c0_89, %c0_90, %c3_91, %c0_92], %97 {strides = array<i32>} : memref<1x1x50x128xf32, #tpu.memory_space<vmem>>, vector<1x1x24x128xf32>,
    %c0_93 = arith.constant 0 : index
    %c0_94 = arith.constant 0 : index
    %c6_95 = arith.constant 6 : index
    %c0_96 = arith.constant 0 : index
    %98 = vector.load %arg9[%c0_93, %c0_94, %c6_95, %c0_96] : memref<1x1x50x128xf32, #tpu.memory_space<vmem>>, vector<1x1x24x128xf32>
    %99 = vector.shape_cast %98 : vector<1x1x24x128xf32> to vector<24x128xf32>
    %100 = vector.extract_strided_slice %76 {offsets = [0, 256], sizes = [24, 128], strides = [1, 1]} : vector<24x1280xf32> to vector<24x128xf32>
    %101 = arith.addf %99, %100 : vector<24x128xf32>
    %c0_97 = arith.constant 0 : index
    %c0_98 = arith.constant 0 : index
    %c6_99 = arith.constant 6 : index
    %c0_100 = arith.constant 0 : index
    %102 = vector.load %arg9[%c0_97, %c0_98, %c6_99, %c0_100] : memref<1x1x50x128xf32, #tpu.memory_space<vmem>>, vector<1x1x24x128xf32>
    %103 = vector.shape_cast %102 : vector<1x1x24x128xf32> to vector<24x128xf32>
    %104 = vector.shape_cast %101 : vector<24x128xf32> to vector<1x1x24x128xf32>
    tpu.vector_store %arg9[%c0_97, %c0_98, %c6_99, %c0_100], %104 {strides = array<i32>} : memref<1x1x50x128xf32, #tpu.memory_space<vmem>>, vector<1x1x24x128xf32>,
    %c0_101 = arith.constant 0 : index
    %c0_102 = arith.constant 0 : index
    %c9 = arith.constant 9 : index
    %c0_103 = arith.constant 0 : index
    %105 = vector.load %arg9[%c0_101, %c0_102, %c9, %c0_103] : memref<1x1x50x128xf32, #tpu.memory_space<vmem>>, vector<1x1x24x128xf32>
    %106 = vector.shape_cast %105 : vector<1x1x24x128xf32> to vector<24x128xf32>
    %107 = vector.extract_strided_slice %76 {offsets = [0, 384], sizes = [24, 128], strides = [1, 1]} : vector<24x1280xf32> to vector<24x128xf32>
    %108 = arith.addf %106, %107 : vector<24x128xf32>
    %c0_104 = arith.constant 0 : index
    %c0_105 = arith.constant 0 : index
    %c9_106 = arith.constant 9 : index
    %c0_107 = arith.constant 0 : index
    %109 = vector.load %arg9[%c0_104, %c0_105, %c9_106, %c0_107] : memref<1x1x50x128xf32, #tpu.memory_space<vmem>>, vector<1x1x24x128xf32>
    %110 = vector.shape_cast %109 : vector<1x1x24x128xf32> to vector<24x128xf32>
    %111 = vector.shape_cast %108 : vector<24x128xf32> to vector<1x1x24x128xf32>
    tpu.vector_store %arg9[%c0_104, %c0_105, %c9_106, %c0_107], %111 {strides = array<i32>} : memref<1x1x50x128xf32, #tpu.memory_space<vmem>>, vector<1x1x24x128xf32>,
    %c0_108 = arith.constant 0 : index
    %c0_109 = arith.constant 0 : index
    %c12_110 = arith.constant 12 : index
    %c0_111 = arith.constant 0 : index
    %112 = vector.load %arg9[%c0_108, %c0_109, %c12_110, %c0_111] : memref<1x1x50x128xf32, #tpu.memory_space<vmem>>, vector<1x1x24x128xf32>
    %113 = vector.shape_cast %112 : vector<1x1x24x128xf32> to vector<24x128xf32>
    %114 = vector.extract_strided_slice %76 {offsets = [0, 512], sizes = [24, 128], strides = [1, 1]} : vector<24x1280xf32> to vector<24x128xf32>
    %115 = arith.addf %113, %114 : vector<24x128xf32>
    %c0_112 = arith.constant 0 : index
    %c0_113 = arith.constant 0 : index
    %c12_114 = arith.constant 12 : index
    %c0_115 = arith.constant 0 : index
    %116 = vector.load %arg9[%c0_112, %c0_113, %c12_114, %c0_115] : memref<1x1x50x128xf32, #tpu.memory_space<vmem>>, vector<1x1x24x128xf32>
    %117 = vector.shape_cast %116 : vector<1x1x24x128xf32> to vector<24x128xf32>
    %118 = vector.shape_cast %115 : vector<24x128xf32> to vector<1x1x24x128xf32>
    tpu.vector_store %arg9[%c0_112, %c0_113, %c12_114, %c0_115], %118 {strides = array<i32>} : memref<1x1x50x128xf32, #tpu.memory_space<vmem>>, vector<1x1x24x128xf32>,
    %c0_116 = arith.constant 0 : index
    %c0_117 = arith.constant 0 : index
    %c15 = arith.constant 15 : index
    %c0_118 = arith.constant 0 : index
    %119 = vector.load %arg9[%c0_116, %c0_117, %c15, %c0_118] : memref<1x1x50x128xf32, #tpu.memory_space<vmem>>, vector<1x1x24x128xf32>
    %120 = vector.shape_cast %119 : vector<1x1x24x128xf32> to vector<24x128xf32>
    %121 = vector.extract_strided_slice %76 {offsets = [0, 640], sizes = [24, 128], strides = [1, 1]} : vector<24x1280xf32> to vector<24x128xf32>
    %122 = arith.addf %120, %121 : vector<24x128xf32>
    %c0_119 = arith.constant 0 : index
    %c0_120 = arith.constant 0 : index
    %c15_121 = arith.constant 15 : index
    %c0_122 = arith.constant 0 : index
    %123 = vector.load %arg9[%c0_119, %c0_120, %c15_121, %c0_122] : memref<1x1x50x128xf32, #tpu.memory_space<vmem>>, vector<1x1x24x128xf32>
    %124 = vector.shape_cast %123 : vector<1x1x24x128xf32> to vector<24x128xf32>
    %125 = vector.shape_cast %122 : vector<24x128xf32> to vector<1x1x24x128xf32>
    tpu.vector_store %arg9[%c0_119, %c0_120, %c15_121, %c0_122], %125 {strides = array<i32>} : memref<1x1x50x128xf32, #tpu.memory_space<vmem>>, vector<1x1x24x128xf32>,
    %c0_123 = arith.constant 0 : index
    %c0_124 = arith.constant 0 : index
    %c18 = arith.constant 18 : index
    %c0_125 = arith.constant 0 : index
    %126 = vector.load %arg9[%c0_123, %c0_124, %c18, %c0_125] : memref<1x1x50x128xf32, #tpu.memory_space<vmem>>, vector<1x1x24x128xf32>
    %127 = vector.shape_cast %126 : vector<1x1x24x128xf32> to vector<24x128xf32>
    %128 = vector.extract_strided_slice %76 {offsets = [0, 768], sizes = [24, 128], strides = [1, 1]} : vector<24x1280xf32> to vector<24x128xf32>
    %129 = arith.addf %127, %128 : vector<24x128xf32>
    %c0_126 = arith.constant 0 : index
    %c0_127 = arith.constant 0 : index
    %c18_128 = arith.constant 18 : index
    %c0_129 = arith.constant 0 : index
    %130 = vector.load %arg9[%c0_126, %c0_127, %c18_128, %c0_129] : memref<1x1x50x128xf32, #tpu.memory_space<vmem>>, vector<1x1x24x128xf32>
    %131 = vector.shape_cast %130 : vector<1x1x24x128xf32> to vector<24x128xf32>
    %132 = vector.shape_cast %129 : vector<24x128xf32> to vector<1x1x24x128xf32>
    tpu.vector_store %arg9[%c0_126, %c0_127, %c18_128, %c0_129], %132 {strides = array<i32>} : memref<1x1x50x128xf32, #tpu.memory_space<vmem>>, vector<1x1x24x128xf32>,
    %c0_130 = arith.constant 0 : index
    %c0_131 = arith.constant 0 : index
    %c21 = arith.constant 21 : index
    %c0_132 = arith.constant 0 : index
    %133 = vector.load %arg9[%c0_130, %c0_131, %c21, %c0_132] : memref<1x1x50x128xf32, #tpu.memory_space<vmem>>, vector<1x1x24x128xf32>
    %134 = vector.shape_cast %133 : vector<1x1x24x128xf32> to vector<24x128xf32>
    %135 = vector.extract_strided_slice %76 {offsets = [0, 896], sizes = [24, 128], strides = [1, 1]} : vector<24x1280xf32> to vector<24x128xf32>
    %136 = arith.addf %134, %135 : vector<24x128xf32>
    %c0_133 = arith.constant 0 : index
    %c0_134 = arith.constant 0 : index
    %c21_135 = arith.constant 21 : index
    %c0_136 = arith.constant 0 : index
    %137 = vector.load %arg9[%c0_133, %c0_134, %c21_135, %c0_136] : memref<1x1x50x128xf32, #tpu.memory_space<vmem>>, vector<1x1x24x128xf32>
    %138 = vector.shape_cast %137 : vector<1x1x24x128xf32> to vector<24x128xf32>
    %139 = vector.shape_cast %136 : vector<24x128xf32> to vector<1x1x24x128xf32>
    tpu.vector_store %arg9[%c0_133, %c0_134, %c21_135, %c0_136], %139 {strides = array<i32>} : memref<1x1x50x128xf32, #tpu.memory_space<vmem>>, vector<1x1x24x128xf32>,
    %c0_137 = arith.constant 0 : index
    %c0_138 = arith.constant 0 : index
    %c24 = arith.constant 24 : index
    %c0_139 = arith.constant 0 : index
    %140 = vector.load %arg9[%c0_137, %c0_138, %c24, %c0_139] : memref<1x1x50x128xf32, #tpu.memory_space<vmem>>, vector<1x1x24x128xf32>
    %141 = vector.shape_cast %140 : vector<1x1x24x128xf32> to vector<24x128xf32>
    %142 = vector.extract_strided_slice %76 {offsets = [0, 1024], sizes = [24, 128], strides = [1, 1]} : vector<24x1280xf32> to vector<24x128xf32>
    %143 = arith.addf %141, %142 : vector<24x128xf32>
    %c0_140 = arith.constant 0 : index
    %c0_141 = arith.constant 0 : index
    %c24_142 = arith.constant 24 : index
    %c0_143 = arith.constant 0 : index
    %144 = vector.load %arg9[%c0_140, %c0_141, %c24_142, %c0_143] : memref<1x1x50x128xf32, #tpu.memory_space<vmem>>, vector<1x1x24x128xf32>
    %145 = vector.shape_cast %144 : vector<1x1x24x128xf32> to vector<24x128xf32>
    %146 = vector.shape_cast %143 : vector<24x128xf32> to vector<1x1x24x128xf32>
    tpu.vector_store %arg9[%c0_140, %c0_141, %c24_142, %c0_143], %146 {strides = array<i32>} : memref<1x1x50x128xf32, #tpu.memory_space<vmem>>, vector<1x1x24x128xf32>,
    %c0_144 = arith.constant 0 : index
    %c0_145 = arith.constant 0 : index
    %c27 = arith.constant 27 : index
    %c0_146 = arith.constant 0 : index
    %147 = vector.load %arg9[%c0_144, %c0_145, %c27, %c0_146] : memref<1x1x50x128xf32, #tpu.memory_space<vmem>>, vector<1x1x23x128xf32>
    %148 = vector.shape_cast %147 : vector<1x1x23x128xf32> to vector<23x128xf32>
    %149 = vector.extract_strided_slice %76 {offsets = [0, 1152], sizes = [23, 128], strides = [1, 1]} : vector<24x1280xf32> to vector<23x128xf32>
    %150 = arith.addf %148, %149 : vector<23x128xf32>
    %c0_147 = arith.constant 0 : index
    %c0_148 = arith.constant 0 : index
    %c27_149 = arith.constant 27 : index
    %c0_150 = arith.constant 0 : index
    %151 = vector.load %arg9[%c0_147, %c0_148, %c27_149, %c0_150] : memref<1x1x50x128xf32, #tpu.memory_space<vmem>>, vector<1x1x23x128xf32>
    %152 = vector.shape_cast %151 : vector<1x1x23x128xf32> to vector<23x128xf32>
    %153 = vector.shape_cast %150 : vector<23x128xf32> to vector<1x1x23x128xf32>
    tpu.vector_store %arg9[%c0_147, %c0_148, %c27_149, %c0_150], %153 {strides = array<i32>} : memref<1x1x50x128xf32, #tpu.memory_space<vmem>>, vector<1x1x23x128xf32>,
    return
  }
  func.func @transform_0(%arg0: i32, %arg1: i32) -> (i32, i32, i32) {
    %c0_i32 = arith.constant 0 : i32
    %c0_i32_0 = arith.constant 0 : i32
    %c0_i32_1 = arith.constant 0 : i32
    return %arg1, %c0_i32, %c0_i32_0 : i32, i32, i32
  }
  func.func @transform_1(%arg0: i32, %arg1: i32) -> (i32, i32, i32) {
    %c0_i32 = arith.constant 0 : i32
    %c0_i32_0 = arith.constant 0 : i32
    %c0_i32_1 = arith.constant 0 : i32
    return %arg0, %c0_i32, %c0_i32_0 : i32, i32, i32
  }
  func.func @transform_2(%arg0: i32, %arg1: i32) -> (i32, i32, i32) {
    %c0_i32 = arith.constant 0 : i32
    %c0_i32_0 = arith.constant 0 : i32
    %c0_i32_1 = arith.constant 0 : i32
    return %arg0, %c0_i32, %c0_i32_0 : i32, i32, i32
  }
  func.func @transform_3(%arg0: i32, %arg1: i32) -> (i32, i32, i32) {
    %c0_i32 = arith.constant 0 : i32
    %c0_i32_0 = arith.constant 0 : i32
    %c0_i32_1 = arith.constant 0 : i32
    return %arg0, %c0_i32, %c0_i32_0 : i32, i32, i32
  }
  func.func @transform_4(%arg0: i32, %arg1: i32) -> (i32, i32, i32) {
    %c0_i32 = arith.constant 0 : i32
    %c0_i32_0 = arith.constant 0 : i32
    %c0_i32_1 = arith.constant 0 : i32
    return %arg0, %c0_i32, %c0_i32_0 : i32, i32, i32
  }
  func.func @transform_5(%arg0: i32, %arg1: i32) -> (i32, i32, i32) {
    %c0_i32 = arith.constant 0 : i32
    %c0_i32_0 = arith.constant 0 : i32
    %c0_i32_1 = arith.constant 0 : i32
    return %arg0, %c0_i32, %c0_i32_0 : i32, i32, i32
  }
  func.func @transform_6(%arg0: i32, %arg1: i32) -> (i32, i32, i32) {
    %c0_i32 = arith.constant 0 : i32
    %c0_i32_0 = arith.constant 0 : i32
    %c0_i32_1 = arith.constant 0 : i32
    return %arg0, %c0_i32, %c0_i32_0 : i32, i32, i32
  }
  func.func @transform_7(%arg0: i32, %arg1: i32) -> (i32, i32, i32, i32) {
    %c0_i32 = arith.constant 0 : i32
    %c0_i32_0 = arith.constant 0 : i32
    %c0_i32_1 = arith.constant 0 : i32
    return %arg0, %arg1, %c0_i32, %c0_i32_0 : i32, i32, i32, i32
  }
}

</mosaic_0001>

<llo_original>
// kernel: decoder_forward.1
$region0: #{decoder_forward.1}
  #allocation0 [shape = 'u32[]', space=smem, size = 0x4, offset = 0x4, fixed_abs, tag = 'smem constant byte address 0x4 - core index']
  #allocation1 [shape = 'u32[144,128]{1,0:T(1,128)}', space=vmem, size = 0x12000, scoped, tag = 'internal scratch']
  #allocation2 [shape = 'f32[12,128]{1,0:T(8,128)}', space=vmem, size = 0x2000, scoped, tag = 'scratch operand']
  #allocation3 [shape = 'f32[24,256]{1,0:T(8,128)}', space=vmem, size = 0x6000, scoped, tag = 'scratch operand']
  %s0 = inlined_call_operand.vmem [shape: f32[2,4,4], index: 0, kind: input, shape index: {}]
  %s1 = inlined_call_operand.hbm [shape: f32[3,4,640], index: 1, kind: input, shape index: {}]
  %s2 = inlined_call_operand.hbm [shape: f32[3,1,128], index: 2, kind: input, shape index: {}]
  %s3 = inlined_call_operand.hbm [shape: f32[3,60,1792], index: 3, kind: input, shape index: {}]
  %s4 = inlined_call_operand.hbm [shape: f32[3,1,256], index: 4, kind: input, shape index: {}]
  %s5 = inlined_call_operand.hbm [shape: f32[3,240,1280], index: 5, kind: input, shape index: {}]
  %s6 = inlined_call_operand.hbm [shape: f32[3,1,128], index: 6, kind: input, shape index: {}]
  %s7 = inlined_call_operand.vmem [shape: f32[3,2,50,128], index: 7, kind: output, shape index: {}]
  %s8 = sld [smem:[#allocation0]]
  $region85: #{decoder_forward.1} parent=0
    _
  %s10 = ssub.s32 1, %s8
  %s11 = scalar_select 0, %s10, %s8
  $region1: #{decoder_forward.1} parent=0
    #allocation4 [shape = 'u8[20480]{0}', space=vmem, size = 0x5000, scoped, tag = 'input window, operand 1']
    #allocation5 [shape = 's32[2]{0}', space=sflag, size = 0x8, scoped, tag = 'scoped memory for decoder_forward.1']
    #allocation6 [shape = 'u8[1024]{0}', space=vmem, size = 0x400, scoped, tag = 'input window, operand 2']
    #allocation7 [shape = 's32[2]{0}', space=sflag, size = 0x8, scoped, tag = 'scoped memory for decoder_forward.1']
    #allocation8 [shape = 'u8[917504]{0}', space=vmem, size = 0xe0000, scoped, tag = 'input window, operand 3']
    #allocation9 [shape = 'u8[2048]{0}', space=vmem, size = 0x800, scoped, tag = 'input window, operand 4']
    #allocation10 [shape = 's32[2]{0}', space=sflag, size = 0x8, scoped, tag = 'scoped memory for decoder_forward.1']
    #allocation11 [shape = 'u8[2457600]{0}', space=vmem, size = 0x258000, scoped, tag = 'input window, operand 5']
    #allocation12 [shape = 'u8[1024]{0}', space=vmem, size = 0x400, scoped, tag = 'input window, operand 6']
    #allocation13 [shape = 's32[2]{0}', space=sflag, size = 0x8, scoped, tag = 'scoped memory for decoder_forward.1']
    %12 = vsyncpa [#allocation5], 0
    %s13 = scalar_lea.sflag [#allocation5], 1
    %14 = vsyncpa %s13, 0
    %15 = vsyncpa [#allocation7], 0
    %s16 = scalar_lea.sflag [#allocation7], 1
    %17 = vsyncpa %s16, 0
    %18 = vsyncpa [#allocation10], 0
    %s19 = scalar_lea.sflag [#allocation10], 1
    %20 = vsyncpa %s19, 0
    %21 = vsyncpa [#allocation13], 0
    %s22 = scalar_lea.sflag [#allocation13], 1
    %23 = vsyncpa %s22, 0
    loop: start=0, step=1, limit=8
    $region2: #{decoder_forward.1} parent=1 // loop_pre_header
      _
    $region3: #{decoder_forward.1} parent=1 // loop_header
      %s25 = sphi 0, %s29
      %p26 = scmp.ge.s32.totalorder %s25, 8
      %s32 = sphi 0, %s44
      %s33 = sphi 0, %s40
      %s34 = sphi 0, %s32
      %s35 = sphi 0, %s33
      %s36 = sphi 0, %s34
      %s37 = sphi 0, %s35
      %s47 = sphi 0, %s49
      %s50 = sphi 0, %s47
      %s51 = sphi 0, %s50
      %s67 = sphi 0, %s51
      %s73 = sphi 0, %s75
      %s76 = sphi 0, %s73
      %s77 = sphi 0, %s76
      %s93 = sphi 0, %s77
      %s99 = sphi 0, %s101
      %s102 = sphi 0, %s99
      %s103 = sphi 0, %s102
      %s119 = sphi 0, %s103
      %s125 = sphi 0, %s127
      %s128 = sphi 0, %s125
      %s129 = sphi 0, %s128
      %s145 = sphi 0, %s129
      %s151 = sphi 0, %s153
      %s154 = sphi 0, %s151
      %s155 = sphi 0, %s154
      %s171 = sphi 0, %s155
      %s177 = sphi 0, %s179
      %s180 = sphi 0, %s177
      %s181 = sphi 0, %s180
      %s197 = sphi 0, %s181
      %s203 = sphi 0, %s205
      %s206 = sphi 0, %s203
      %s207 = sphi 0, %s206
      %s223 = sphi 0, %s207
      %s231 = sphi 0, %s233
      %s234 = sphi 0, %s231
      %s235 = sphi 0, %s234
      %s251 = sphi 0, %s235
    $region4: #{decoder_forward.1} parent=1 // loop_header_branch
      %28 = sbr.rel (%p26) target = $region8
    $region5: #{decoder_forward.1} parent=1 // loop_body
      %s30 = ssub.s32 %s25, 1
      %s31 = ssub.s32 %s25, 2
      %s38 = sadd.s32 1, %s33
      %p39 = scmp.ge.s32.totalorder %s38, 2
      %s40 = scalar_select %p39, 0, %s38
      %s41 = sadd.s32 1, %s32
      %s42 = scalar_select %p39, %s41, %s32
      %p43 = scmp.ge.s32.totalorder %s42, 3
      %s44 = scalar_select %p43, 0, %s42
      %s45 = ssub.s32 %s33, %s40
      %p46 = scmp.eq.s32.totalorder %s45, 0
      %s48 = sadd.s32 %s47, 1
      %s49 = scalar_select %p46, %s47, %s48
      %p52 = pneg %p46
      %p53 = scmp.eq.s32.totalorder %s25, 5
      %p54 = por %p52, %p53
      %p55 = scmp.ne.s32.totalorder %s47, %s50
      %p56 = scmp.eq.s32.totalorder %s25, 0
      %p57 = por %p55, %p56
      %p58 = scmp.ne.s32.totalorder %s47, %s50
      %p59 = scmp.eq.s32.totalorder %s30, 5
      %p60 = por %p58, %p59
      %p61 = scmp.ne.s32.totalorder %s50, %s51
      %p62 = scmp.eq.s32.totalorder %s30, 0
      %p63 = por %p61, %p62
      %p64 = scmp.ne.s32.totalorder %s50, %s51
      %p65 = scmp.eq.s32.totalorder %s31, 5
      %p66 = por %p64, %p65
      %p68 = scmp.ne.s32.totalorder %s51, %s67
      %p69 = scmp.eq.s32.totalorder %s31, 0
      %p70 = por %p68, %p69
      %s71 = ssub.s32 %s32, %s44
      %p72 = scmp.eq.s32.totalorder %s71, 0
      %s74 = sadd.s32 %s73, 1
      %s75 = scalar_select %p72, %s73, %s74
      %p78 = pneg %p72
      %p79 = scmp.eq.s32.totalorder %s25, 5
      %p80 = por %p78, %p79
      %p81 = scmp.ne.s32.totalorder %s73, %s76
      %p82 = scmp.eq.s32.totalorder %s25, 0
      %p83 = por %p81, %p82
      %p84 = scmp.ne.s32.totalorder %s73, %s76
      %p85 = scmp.eq.s32.totalorder %s30, 5
      %p86 = por %p84, %p85
      %p87 = scmp.ne.s32.totalorder %s76, %s77
      %p88 = scmp.eq.s32.totalorder %s30, 0
      %p89 = por %p87, %p88
      %p90 = scmp.ne.s32.totalorder %s76, %s77
      %p91 = scmp.eq.s32.totalorder %s31, 5
      %p92 = por %p90, %p91
      %p94 = scmp.ne.s32.totalorder %s77, %s93
      %p95 = scmp.eq.s32.totalorder %s31, 0
      %p96 = por %p94, %p95
      %s97 = ssub.s32 %s32, %s44
      %p98 = scmp.eq.s32.totalorder %s97, 0
      %s100 = sadd.s32 %s99, 1
      %s101 = scalar_select %p98, %s99, %s100
      %p104 = pneg %p98
      %p105 = scmp.eq.s32.totalorder %s25, 5
      %p106 = por %p104, %p105
      %p107 = scmp.ne.s32.totalorder %s99, %s102
      %p108 = scmp.eq.s32.totalorder %s25, 0
      %p109 = por %p107, %p108
      %p110 = scmp.ne.s32.totalorder %s99, %s102
      %p111 = scmp.eq.s32.totalorder %s30, 5
      %p112 = por %p110, %p111
      %p113 = scmp.ne.s32.totalorder %s102, %s103
      %p114 = scmp.eq.s32.totalorder %s30, 0
      %p115 = por %p113, %p114
      %p116 = scmp.ne.s32.totalorder %s102, %s103
      %p117 = scmp.eq.s32.totalorder %s31, 5
      %p118 = por %p116, %p117
      %p120 = scmp.ne.s32.totalorder %s103, %s119
      %p121 = scmp.eq.s32.totalorder %s31, 0
      %p122 = por %p120, %p121
      %s123 = ssub.s32 %s32, %s44
      %p124 = scmp.eq.s32.totalorder %s123, 0
      %s126 = sadd.s32 %s125, 1
      %s127 = scalar_select %p124, %s125, %s126
      %p130 = pneg %p124
      %p131 = scmp.eq.s32.totalorder %s25, 5
      %p132 = por %p130, %p131
      %p133 = scmp.ne.s32.totalorder %s125, %s128
      %p134 = scmp.eq.s32.totalorder %s25, 0
      %p135 = por %p133, %p134
      %p136 = scmp.ne.s32.totalorder %s125, %s128
      %p137 = scmp.eq.s32.totalorder %s30, 5
      %p138 = por %p136, %p137
      %p139 = scmp.ne.s32.totalorder %s128, %s129
      %p140 = scmp.eq.s32.totalorder %s30, 0
      %p141 = por %p139, %p140
      %p142 = scmp.ne.s32.totalorder %s128, %s129
      %p143 = scmp.eq.s32.totalorder %s31, 5
      %p144 = por %p142, %p143
      %p146 = scmp.ne.s32.totalorder %s129, %s145
      %p147 = scmp.eq.s32.totalorder %s31, 0
      %p148 = por %p146, %p147
      %s149 = ssub.s32 %s32, %s44
      %p150 = scmp.eq.s32.totalorder %s149, 0
      %s152 = sadd.s32 %s151, 1
      %s153 = scalar_select %p150, %s151, %s152
      %p156 = pneg %p150
      %p157 = scmp.eq.s32.totalorder %s25, 5
      %p158 = por %p156, %p157
      %p159 = scmp.ne.s32.totalorder %s151, %s154
      %p160 = scmp.eq.s32.totalorder %s25, 0
      %p161 = por %p159, %p160
      %p162 = scmp.ne.s32.totalorder %s151, %s154
      %p163 = scmp.eq.s32.totalorder %s30, 5
      %p164 = por %p162, %p163
      %p165 = scmp.ne.s32.totalorder %s154, %s155
      %p166 = scmp.eq.s32.totalorder %s30, 0
      %p167 = por %p165, %p166
      %p168 = scmp.ne.s32.totalorder %s154, %s155
      %p169 = scmp.eq.s32.totalorder %s31, 5
      %p170 = por %p168, %p169
      %p172 = scmp.ne.s32.totalorder %s155, %s171
      %p173 = scmp.eq.s32.totalorder %s31, 0
      %p174 = por %p172, %p173
      %s175 = ssub.s32 %s32, %s44
      %p176 = scmp.eq.s32.totalorder %s175, 0
      %s178 = sadd.s32 %s177, 1
      %s179 = scalar_select %p176, %s177, %s178
      %p182 = pneg %p176
      %p183 = scmp.eq.s32.totalorder %s25, 5
      %p184 = por %p182, %p183
      %p185 = scmp.ne.s32.totalorder %s177, %s180
      %p186 = scmp.eq.s32.totalorder %s25, 0
      %p187 = por %p185, %p186
      %p188 = scmp.ne.s32.totalorder %s177, %s180
      %p189 = scmp.eq.s32.totalorder %s30, 5
      %p190 = por %p188, %p189
      %p191 = scmp.ne.s32.totalorder %s180, %s181
      %p192 = scmp.eq.s32.totalorder %s30, 0
      %p193 = por %p191, %p192
      %p194 = scmp.ne.s32.totalorder %s180, %s181
      %p195 = scmp.eq.s32.totalorder %s31, 5
      %p196 = por %p194, %p195
      %p198 = scmp.ne.s32.totalorder %s181, %s197
      %p199 = scmp.eq.s32.totalorder %s31, 0
      %p200 = por %p198, %p199
      %s201 = ssub.s32 %s32, %s44
      %p202 = scmp.eq.s32.totalorder %s201, 0
      %s204 = sadd.s32 %s203, 1
      %s205 = scalar_select %p202, %s203, %s204
      %p208 = pneg %p202
      %p209 = scmp.eq.s32.totalorder %s25, 5
      %p210 = por %p208, %p209
      %p211 = scmp.ne.s32.totalorder %s203, %s206
      %p212 = scmp.eq.s32.totalorder %s25, 0
      %p213 = por %p211, %p212
      %p214 = scmp.ne.s32.totalorder %s203, %s206
      %p215 = scmp.eq.s32.totalorder %s30, 5
      %p216 = por %p214, %p215
      %p217 = scmp.ne.s32.totalorder %s206, %s207
      %p218 = scmp.eq.s32.totalorder %s30, 0
      %p219 = por %p217, %p218
      %p220 = scmp.ne.s32.totalorder %s206, %s207
      %p221 = scmp.eq.s32.totalorder %s31, 5
      %p222 = por %p220, %p221
      %p224 = scmp.ne.s32.totalorder %s207, %s223
      %p225 = scmp.eq.s32.totalorder %s31, 0
      %p226 = por %p224, %p225
      %s227 = ssub.s32 %s32, %s44
      %s228 = ssub.s32 %s33, %s40
      %s229 = sor.u32 %s227, %s228
      %p230 = scmp.eq.s32.totalorder %s229, 0
      %s232 = sadd.s32 %s231, 1
      %s233 = scalar_select %p230, %s231, %s232
      %p236 = pneg %p230
      %p237 = scmp.eq.s32.totalorder %s25, 5
      %p238 = por %p236, %p237
      %p239 = scmp.ne.s32.totalorder %s231, %s234
      %p240 = scmp.eq.s32.totalorder %s25, 0
      %p241 = por %p239, %p240
      %p242 = scmp.ne.s32.totalorder %s231, %s234
      %p243 = scmp.eq.s32.totalorder %s30, 5
      %p244 = por %p242, %p243
      %p245 = scmp.ne.s32.totalorder %s234, %s235
      %p246 = scmp.eq.s32.totalorder %s30, 0
      %p247 = por %p245, %p246
      %p248 = scmp.ne.s32.totalorder %s234, %s235
      %p249 = scmp.eq.s32.totalorder %s31, 5
      %p250 = por %p248, %p249
      %p252 = scmp.ne.s32.totalorder %s235, %s251
      %p253 = scmp.eq.s32.totalorder %s31, 0
      %p254 = por %p252, %p253
      %p255 = scmp.le.s32.totalorder 1, %s25
      %p256 = scmp.lt.s32.totalorder %s25, 7
      %p257 = pnand %p255, %p256
      %p258 = pneg %p257
      // Predicated region
      $region9: #{decoder_forward.1} parent=5 // pred_check
        _
      $region10: #{decoder_forward.1} parent=5 // pred_check_branch
        %260 = sbr.rel (%p257) target = $region12
      $region11: #{decoder_forward.1} parent=5 // pred_region
        %s261 = ssub.s32 %s25, 1
      $region12: #{decoder_forward.1} parent=5 // pred_fallthru
        _
      %p262 = scmp.lt.s32.totalorder %s25, 6
      // Predicated region
      $region13: #{decoder_forward.1} parent=5 // pred_check
        %p263 = pneg %p262
      $region14: #{decoder_forward.1} parent=5 // pred_check_branch
        %265 = sbr.rel (%p263) target = $region16
      $region15: #{decoder_forward.1} parent=5 // pred_region
        // Predicated region
        $region17: #{decoder_forward.1} parent=15 // pred_check
          %p266 = pneg %p57
        $region18: #{decoder_forward.1} parent=15 // pred_check_branch
          %268 = sbr.rel (%p266) target = $region20
        $region19: #{decoder_forward.1} parent=15 // pred_region
          %p269 = scmp.lt.s32.totalorder %s33, 1
          %s270 = scalar_select %p269, %s33, 1
          %s271 = smul.addr %s270, 4
          %s272 = scalar_lea.vmem %s0, %s271
        $region20: #{decoder_forward.1} parent=15 // pred_fallthru
          _
        // Predicated region
        $region21: #{decoder_forward.1} parent=15 // pred_check
          %p273 = pneg %p83
        $region22: #{decoder_forward.1} parent=15 // pred_check_branch
          %275 = sbr.rel (%p273) target = $region24
        $region23: #{decoder_forward.1} parent=15 // pred_region
          %s276 = sand.u32 %s73, 1
          %s277 = scalar_lea.sflag [#allocation5], %s276
          %s278 = sand.u32 %s73, 1
          %s279 = smul.addr %s278, 20
          %s280 = scalar_lea.vmem [#allocation4], %s279
          %s282 = ssub.s32 320, 320
          %283 = vsyncadd %s277, %s282
          %s284 = smul.addr %s32, 5
          %s285 = smul.addr %s284, 64
          %s286 = scalar_lea.hbm %s1, %s285
          %s288 = sshll.u32 %s280, 4
          %s289 = int_to_ptr.vmem [resolvable:$true] %s288
          %291 = dma.hbm_to_vmem [thread:$0]  %s286, 320, %s289, %s277
        $region24: #{decoder_forward.1} parent=15 // pred_fallthru
          _
        // Predicated region
        $region25: #{decoder_forward.1} parent=15 // pred_check
          %p292 = pneg %p109
        $region26: #{decoder_forward.1} parent=15 // pred_check_branch
          %294 = sbr.rel (%p292) target = $region28
        $region27: #{decoder_forward.1} parent=15 // pred_region
          %s295 = sand.u32 %s25, 1
          %s296 = scalar_lea.sflag [#allocation7], %s295
          %s297 = sand.u32 %s99, 1
          %s298 = scalar_lea.vmem [#allocation6], %s297
          %s300 = ssub.s32 16, 16
          %301 = vsyncadd %s296, %s300
          %s302 = smul.addr %s32, 16
          %s303 = scalar_lea.hbm %s2, %s302
          %s305 = sshll.u32 %s298, 4
          %s306 = int_to_ptr.vmem [resolvable:$true] %s305
          %308 = dma.hbm_to_vmem [thread:$0]  %s303, 16, %s306, %s296
        $region28: #{decoder_forward.1} parent=15 // pred_fallthru
          _
        // Predicated region
        $region29: #{decoder_forward.1} parent=15 // pred_check
          %p309 = pneg %p135
        $region30: #{decoder_forward.1} parent=15 // pred_check_branch
          %311 = sbr.rel (%p309) target = $region32
        $region31: #{decoder_forward.1} parent=15 // pred_region
          %s312 = sand.u32 %s25, 1
          %s313 = scalar_lea.sflag [#allocation7], %s312
          %s314 = sand.u32 %s125, 1
          %s315 = smul.addr %s314, 896
          %s316 = scalar_lea.vmem [#allocation8], %s315
          %s318 = ssub.s32 14336, 14336
          %319 = vsyncadd %s313, %s318
          %s320 = smul.addr %s32, 112
          %s321 = smul.addr %s320, 128
          %s322 = scalar_lea.hbm %s3, %s321
          %s323 = sshll.u32 %s316, 4
          %s324 = int_to_ptr.vmem [resolvable:$true] %s323
          %329 = dma.hbm_to_vmem [thread:$0]  %s322, 14336, %s324, %s313, 1792, 1792, 112
        $region32: #{decoder_forward.1} parent=15 // pred_fallthru
          _
        // Predicated region
        $region33: #{decoder_forward.1} parent=15 // pred_check
          %p330 = pneg %p161
        $region34: #{decoder_forward.1} parent=15 // pred_check_branch
          %332 = sbr.rel (%p330) target = $region36
        $region35: #{decoder_forward.1} parent=15 // pred_region
          %s333 = sand.u32 %s25, 1
          %s334 = scalar_lea.sflag [#allocation10], %s333
          %s335 = sand.u32 %s151, 1
          %s336 = smul.addr %s335, 2
          %s337 = scalar_lea.vmem [#allocation9], %s336
          %s339 = ssub.s32 32, 32
          %340 = vsyncadd %s334, %s339
          %s341 = smul.addr %s32, 2
          %s342 = smul.addr %s341, 16
          %s343 = scalar_lea.hbm %s4, %s342
          %s345 = sshll.u32 %s337, 4
          %s346 = int_to_ptr.vmem [resolvable:$true] %s345
          %348 = dma.hbm_to_vmem [thread:$0]  %s343, 32, %s346, %s334
        $region36: #{decoder_forward.1} parent=15 // pred_fallthru
          _
        // Predicated region
        $region37: #{decoder_forward.1} parent=15 // pred_check
          %p349 = pneg %p187
        $region38: #{decoder_forward.1} parent=15 // pred_check_branch
          %351 = sbr.rel (%p349) target = $region40
        $region39: #{decoder_forward.1} parent=15 // pred_region
          %s352 = sand.u32 %s25, 1
          %s353 = scalar_lea.sflag [#allocation10], %s352
          %s354 = sand.u32 %s177, 1
          %s355 = smul.addr %s354, 2400
          %s356 = scalar_lea.vmem [#allocation11], %s355
          %s358 = ssub.s32 38400, 38400
          %359 = vsyncadd %s353, %s358
          %s360 = smul.addr %s32, 300
          %s361 = smul.addr %s360, 128
          %s362 = scalar_lea.hbm %s5, %s361
          %s363 = sshll.u32 %s356, 4
          %s364 = int_to_ptr.vmem [resolvable:$true] %s363
          %369 = dma.hbm_to_vmem [thread:$0]  %s362, 38400, %s364, %s353, 1280, 1280, 80
        $region40: #{decoder_forward.1} parent=15 // pred_fallthru
          _
        // Predicated region
        $region41: #{decoder_forward.1} parent=15 // pred_check
          %p370 = pneg %p213
        $region42: #{decoder_forward.1} parent=15 // pred_check_branch
          %372 = sbr.rel (%p370) target = $region44
        $region43: #{decoder_forward.1} parent=15 // pred_region
          %s373 = sand.u32 %s203, 1
          %s374 = scalar_lea.sflag [#allocation13], %s373
          %s375 = sand.u32 %s203, 1
          %s376 = scalar_lea.vmem [#allocation12], %s375
          %s378 = ssub.s32 16, 16
          %379 = vsyncadd %s374, %s378
          %s380 = smul.addr %s32, 16
          %s381 = scalar_lea.hbm %s6, %s380
          %s383 = sshll.u32 %s376, 4
          %s384 = int_to_ptr.vmem [resolvable:$true] %s383
          %386 = dma.hbm_to_vmem [thread:$0]  %s381, 16, %s384, %s374
        $region44: #{decoder_forward.1} parent=15 // pred_fallthru
          _
      $region16: #{decoder_forward.1} parent=5 // pred_fallthru
        _
      %p387 = scmp.le.s32.totalorder 1, %s25
      %p388 = scmp.lt.s32.totalorder %s25, 7
      %p389 = pnand %p387, %p388
      %p390 = pneg %p389
      // Predicated region
      $region45: #{decoder_forward.1} parent=5 // pred_check
        _
      $region46: #{decoder_forward.1} parent=5 // pred_check_branch
        %392 = sbr.rel (%p389) target = $region48
      $region47: #{decoder_forward.1} parent=5 // pred_region
        %s393 = ssub.s32 %s25, 1
        %s394 = sand.u32 %s76, 1
        %s395 = scalar_lea.sflag [#allocation5], %s394
        %s396 = sand.u32 %s76, 1
        %s397 = smul.addr %s396, 20
        %s398 = scalar_lea.vmem [#allocation4], %s397
        // Predicated region
        $region49: #{decoder_forward.1} parent=47 // pred_check
          %p399 = pneg %p89
        $region50: #{decoder_forward.1} parent=47 // pred_check_branch
          %401 = sbr.rel (%p399) target = $region52
        $region51: #{decoder_forward.1} parent=47 // pred_region
          %402 = dma.done %s395, 320
        $region52: #{decoder_forward.1} parent=47 // pred_fallthru
          _
        %s403 = sand.u32 %s30, 1
        %s404 = scalar_lea.sflag [#allocation7], %s403
        %s405 = sand.u32 %s102, 1
        %s406 = scalar_lea.vmem [#allocation6], %s405
        // Predicated region
        $region53: #{decoder_forward.1} parent=47 // pred_check
          %p407 = pneg %p115
        $region54: #{decoder_forward.1} parent=47 // pred_check_branch
          %409 = sbr.rel (%p407) target = $region56
        $region55: #{decoder_forward.1} parent=47 // pred_region
          %410 = dma.done %s404, 16
        $region56: #{decoder_forward.1} parent=47 // pred_fallthru
          _
        %s411 = sand.u32 %s30, 1
        %s412 = scalar_lea.sflag [#allocation7], %s411
        %s413 = sand.u32 %s128, 1
        %s414 = smul.addr %s413, 896
        %s415 = scalar_lea.vmem [#allocation8], %s414
        // Predicated region
        $region57: #{decoder_forward.1} parent=47 // pred_check
          %p416 = pneg %p141
        $region58: #{decoder_forward.1} parent=47 // pred_check_branch
          %418 = sbr.rel (%p416) target = $region60
        $region59: #{decoder_forward.1} parent=47 // pred_region
          %419 = dma.done %s412, 14336
        $region60: #{decoder_forward.1} parent=47 // pred_fallthru
          _
        %s420 = sand.u32 %s30, 1
        %s421 = scalar_lea.sflag [#allocation10], %s420
        %s422 = sand.u32 %s154, 1
        %s423 = smul.addr %s422, 2
        %s424 = scalar_lea.vmem [#allocation9], %s423
        // Predicated region
        $region61: #{decoder_forward.1} parent=47 // pred_check
          %p425 = pneg %p167
        $region62: #{decoder_forward.1} parent=47 // pred_check_branch
          %427 = sbr.rel (%p425) target = $region64
        $region63: #{decoder_forward.1} parent=47 // pred_region
          %428 = dma.done %s421, 32
        $region64: #{decoder_forward.1} parent=47 // pred_fallthru
          _
        %s429 = sand.u32 %s30, 1
        %s430 = scalar_lea.sflag [#allocation10], %s429
        %s431 = sand.u32 %s180, 1
        %s432 = smul.addr %s431, 2400
        %s433 = scalar_lea.vmem [#allocation11], %s432
        // Predicated region
        $region65: #{decoder_forward.1} parent=47 // pred_check
          %p434 = pneg %p193
        $region66: #{decoder_forward.1} parent=47 // pred_check_branch
          %436 = sbr.rel (%p434) target = $region68
        $region67: #{decoder_forward.1} parent=47 // pred_region
          %437 = dma.done %s430, 38400
        $region68: #{decoder_forward.1} parent=47 // pred_fallthru
          _
        %s438 = sand.u32 %s206, 1
        %s439 = scalar_lea.sflag [#allocation13], %s438
        %s440 = sand.u32 %s206, 1
        %s441 = scalar_lea.vmem [#allocation12], %s440
        // Predicated region
        $region69: #{decoder_forward.1} parent=47 // pred_check
          %p442 = pneg %p219
        $region70: #{decoder_forward.1} parent=47 // pred_check_branch
          %444 = sbr.rel (%p442) target = $region72
        $region71: #{decoder_forward.1} parent=47 // pred_region
          %445 = dma.done %s439, 16
        $region72: #{decoder_forward.1} parent=47 // pred_fallthru
          _
        %p446 = scmp.lt.s32.totalorder %s35, 1
        %s447 = scalar_select %p446, %s35, 1
        %s448 = smul.addr %s447, 4
        %s449 = scalar_lea.vmem %s0, %s448
        %p450 = pneg %p63
        %p451 = pneg %p60
        %s452 = sand.u32 %s76, 1
        %s453 = scalar_lea.sflag [#allocation5], %s452
        %s454 = sand.u32 %s76, 1
        %s455 = smul.addr %s454, 20
        %s456 = scalar_lea.vmem [#allocation4], %s455
        %p457 = pneg %p89
        %p458 = pneg %p86
        %s459 = sand.u32 %s30, 1
        %s460 = scalar_lea.sflag [#allocation7], %s459
        %s461 = sand.u32 %s102, 1
        %s462 = scalar_lea.vmem [#allocation6], %s461
        %p463 = pneg %p115
        %p464 = pneg %p112
        %s465 = sand.u32 %s30, 1
        %s466 = scalar_lea.sflag [#allocation7], %s465
        %s467 = sand.u32 %s128, 1
        %s468 = smul.addr %s467, 896
        %s469 = scalar_lea.vmem [#allocation8], %s468
        %p470 = pneg %p141
        %p471 = pneg %p138
        %s472 = sand.u32 %s30, 1
        %s473 = scalar_lea.sflag [#allocation10], %s472
        %s474 = sand.u32 %s154, 1
        %s475 = smul.addr %s474, 2
        %s476 = scalar_lea.vmem [#allocation9], %s475
        %p477 = pneg %p167
        %p478 = pneg %p164
        %s479 = sand.u32 %s30, 1
        %s480 = scalar_lea.sflag [#allocation10], %s479
        %s481 = sand.u32 %s180, 1
        %s482 = smul.addr %s481, 2400
        %s483 = scalar_lea.vmem [#allocation11], %s482
        %p484 = pneg %p193
        %p485 = pneg %p190
        %s486 = sand.u32 %s206, 1
        %s487 = scalar_lea.sflag [#allocation13], %s486
        %s488 = sand.u32 %s206, 1
        %s489 = scalar_lea.vmem [#allocation12], %s488
        %p490 = pneg %p219
        %p491 = pneg %p216
        %p492 = pneg %p247
        %p493 = pneg %p244
        %p494 = scmp.lt.s32.totalorder %s34, 2
        %s495 = scalar_select %p494, %s34, 2
        %p496 = scmp.lt.s32.totalorder %s35, 1
        %s497 = scalar_select %p496, %s35, 1
        %s498 = smul.addr %s497, 7
        %s499 = smul.addr %s495, 14
        %s500 = sadd.s32 %s498, %s499
        %s501 = smul.addr %s500, 8
        %s502 = scalar_lea.vmem %s7, %s501
        %p503 = scmp.lt.s32.totalorder %s35, 1
        %s504 = scalar_select %p503, %s35, 1
        %s505 = smul.addr %s504, 4
        %s506 = scalar_lea.vmem %s0, %s505
        %p507 = scmp.lt.s32.totalorder %s34, 2
        %s508 = scalar_select %p507, %s34, 2
        %p509 = scmp.lt.s32.totalorder %s35, 1
        %s510 = scalar_select %p509, %s35, 1
        %s511 = smul.addr %s510, 7
        %s512 = smul.addr %s508, 14
        %s513 = sadd.s32 %s511, %s512
        %s514 = smul.addr %s513, 8
        %s515 = scalar_lea.vmem %s7, %s514
        %v516 = vld [vmem:[%s506] sm:$0xf]
        %v517 = vld [vmem:[%s398] sm:$0xff]
        %v518 = vld [vmem:[%s398 + $0x8] sm:$0xff]
        %v519 = vld [vmem:[%s398 + $0x10] sm:$0xf]
        %v523 = vcombine.high %v517, %v517
        %v524 = vcombine.high %v518, %v518
        %vm525 = vcmask 31744
        %v527 = vsel %vm525, %v516, 0
        %vm529 = vcmask 1043456
        %v530 = vsel %vm529, %v517, 0
        %v532 = vsel %vm529, %v523, 0
        %v534 = vsel %vm529, %v518, 0
        %v536 = vsel %vm529, %v524, 0
        %v538 = vsel %vm529, %v519, 0
        %540 = vmatprep.subr.mxu0 %v532
        %541 = vmatpush1.msra.mxu0 %v530
        %542 = vmatprep.subr.mxu0 0.0
        %543 = vmatpush1.msra.mxu0 0.0
        %544 = vmatprep.subr.mxu0 0.0
        %545 = vmatpush1.msra.mxu0 0.0
        %546 = vmatprep.subr.mxu0 0.0
        %547 = vmatpush1.msra.mxu0 0.0
        %548 = vmatprep.subr.mxu0 0.0
        %549 = vmatpush1.msra.mxu0 0.0
        %550 = vmatprep.subr.mxu0 0.0
        %551 = vmatpush1.msra.mxu0 0.0
        %552 = vmatprep.subr.mxu0 0.0
        %553 = vmatpush1.msra.mxu0 0.0
        %554 = vmatprep.subr.mxu0 0.0
        %555 = vmatpush1.msra.mxu0 0.0
        %556 = vmatprep.subr.mxu0 0.0
        %557 = vmatpush1.msra.mxu0 0.0
        %558 = vmatprep.subr.mxu0 0.0
        %559 = vmatpush1.msra.mxu0 0.0
        %560 = vmatprep.subr.mxu0 0.0
        %561 = vmatpush1.msra.mxu0 0.0
        %562 = vmatprep.subr.mxu0 0.0
        %563 = vmatpush1.msra.mxu0 0.0
        %564 = vmatprep.subr.mxu0 0.0
        %565 = vmatpush1.msra.mxu0 0.0
        %566 = vmatprep.subr.mxu0 0.0
        %567 = vmatpush1.msra.mxu0 0.0
        %568 = vmatprep.subr.mxu0 0.0
        %569 = vmatpush1.msra.mxu0 0.0
        %570 = vmatprep.subr.mxu0 0.0
        %571 = vmatpush1.msra.mxu0 0.0
        %572 = vmatprep.subr.mxu0 0.0
        %573 = vmatpush1.msra.mxu0 0.0
        %574 = vmatprep.subr.mxu0 0.0
        %575 = vmatpush1.msra.mxu0 0.0
        %576 = vmatprep.subr.mxu0 0.0
        %577 = vmatpush1.msra.mxu0 0.0
        %578 = vmatprep.subr.mxu0 0.0
        %579 = vmatpush1.msra.mxu0 0.0
        %580 = vmatprep.subr.mxu0 0.0
        %581 = vmatpush1.msra.mxu0 0.0
        %582 = vmatprep.subr.mxu0 0.0
        %583 = vmatpush1.msra.mxu0 0.0
        %584 = vmatprep.subr.mxu0 0.0
        %585 = vmatpush1.msra.mxu0 0.0
        %586 = vmatprep.subr.mxu0 0.0
        %587 = vmatpush1.msra.mxu0 0.0
        %588 = vmatprep.subr.mxu0 0.0
        %589 = vmatpush1.msra.mxu0 0.0
        %590 = vmatprep.subr.mxu0 0.0
        %591 = vmatpush1.msra.mxu0 0.0
        %592 = vmatprep.subr.mxu0 0.0
        %593 = vmatpush1.msra.mxu0 0.0
        %594 = vmatprep.subr.mxu0 0.0
        %595 = vmatpush1.msra.mxu0 0.0
        %596 = vmatprep.subr.mxu0 0.0
        %597 = vmatpush1.msra.mxu0 0.0
        %598 = vmatprep.subr.mxu0 0.0
        %599 = vmatpush1.msra.mxu0 0.0
        %600 = vmatprep.subr.mxu0 0.0
        %601 = vmatpush1.msra.mxu0 0.0
        %602 = vmatprep.subr.mxu0 0.0
        %603 = vmatpush1.msra.mxu0 0.0
        %604 = vmatprep.mubr.f32.mxu0 0.0
        %605 = vmatmul.mubr.f32.gmra.mrb[0].mxu0 %v527
        %v606 = vpop.f32.mrb[0].mxu0
        %v607 = vadd.f32 0.0, %v606
        %v608 = vpop.f32.mrb[0].mxu0
        %v609 = vadd.f32 0.0, %v608
        %610 = vdwg.mxu0
        %611 = vmatprep.subr.mxu0 %v536
        %612 = vmatpush1.msra.mxu0 %v534
        %613 = vmatprep.subr.mxu0 0.0
        %614 = vmatpush1.msra.mxu0 0.0
        %615 = vmatprep.subr.mxu0 0.0
        %616 = vmatpush1.msra.mxu0 0.0
        %617 = vmatprep.subr.mxu0 0.0
        %618 = vmatpush1.msra.mxu0 0.0
        %619 = vmatprep.subr.mxu0 0.0
        %620 = vmatpush1.msra.mxu0 0.0
        %621 = vmatprep.subr.mxu0 0.0
        %622 = vmatpush1.msra.mxu0 0.0
        %623 = vmatprep.subr.mxu0 0.0
        %624 = vmatpush1.msra.mxu0 0.0
        %625 = vmatprep.subr.mxu0 0.0
        %626 = vmatpush1.msra.mxu0 0.0
        %627 = vmatprep.subr.mxu0 0.0
        %628 = vmatpush1.msra.mxu0 0.0
        %629 = vmatprep.subr.mxu0 0.0
        %630 = vmatpush1.msra.mxu0 0.0
        %631 = vmatprep.subr.mxu0 0.0
        %632 = vmatpush1.msra.mxu0 0.0
        %633 = vmatprep.subr.mxu0 0.0
        %634 = vmatpush1.msra.mxu0 0.0
        %635 = vmatprep.subr.mxu0 0.0
        %636 = vmatpush1.msra.mxu0 0.0
        %637 = vmatprep.subr.mxu0 0.0
        %638 = vmatpush1.msra.mxu0 0.0
        %639 = vmatprep.subr.mxu0 0.0
        %640 = vmatpush1.msra.mxu0 0.0
        %641 = vmatprep.subr.mxu0 0.0
        %642 = vmatpush1.msra.mxu0 0.0
        %643 = vmatprep.subr.mxu0 0.0
        %644 = vmatpush1.msra.mxu0 0.0
        %645 = vmatprep.subr.mxu0 0.0
        %646 = vmatpush1.msra.mxu0 0.0
        %647 = vmatprep.subr.mxu0 0.0
        %648 = vmatpush1.msra.mxu0 0.0
        %649 = vmatprep.subr.mxu0 0.0
        %650 = vmatpush1.msra.mxu0 0.0
        %651 = vmatprep.subr.mxu0 0.0
        %652 = vmatpush1.msra.mxu0 0.0
        %653 = vmatprep.subr.mxu0 0.0
        %654 = vmatpush1.msra.mxu0 0.0
        %655 = vmatprep.subr.mxu0 0.0
        %656 = vmatpush1.msra.mxu0 0.0
        %657 = vmatprep.subr.mxu0 0.0
        %658 = vmatpush1.msra.mxu0 0.0
        %659 = vmatprep.subr.mxu0 0.0
        %660 = vmatpush1.msra.mxu0 0.0
        %661 = vmatprep.subr.mxu0 0.0
        %662 = vmatpush1.msra.mxu0 0.0
        %663 = vmatprep.subr.mxu0 0.0
        %664 = vmatpush1.msra.mxu0 0.0
        %665 = vmatprep.subr.mxu0 0.0
        %666 = vmatpush1.msra.mxu0 0.0
        %667 = vmatprep.subr.mxu0 0.0
        %668 = vmatpush1.msra.mxu0 0.0
        %669 = vmatprep.subr.mxu0 0.0
        %670 = vmatpush1.msra.mxu0 0.0
        %671 = vmatprep.subr.mxu0 0.0
        %672 = vmatpush1.msra.mxu0 0.0
        %673 = vmatprep.subr.mxu0 0.0
        %674 = vmatpush1.msra.mxu0 0.0
        %675 = vmatprep.mubr.f32.mxu0 0.0
        %676 = vmatmul.mubr.f32.gmra.mrb[0].mxu0 %v527
        %v677 = vpop.f32.mrb[0].mxu0
        %v678 = vadd.f32 0.0, %v677
        %v679 = vpop.f32.mrb[0].mxu0
        %v680 = vadd.f32 0.0, %v679
        %681 = vdwg.mxu0
        %682 = vmatprep.subr.mxu0 0.0
        %683 = vmatpush1.msra.mxu0 %v538
        %684 = vmatprep.subr.mxu0 0.0
        %685 = vmatpush1.msra.mxu0 0.0
        %686 = vmatprep.subr.mxu0 0.0
        %687 = vmatpush1.msra.mxu0 0.0
        %688 = vmatprep.subr.mxu0 0.0
        %689 = vmatpush1.msra.mxu0 0.0
        %690 = vmatprep.subr.mxu0 0.0
        %691 = vmatpush1.msra.mxu0 0.0
        %692 = vmatprep.subr.mxu0 0.0
        %693 = vmatpush1.msra.mxu0 0.0
        %694 = vmatprep.subr.mxu0 0.0
        %695 = vmatpush1.msra.mxu0 0.0
        %696 = vmatprep.subr.mxu0 0.0
        %697 = vmatpush1.msra.mxu0 0.0
        %698 = vmatprep.subr.mxu0 0.0
        %699 = vmatpush1.msra.mxu0 0.0
        %700 = vmatprep.subr.mxu0 0.0
        %701 = vmatpush1.msra.mxu0 0.0
        %702 = vmatprep.subr.mxu0 0.0
        %703 = vmatpush1.msra.mxu0 0.0
        %704 = vmatprep.subr.mxu0 0.0
        %705 = vmatpush1.msra.mxu0 0.0
        %706 = vmatprep.subr.mxu0 0.0
        %707 = vmatpush1.msra.mxu0 0.0
        %708 = vmatprep.subr.mxu0 0.0
        %709 = vmatpush1.msra.mxu0 0.0
        %710 = vmatprep.subr.mxu0 0.0
        %711 = vmatpush1.msra.mxu0 0.0
        %712 = vmatprep.subr.mxu0 0.0
        %713 = vmatpush1.msra.mxu0 0.0
        %714 = vmatprep.subr.mxu0 0.0
        %715 = vmatpush1.msra.mxu0 0.0
        %716 = vmatprep.subr.mxu0 0.0
        %717 = vmatpush1.msra.mxu0 0.0
        %718 = vmatprep.subr.mxu0 0.0
        %719 = vmatpush1.msra.mxu0 0.0
        %720 = vmatprep.subr.mxu0 0.0
        %721 = vmatpush1.msra.mxu0 0.0
        %722 = vmatprep.subr.mxu0 0.0
        %723 = vmatpush1.msra.mxu0 0.0
        %724 = vmatprep.subr.mxu0 0.0
        %725 = vmatpush1.msra.mxu0 0.0
        %726 = vmatprep.subr.mxu0 0.0
        %727 = vmatpush1.msra.mxu0 0.0
        %728 = vmatprep.subr.mxu0 0.0
        %729 = vmatpush1.msra.mxu0 0.0
        %730 = vmatprep.subr.mxu0 0.0
        %731 = vmatpush1.msra.mxu0 0.0
        %732 = vmatprep.subr.mxu0 0.0
        %733 = vmatpush1.msra.mxu0 0.0
        %734 = vmatprep.subr.mxu0 0.0
        %735 = vmatpush1.msra.mxu0 0.0
        %736 = vmatprep.subr.mxu0 0.0
        %737 = vmatpush1.msra.mxu0 0.0
        %738 = vmatprep.subr.mxu0 0.0
        %739 = vmatpush1.msra.mxu0 0.0
        %740 = vmatprep.subr.mxu0 0.0
        %741 = vmatpush1.msra.mxu0 0.0
        %742 = vmatprep.subr.mxu0 0.0
        %743 = vmatpush1.msra.mxu0 0.0
        %744 = vmatprep.subr.mxu0 0.0
        %745 = vmatpush1.msra.mxu0 0.0
        %746 = vmatprep.mubr.f32.mxu0 0.0
        %747 = vmatmul.mubr.f32.gmra.mrb[0].mxu0 %v527
        %v748 = vpop.f32.mrb[0].mxu0
        %v749 = vadd.f32 0.0, %v748
        %v750 = vpop.f32.mrb[0].mxu0
        %751 = vdwg.mxu0
        %v752 = vld [vmem:[%s406] sm:$0x1]
        %v754 = vlaneseq
        %v755 = vshrl.u32 %v754, 7
        %v756 = vsub.s32 0, %v755
        %v757 = vrot.slane %v752, %v756
        %759 = vst [vmem:[#allocation2] sm:$0xff] %v757
        %760 = vst [vmem:[#allocation2 + $0x8] sm:$0xf] %v757
        %v761 = vld [vmem:[#allocation2] sm:$0xf]
        %v762 = vadd.f32 %v761, %v607
        %763 = vst [vmem:[#allocation2] sm:$0xf] %v762
        %v764 = vld [vmem:[#allocation2 + $0x2] sm:$0xf]
        %v765 = vadd.f32 %v764, %v609
        %766 = vst [vmem:[#allocation2 + $0x2] sm:$0xf] %v765
        %v767 = vld [vmem:[#allocation2 + $0x4] sm:$0xf]
        %v768 = vadd.f32 %v767, %v678
        %769 = vst [vmem:[#allocation2 + $0x4] sm:$0xf] %v768
        %v770 = vld [vmem:[#allocation2 + $0x6] sm:$0xf]
        %v771 = vadd.f32 %v770, %v680
        %772 = vst [vmem:[#allocation2 + $0x6] sm:$0xf] %v771
        %v773 = vld [vmem:[#allocation2 + $0x8] sm:$0xf]
        %v774 = vadd.f32 %v773, %v749
        %775 = vst [vmem:[#allocation2 + $0x8] sm:$0xf] %v774
        %v776 = vld [vmem:[#allocation2] sm:$0xff]
        %v777 = vld [vmem:[#allocation2 + $0x8] sm:$0xf]
        %v778 = vmax.f32 %v776, 0.0
        %v779 = vmax.f32 %v777, 0.0
        %v780 = vld [vmem:[%s415] sm:$0xff]
        %v781 = vld [vmem:[%s415 + $0x8] sm:$0xff]
        %v782 = vld [vmem:[%s415 + $0x10] sm:$0xff]
        %v783 = vld [vmem:[%s415 + $0x18] sm:$0xff]
        %v784 = vld [vmem:[%s415 + $0x20] sm:$0xff]
        %v785 = vld [vmem:[%s415 + $0x28] sm:$0xff]
        %v786 = vld [vmem:[%s415 + $0x30] sm:$0xff]
        %v787 = vld [vmem:[%s415 + $0x38] sm:$0xff]
        %v788 = vld [vmem:[%s415 + $0x40] sm:$0xff]
        %v789 = vld [vmem:[%s415 + $0x48] sm:$0xff]
        %v790 = vld [vmem:[%s415 + $0x50] sm:$0xff]
        %v791 = vld [vmem:[%s415 + $0x58] sm:$0xff]
        %v792 = vld [vmem:[%s415 + $0x60] sm:$0xff]
        %v793 = vld [vmem:[%s415 + $0x68] sm:$0xff]
        %v794 = vld [vmem:[%s415 + $0x70] sm:$0xff]
        %v795 = vld [vmem:[%s415 + $0x78] sm:$0xff]
        %v796 = vld [vmem:[%s415 + $0x80] sm:$0xff]
        %v797 = vld [vmem:[%s415 + $0x88] sm:$0xff]
        %v798 = vld [vmem:[%s415 + $0x90] sm:$0xff]
        %v799 = vld [vmem:[%s415 + $0x98] sm:$0xff]
        %v800 = vld [vmem:[%s415 + $0xa0] sm:$0xff]
        %v801 = vld [vmem:[%s415 + $0xa8] sm:$0xff]
        %v802 = vld [vmem:[%s415 + $0xb0] sm:$0xff]
        %v803 = vld [vmem:[%s415 + $0xb8] sm:$0xff]
        %v804 = vld [vmem:[%s415 + $0xc0] sm:$0xff]
        %v805 = vld [vmem:[%s415 + $0xc8] sm:$0xff]
        %v806 = vld [vmem:[%s415 + $0xd0] sm:$0xff]
        %v807 = vld [vmem:[%s415 + $0xd8] sm:$0xff]
        %v808 = vld [vmem:[%s415 + $0xe0] sm:$0xff]
        %v809 = vld [vmem:[%s415 + $0xe8] sm:$0xff]
        %v810 = vld [vmem:[%s415 + $0xf0] sm:$0xff]
        %v811 = vld [vmem:[%s415 + $0xf8] sm:$0xff]
        %v812 = vld [vmem:[%s415 + $0x100] sm:$0xff]
        %v813 = vld [vmem:[%s415 + $0x108] sm:$0xff]
        %v814 = vld [vmem:[%s415 + $0x110] sm:$0xff]
        %v815 = vld [vmem:[%s415 + $0x118] sm:$0xff]
        %v816 = vld [vmem:[%s415 + $0x120] sm:$0xff]
        %v817 = vld [vmem:[%s415 + $0x128] sm:$0xff]
        %v818 = vld [vmem:[%s415 + $0x130] sm:$0xff]
        %v819 = vld [vmem:[%s415 + $0x138] sm:$0xff]
        %v820 = vld [vmem:[%s415 + $0x140] sm:$0xff]
        %v821 = vld [vmem:[%s415 + $0x148] sm:$0xff]
        %v822 = vld [vmem:[%s415 + $0x150] sm:$0xff]
        %v823 = vld [vmem:[%s415 + $0x158] sm:$0xff]
        %v824 = vld [vmem:[%s415 + $0x160] sm:$0xff]
        %v825 = vld [vmem:[%s415 + $0x168] sm:$0xff]
        %v826 = vld [vmem:[%s415 + $0x170] sm:$0xff]
        %v827 = vld [vmem:[%s415 + $0x178] sm:$0xff]
        %v828 = vld [vmem:[%s415 + $0x180] sm:$0xff]
        %v829 = vld [vmem:[%s415 + $0x188] sm:$0xff]
        %v830 = vld [vmem:[%s415 + $0x190] sm:$0xff]
        %v831 = vld [vmem:[%s415 + $0x198] sm:$0xff]
        %v832 = vld [vmem:[%s415 + $0x1a0] sm:$0xff]
        %v833 = vld [vmem:[%s415 + $0x1a8] sm:$0xff]
        %v834 = vld [vmem:[%s415 + $0x1b0] sm:$0xff]
        %v835 = vld [vmem:[%s415 + $0x1b8] sm:$0xff]
        %v836 = vld [vmem:[%s415 + $0x1c0] sm:$0xff]
        %v837 = vld [vmem:[%s415 + $0x1c8] sm:$0xff]
        %v838 = vld [vmem:[%s415 + $0x1d0] sm:$0xff]
        %v839 = vld [vmem:[%s415 + $0x1d8] sm:$0xff]
        %v840 = vld [vmem:[%s415 + $0x1e0] sm:$0xff]
        %v841 = vld [vmem:[%s415 + $0x1e8] sm:$0xff]
        %v842 = vld [vmem:[%s415 + $0x1f0] sm:$0xff]
        %v843 = vld [vmem:[%s415 + $0x1f8] sm:$0xff]
        %v844 = vld [vmem:[%s415 + $0x200] sm:$0xff]
        %v845 = vld [vmem:[%s415 + $0x208] sm:$0xff]
        %v846 = vld [vmem:[%s415 + $0x210] sm:$0xff]
        %v847 = vld [vmem:[%s415 + $0x218] sm:$0xff]
        %v848 = vld [vmem:[%s415 + $0x220] sm:$0xff]
        %v849 = vld [vmem:[%s415 + $0x228] sm:$0xff]
        %v850 = vld [vmem:[%s415 + $0x230] sm:$0xff]
        %v851 = vld [vmem:[%s415 + $0x238] sm:$0xff]
        %v852 = vld [vmem:[%s415 + $0x240] sm:$0xff]
        %v853 = vld [vmem:[%s415 + $0x248] sm:$0xff]
        %v854 = vld [vmem:[%s415 + $0x250] sm:$0xff]
        %v855 = vld [vmem:[%s415 + $0x258] sm:$0xff]
        %v856 = vld [vmem:[%s415 + $0x260] sm:$0xff]
        %v857 = vld [vmem:[%s415 + $0x268] sm:$0xff]
        %v858 = vld [vmem:[%s415 + $0x270] sm:$0xff]
        %v859 = vld [vmem:[%s415 + $0x278] sm:$0xff]
        %v860 = vld [vmem:[%s415 + $0x280] sm:$0xff]
        %v861 = vld [vmem:[%s415 + $0x288] sm:$0xff]
        %v862 = vld [vmem:[%s415 + $0x290] sm:$0xff]
        %v863 = vld [vmem:[%s415 + $0x298] sm:$0xff]
        %v864 = vld [vmem:[%s415 + $0x2a0] sm:$0xff]
        %v865 = vld [vmem:[%s415 + $0x2a8] sm:$0xff]
        %v866 = vld [vmem:[%s415 + $0x2b0] sm:$0xff]
        %v867 = vld [vmem:[%s415 + $0x2b8] sm:$0xff]
        %v868 = vld [vmem:[%s415 + $0x2c0] sm:$0xff]
        %v869 = vld [vmem:[%s415 + $0x2c8] sm:$0xff]
        %v870 = vld [vmem:[%s415 + $0x2d0] sm:$0xff]
        %v871 = vld [vmem:[%s415 + $0x2d8] sm:$0xff]
        %v872 = vld [vmem:[%s415 + $0x2e0] sm:$0xff]
        %v873 = vld [vmem:[%s415 + $0x2e8] sm:$0xff]
        %v874 = vld [vmem:[%s415 + $0x2f0] sm:$0xff]
        %v875 = vld [vmem:[%s415 + $0x2f8] sm:$0xff]
        %v876 = vld [vmem:[%s415 + $0x300] sm:$0xff]
        %v877 = vld [vmem:[%s415 + $0x308] sm:$0xff]
        %v878 = vld [vmem:[%s415 + $0x310] sm:$0xf]
        %v879 = vld [vmem:[%s415 + $0x318] sm:$0xf]
        %v880 = vld [vmem:[%s415 + $0x320] sm:$0xf]
        %v881 = vld [vmem:[%s415 + $0x328] sm:$0xf]
        %v882 = vld [vmem:[%s415 + $0x330] sm:$0xf]
        %v883 = vld [vmem:[%s415 + $0x338] sm:$0xf]
        %v884 = vld [vmem:[%s415 + $0x340] sm:$0xf]
        %v885 = vld [vmem:[%s415 + $0x348] sm:$0xf]
        %v886 = vld [vmem:[%s415 + $0x350] sm:$0xf]
        %v887 = vld [vmem:[%s415 + $0x358] sm:$0xf]
        %v888 = vld [vmem:[%s415 + $0x360] sm:$0xf]
        %v889 = vld [vmem:[%s415 + $0x368] sm:$0xf]
        %v890 = vld [vmem:[%s415 + $0x370] sm:$0xf]
        %v891 = vld [vmem:[%s415 + $0x378] sm:$0xf]
        %vm892 = vcmask 490496
        %v894 = vsel %vm892, %v778, 0
        %v897 = vsel %vm892, %v779, 0
        %v900 = vsel %vm529, %v878, 0
        %v903 = vsel %vm529, %v879, 0
        %v906 = vsel %vm529, %v880, 0
        %v909 = vsel %vm529, %v881, 0
        %v912 = vsel %vm529, %v882, 0
        %v915 = vsel %vm529, %v883, 0
        %v918 = vsel %vm529, %v884, 0
        %v921 = vsel %vm529, %v885, 0
        %v924 = vsel %vm529, %v886, 0
        %v927 = vsel %vm529, %v887, 0
        %v930 = vsel %vm529, %v888, 0
        %v933 = vsel %vm529, %v889, 0
        %v936 = vsel %vm529, %v890, 0
        %v939 = vsel %vm529, %v891, 0
        %941 = vmatprep.subr.mxu0 %v781
        %942 = vmatpush1.msra.mxu0 %v780
        %943 = vmatprep.subr.mxu0 %v795
        %944 = vmatpush1.msra.mxu0 %v794
        %945 = vmatprep.subr.mxu0 %v809
        %946 = vmatpush1.msra.mxu0 %v808
        %947 = vmatprep.subr.mxu0 %v823
        %948 = vmatpush1.msra.mxu0 %v822
        %949 = vmatprep.subr.mxu0 %v837
        %950 = vmatpush1.msra.mxu0 %v836
        %951 = vmatprep.subr.mxu0 %v851
        %952 = vmatpush1.msra.mxu0 %v850
        %953 = vmatprep.subr.mxu0 %v865
        %954 = vmatpush1.msra.mxu0 %v864
        %955 = vmatprep.subr.mxu0 %v903
        %956 = vmatpush1.msra.mxu0 %v900
        %957 = vmatprep.subr.mxu0 0.0
        %958 = vmatpush1.msra.mxu0 0.0
        %959 = vmatprep.subr.mxu0 0.0
        %960 = vmatpush1.msra.mxu0 0.0
        %961 = vmatprep.subr.mxu0 0.0
        %962 = vmatpush1.msra.mxu0 0.0
        %963 = vmatprep.subr.mxu0 0.0
        %964 = vmatpush1.msra.mxu0 0.0
        %965 = vmatprep.subr.mxu0 0.0
        %966 = vmatpush1.msra.mxu0 0.0
        %967 = vmatprep.subr.mxu0 0.0
        %968 = vmatpush1.msra.mxu0 0.0
        %969 = vmatprep.subr.mxu0 0.0
        %970 = vmatpush1.msra.mxu0 0.0
        %971 = vmatprep.subr.mxu0 0.0
        %972 = vmatpush1.msra.mxu0 0.0
        %973 = vmatprep.subr.mxu0 0.0
        %974 = vmatpush1.msra.mxu0 0.0
        %975 = vmatprep.subr.mxu0 0.0
        %976 = vmatpush1.msra.mxu0 0.0
        %977 = vmatprep.subr.mxu0 0.0
        %978 = vmatpush1.msra.mxu0 0.0
        %979 = vmatprep.subr.mxu0 0.0
        %980 = vmatpush1.msra.mxu0 0.0
        %981 = vmatprep.subr.mxu0 0.0
        %982 = vmatpush1.msra.mxu0 0.0
        %983 = vmatprep.subr.mxu0 0.0
        %984 = vmatpush1.msra.mxu0 0.0
        %985 = vmatprep.subr.mxu0 0.0
        %986 = vmatpush1.msra.mxu0 0.0
        %987 = vmatprep.subr.mxu0 0.0
        %988 = vmatpush1.msra.mxu0 0.0
        %989 = vmatprep.subr.mxu0 0.0
        %990 = vmatpush1.msra.mxu0 0.0
        %991 = vmatprep.subr.mxu0 0.0
        %992 = vmatpush1.msra.mxu0 0.0
        %993 = vmatprep.subr.mxu0 0.0
        %994 = vmatpush1.msra.mxu0 0.0
        %995 = vmatprep.subr.mxu0 0.0
        %996 = vmatpush1.msra.mxu0 0.0
        %997 = vmatprep.subr.mxu0 0.0
        %998 = vmatpush1.msra.mxu0 0.0
        %999 = vmatprep.subr.mxu0 0.0
        %1000 = vmatpush1.msra.mxu0 0.0
        %1001 = vmatprep.subr.mxu0 0.0
        %1002 = vmatpush1.msra.mxu0 0.0
        %1003 = vmatprep.subr.mxu0 0.0
        %1004 = vmatpush1.msra.mxu0 0.0
        %1005 = vmatprep.mubr.f32.mxu0 0.0
        %1006 = vmatmul.mubr.f32.gmra.mrb[0].mxu0 %v894
        %v1007 = vpop.f32.mrb[0].mxu0
        %v1008 = vadd.f32 0.0, %v1007
        %v1009 = vpop.f32.mrb[0].mxu0
        %v1010 = vadd.f32 0.0, %v1009
        %1011 = vmatprep.mubr.f32.mxu0 0.0
        %1012 = vmatmul.mubr.f32.gmra.mrb[0].mxu0 %v897
        %v1013 = vpop.f32.mrb[0].mxu0
        %v1014 = vadd.f32 0.0, %v1013
        %v1015 = vpop.f32.mrb[0].mxu0
        %v1016 = vadd.f32 0.0, %v1015
        %1017 = vdwg.mxu0
        %1018 = vmatprep.subr.mxu0 %v783
        %1019 = vmatpush1.msra.mxu0 %v782
        %1020 = vmatprep.subr.mxu0 %v797
        %1021 = vmatpush1.msra.mxu0 %v796
        %1022 = vmatprep.subr.mxu0 %v811
        %1023 = vmatpush1.msra.mxu0 %v810
        %1024 = vmatprep.subr.mxu0 %v825
        %1025 = vmatpush1.msra.mxu0 %v824
        %1026 = vmatprep.subr.mxu0 %v839
        %1027 = vmatpush1.msra.mxu0 %v838
        %1028 = vmatprep.subr.mxu0 %v853
        %1029 = vmatpush1.msra.mxu0 %v852
        %1030 = vmatprep.subr.mxu0 %v867
        %1031 = vmatpush1.msra.mxu0 %v866
        %1032 = vmatprep.subr.mxu0 %v909
        %1033 = vmatpush1.msra.mxu0 %v906
        %1034 = vmatprep.subr.mxu0 0.0
        %1035 = vmatpush1.msra.mxu0 0.0
        %1036 = vmatprep.subr.mxu0 0.0
        %1037 = vmatpush1.msra.mxu0 0.0
        %1038 = vmatprep.subr.mxu0 0.0
        %1039 = vmatpush1.msra.mxu0 0.0
        %1040 = vmatprep.subr.mxu0 0.0
        %1041 = vmatpush1.msra.mxu0 0.0
        %1042 = vmatprep.subr.mxu0 0.0
        %1043 = vmatpush1.msra.mxu0 0.0
        %1044 = vmatprep.subr.mxu0 0.0
        %1045 = vmatpush1.msra.mxu0 0.0
        %1046 = vmatprep.subr.mxu0 0.0
        %1047 = vmatpush1.msra.mxu0 0.0
        %1048 = vmatprep.subr.mxu0 0.0
        %1049 = vmatpush1.msra.mxu0 0.0
        %1050 = vmatprep.subr.mxu0 0.0
        %1051 = vmatpush1.msra.mxu0 0.0
        %1052 = vmatprep.subr.mxu0 0.0
        %1053 = vmatpush1.msra.mxu0 0.0
        %1054 = vmatprep.subr.mxu0 0.0
        %1055 = vmatpush1.msra.mxu0 0.0
        %1056 = vmatprep.subr.mxu0 0.0
        %1057 = vmatpush1.msra.mxu0 0.0
        %1058 = vmatprep.subr.mxu0 0.0
        %1059 = vmatpush1.msra.mxu0 0.0
        %1060 = vmatprep.subr.mxu0 0.0
        %1061 = vmatpush1.msra.mxu0 0.0
        %1062 = vmatprep.subr.mxu0 0.0
        %1063 = vmatpush1.msra.mxu0 0.0
        %1064 = vmatprep.subr.mxu0 0.0
        %1065 = vmatpush1.msra.mxu0 0.0
        %1066 = vmatprep.subr.mxu0 0.0
        %1067 = vmatpush1.msra.mxu0 0.0
        %1068 = vmatprep.subr.mxu0 0.0
        %1069 = vmatpush1.msra.mxu0 0.0
        %1070 = vmatprep.subr.mxu0 0.0
        %1071 = vmatpush1.msra.mxu0 0.0
        %1072 = vmatprep.subr.mxu0 0.0
        %1073 = vmatpush1.msra.mxu0 0.0
        %1074 = vmatprep.subr.mxu0 0.0
        %1075 = vmatpush1.msra.mxu0 0.0
        %1076 = vmatprep.subr.mxu0 0.0
        %1077 = vmatpush1.msra.mxu0 0.0
        %1078 = vmatprep.subr.mxu0 0.0
        %1079 = vmatpush1.msra.mxu0 0.0
        %1080 = vmatprep.subr.mxu0 0.0
        %1081 = vmatpush1.msra.mxu0 0.0
        %1082 = vmatprep.mubr.f32.mxu0 0.0
        %1083 = vmatmul.mubr.f32.gmra.mrb[0].mxu0 %v894
        %v1084 = vpop.f32.mrb[0].mxu0
        %v1085 = vadd.f32 0.0, %v1084
        %v1086 = vpop.f32.mrb[0].mxu0
        %v1087 = vadd.f32 0.0, %v1086
        %1088 = vmatprep.mubr.f32.mxu0 0.0
        %1089 = vmatmul.mubr.f32.gmra.mrb[0].mxu0 %v897
        %v1090 = vpop.f32.mrb[0].mxu0
        %v1091 = vadd.f32 0.0, %v1090
        %v1092 = vpop.f32.mrb[0].mxu0
        %v1093 = vadd.f32 0.0, %v1092
        %1094 = vdwg.mxu0
        %1095 = vmatprep.subr.mxu0 %v785
        %1096 = vmatpush1.msra.mxu0 %v784
        %1097 = vmatprep.subr.mxu0 %v799
        %1098 = vmatpush1.msra.mxu0 %v798
        %1099 = vmatprep.subr.mxu0 %v813
        %1100 = vmatpush1.msra.mxu0 %v812
        %1101 = vmatprep.subr.mxu0 %v827
        %1102 = vmatpush1.msra.mxu0 %v826
        %1103 = vmatprep.subr.mxu0 %v841
        %1104 = vmatpush1.msra.mxu0 %v840
        %1105 = vmatprep.subr.mxu0 %v855
        %1106 = vmatpush1.msra.mxu0 %v854
        %1107 = vmatprep.subr.mxu0 %v869
        %1108 = vmatpush1.msra.mxu0 %v868
        %1109 = vmatprep.subr.mxu0 %v915
        %1110 = vmatpush1.msra.mxu0 %v912
        %1111 = vmatprep.subr.mxu0 0.0
        %1112 = vmatpush1.msra.mxu0 0.0
        %1113 = vmatprep.subr.mxu0 0.0
        %1114 = vmatpush1.msra.mxu0 0.0
        %1115 = vmatprep.subr.mxu0 0.0
        %1116 = vmatpush1.msra.mxu0 0.0
        %1117 = vmatprep.subr.mxu0 0.0
        %1118 = vmatpush1.msra.mxu0 0.0
        %1119 = vmatprep.subr.mxu0 0.0
        %1120 = vmatpush1.msra.mxu0 0.0
        %1121 = vmatprep.subr.mxu0 0.0
        %1122 = vmatpush1.msra.mxu0 0.0
        %1123 = vmatprep.subr.mxu0 0.0
        %1124 = vmatpush1.msra.mxu0 0.0
        %1125 = vmatprep.subr.mxu0 0.0
        %1126 = vmatpush1.msra.mxu0 0.0
        %1127 = vmatprep.subr.mxu0 0.0
        %1128 = vmatpush1.msra.mxu0 0.0
        %1129 = vmatprep.subr.mxu0 0.0
        %1130 = vmatpush1.msra.mxu0 0.0
        %1131 = vmatprep.subr.mxu0 0.0
        %1132 = vmatpush1.msra.mxu0 0.0
        %1133 = vmatprep.subr.mxu0 0.0
        %1134 = vmatpush1.msra.mxu0 0.0
        %1135 = vmatprep.subr.mxu0 0.0
        %1136 = vmatpush1.msra.mxu0 0.0
        %1137 = vmatprep.subr.mxu0 0.0
        %1138 = vmatpush1.msra.mxu0 0.0
        %1139 = vmatprep.subr.mxu0 0.0
        %1140 = vmatpush1.msra.mxu0 0.0
        %1141 = vmatprep.subr.mxu0 0.0
        %1142 = vmatpush1.msra.mxu0 0.0
        %1143 = vmatprep.subr.mxu0 0.0
        %1144 = vmatpush1.msra.mxu0 0.0
        %1145 = vmatprep.subr.mxu0 0.0
        %1146 = vmatpush1.msra.mxu0 0.0
        %1147 = vmatprep.subr.mxu0 0.0
        %1148 = vmatpush1.msra.mxu0 0.0
        %1149 = vmatprep.subr.mxu0 0.0
        %1150 = vmatpush1.msra.mxu0 0.0
        %1151 = vmatprep.subr.mxu0 0.0
        %1152 = vmatpush1.msra.mxu0 0.0
        %1153 = vmatprep.subr.mxu0 0.0
        %1154 = vmatpush1.msra.mxu0 0.0
        %1155 = vmatprep.subr.mxu0 0.0
        %1156 = vmatpush1.msra.mxu0 0.0
        %1157 = vmatprep.subr.mxu0 0.0
        %1158 = vmatpush1.msra.mxu0 0.0
        %1159 = vmatprep.mubr.f32.mxu0 0.0
        %1160 = vmatmul.mubr.f32.gmra.mrb[0].mxu0 %v894
        %v1161 = vpop.f32.mrb[0].mxu0
        %v1162 = vadd.f32 0.0, %v1161
        %v1163 = vpop.f32.mrb[0].mxu0
        %v1164 = vadd.f32 0.0, %v1163
        %1165 = vmatprep.mubr.f32.mxu0 0.0
        %1166 = vmatmul.mubr.f32.gmra.mrb[0].mxu0 %v897
        %v1167 = vpop.f32.mrb[0].mxu0
        %v1168 = vadd.f32 0.0, %v1167
        %v1169 = vpop.f32.mrb[0].mxu0
        %v1170 = vadd.f32 0.0, %v1169
        %1171 = vdwg.mxu0
        %1172 = vmatprep.subr.mxu0 %v787
        %1173 = vmatpush1.msra.mxu0 %v786
        %1174 = vmatprep.subr.mxu0 %v801
        %1175 = vmatpush1.msra.mxu0 %v800
        %1176 = vmatprep.subr.mxu0 %v815
        %1177 = vmatpush1.msra.mxu0 %v814
        %1178 = vmatprep.subr.mxu0 %v829
        %1179 = vmatpush1.msra.mxu0 %v828
        %1180 = vmatprep.subr.mxu0 %v843
        %1181 = vmatpush1.msra.mxu0 %v842
        %1182 = vmatprep.subr.mxu0 %v857
        %1183 = vmatpush1.msra.mxu0 %v856
        %1184 = vmatprep.subr.mxu0 %v871
        %1185 = vmatpush1.msra.mxu0 %v870
        %1186 = vmatprep.subr.mxu0 %v921
        %1187 = vmatpush1.msra.mxu0 %v918
        %1188 = vmatprep.subr.mxu0 0.0
        %1189 = vmatpush1.msra.mxu0 0.0
        %1190 = vmatprep.subr.mxu0 0.0
        %1191 = vmatpush1.msra.mxu0 0.0
        %1192 = vmatprep.subr.mxu0 0.0
        %1193 = vmatpush1.msra.mxu0 0.0
        %1194 = vmatprep.subr.mxu0 0.0
        %1195 = vmatpush1.msra.mxu0 0.0
        %1196 = vmatprep.subr.mxu0 0.0
        %1197 = vmatpush1.msra.mxu0 0.0
        %1198 = vmatprep.subr.mxu0 0.0
        %1199 = vmatpush1.msra.mxu0 0.0
        %1200 = vmatprep.subr.mxu0 0.0
        %1201 = vmatpush1.msra.mxu0 0.0
        %1202 = vmatprep.subr.mxu0 0.0
        %1203 = vmatpush1.msra.mxu0 0.0
        %1204 = vmatprep.subr.mxu0 0.0
        %1205 = vmatpush1.msra.mxu0 0.0
        %1206 = vmatprep.subr.mxu0 0.0
        %1207 = vmatpush1.msra.mxu0 0.0
        %1208 = vmatprep.subr.mxu0 0.0
        %1209 = vmatpush1.msra.mxu0 0.0
        %1210 = vmatprep.subr.mxu0 0.0
        %1211 = vmatpush1.msra.mxu0 0.0
        %1212 = vmatprep.subr.mxu0 0.0
        %1213 = vmatpush1.msra.mxu0 0.0
        %1214 = vmatprep.subr.mxu0 0.0
        %1215 = vmatpush1.msra.mxu0 0.0
        %1216 = vmatprep.subr.mxu0 0.0
        %1217 = vmatpush1.msra.mxu0 0.0
        %1218 = vmatprep.subr.mxu0 0.0
        %1219 = vmatpush1.msra.mxu0 0.0
        %1220 = vmatprep.subr.mxu0 0.0
        %1221 = vmatpush1.msra.mxu0 0.0
        %1222 = vmatprep.subr.mxu0 0.0
        %1223 = vmatpush1.msra.mxu0 0.0
        %1224 = vmatprep.subr.mxu0 0.0
        %1225 = vmatpush1.msra.mxu0 0.0
        %1226 = vmatprep.subr.mxu0 0.0
        %1227 = vmatpush1.msra.mxu0 0.0
        %1228 = vmatprep.subr.mxu0 0.0
        %1229 = vmatpush1.msra.mxu0 0.0
        %1230 = vmatprep.subr.mxu0 0.0
        %1231 = vmatpush1.msra.mxu0 0.0
        %1232 = vmatprep.subr.mxu0 0.0
        %1233 = vmatpush1.msra.mxu0 0.0
        %1234 = vmatprep.subr.mxu0 0.0
        %1235 = vmatpush1.msra.mxu0 0.0
        %1236 = vmatprep.mubr.f32.mxu0 0.0
        %1237 = vmatmul.mubr.f32.gmra.mrb[0].mxu0 %v894
        %v1238 = vpop.f32.mrb[0].mxu0
        %v1239 = vadd.f32 0.0, %v1238
        %v1240 = vpop.f32.mrb[0].mxu0
        %v1241 = vadd.f32 0.0, %v1240
        %1242 = vmatprep.mubr.f32.mxu0 0.0
        %1243 = vmatmul.mubr.f32.gmra.mrb[0].mxu0 %v897
        %v1244 = vpop.f32.mrb[0].mxu0
        %v1245 = vadd.f32 0.0, %v1244
        %v1246 = vpop.f32.mrb[0].mxu0
        %v1247 = vadd.f32 0.0, %v1246
        %1248 = vdwg.mxu0
        %1249 = vmatprep.subr.mxu0 %v789
        %1250 = vmatpush1.msra.mxu0 %v788
        %1251 = vmatprep.subr.mxu0 %v803
        %1252 = vmatpush1.msra.mxu0 %v802
        %1253 = vmatprep.subr.mxu0 %v817
        %1254 = vmatpush1.msra.mxu0 %v816
        %1255 = vmatprep.subr.mxu0 %v831
        %1256 = vmatpush1.msra.mxu0 %v830
        %1257 = vmatprep.subr.mxu0 %v845
        %1258 = vmatpush1.msra.mxu0 %v844
        %1259 = vmatprep.subr.mxu0 %v859
        %1260 = vmatpush1.msra.mxu0 %v858
        %1261 = vmatprep.subr.mxu0 %v873
        %1262 = vmatpush1.msra.mxu0 %v872
        %1263 = vmatprep.subr.mxu0 %v927
        %1264 = vmatpush1.msra.mxu0 %v924
        %1265 = vmatprep.subr.mxu0 0.0
        %1266 = vmatpush1.msra.mxu0 0.0
        %1267 = vmatprep.subr.mxu0 0.0
        %1268 = vmatpush1.msra.mxu0 0.0
        %1269 = vmatprep.subr.mxu0 0.0
        %1270 = vmatpush1.msra.mxu0 0.0
        %1271 = vmatprep.subr.mxu0 0.0
        %1272 = vmatpush1.msra.mxu0 0.0
        %1273 = vmatprep.subr.mxu0 0.0
        %1274 = vmatpush1.msra.mxu0 0.0
        %1275 = vmatprep.subr.mxu0 0.0
        %1276 = vmatpush1.msra.mxu0 0.0
        %1277 = vmatprep.subr.mxu0 0.0
        %1278 = vmatpush1.msra.mxu0 0.0
        %1279 = vmatprep.subr.mxu0 0.0
        %1280 = vmatpush1.msra.mxu0 0.0
        %1281 = vmatprep.subr.mxu0 0.0
        %1282 = vmatpush1.msra.mxu0 0.0
        %1283 = vmatprep.subr.mxu0 0.0
        %1284 = vmatpush1.msra.mxu0 0.0
        %1285 = vmatprep.subr.mxu0 0.0
        %1286 = vmatpush1.msra.mxu0 0.0
        %1287 = vmatprep.subr.mxu0 0.0
        %1288 = vmatpush1.msra.mxu0 0.0
        %1289 = vmatprep.subr.mxu0 0.0
        %1290 = vmatpush1.msra.mxu0 0.0
        %1291 = vmatprep.subr.mxu0 0.0
        %1292 = vmatpush1.msra.mxu0 0.0
        %1293 = vmatprep.subr.mxu0 0.0
        %1294 = vmatpush1.msra.mxu0 0.0
        %1295 = vmatprep.subr.mxu0 0.0
        %1296 = vmatpush1.msra.mxu0 0.0
        %1297 = vmatprep.subr.mxu0 0.0
        %1298 = vmatpush1.msra.mxu0 0.0
        %1299 = vmatprep.subr.mxu0 0.0
        %1300 = vmatpush1.msra.mxu0 0.0
        %1301 = vmatprep.subr.mxu0 0.0
        %1302 = vmatpush1.msra.mxu0 0.0
        %1303 = vmatprep.subr.mxu0 0.0
        %1304 = vmatpush1.msra.mxu0 0.0
        %1305 = vmatprep.subr.mxu0 0.0
        %1306 = vmatpush1.msra.mxu0 0.0
        %1307 = vmatprep.subr.mxu0 0.0
        %1308 = vmatpush1.msra.mxu0 0.0
        %1309 = vmatprep.subr.mxu0 0.0
        %1310 = vmatpush1.msra.mxu0 0.0
        %1311 = vmatprep.subr.mxu0 0.0
        %1312 = vmatpush1.msra.mxu0 0.0
        %1313 = vmatprep.mubr.f32.mxu0 0.0
        %1314 = vmatmul.mubr.f32.gmra.mrb[0].mxu0 %v894
        %v1315 = vpop.f32.mrb[0].mxu0
        %v1316 = vadd.f32 0.0, %v1315
        %v1317 = vpop.f32.mrb[0].mxu0
        %v1318 = vadd.f32 0.0, %v1317
        %1319 = vmatprep.mubr.f32.mxu0 0.0
        %1320 = vmatmul.mubr.f32.gmra.mrb[0].mxu0 %v897
        %v1321 = vpop.f32.mrb[0].mxu0
        %v1322 = vadd.f32 0.0, %v1321
        %v1323 = vpop.f32.mrb[0].mxu0
        %v1324 = vadd.f32 0.0, %v1323
        %1325 = vdwg.mxu0
        %1326 = vmatprep.subr.mxu0 %v791
        %1327 = vmatpush1.msra.mxu0 %v790
        %1328 = vmatprep.subr.mxu0 %v805
        %1329 = vmatpush1.msra.mxu0 %v804
        %1330 = vmatprep.subr.mxu0 %v819
        %1331 = vmatpush1.msra.mxu0 %v818
        %1332 = vmatprep.subr.mxu0 %v833
        %1333 = vmatpush1.msra.mxu0 %v832
        %1334 = vmatprep.subr.mxu0 %v847
        %1335 = vmatpush1.msra.mxu0 %v846
        %1336 = vmatprep.subr.mxu0 %v861
        %1337 = vmatpush1.msra.mxu0 %v860
        %1338 = vmatprep.subr.mxu0 %v875
        %1339 = vmatpush1.msra.mxu0 %v874
        %1340 = vmatprep.subr.mxu0 %v933
        %1341 = vmatpush1.msra.mxu0 %v930
        %1342 = vmatprep.subr.mxu0 0.0
        %1343 = vmatpush1.msra.mxu0 0.0
        %1344 = vmatprep.subr.mxu0 0.0
        %1345 = vmatpush1.msra.mxu0 0.0
        %1346 = vmatprep.subr.mxu0 0.0
        %1347 = vmatpush1.msra.mxu0 0.0
        %1348 = vmatprep.subr.mxu0 0.0
        %1349 = vmatpush1.msra.mxu0 0.0
        %1350 = vmatprep.subr.mxu0 0.0
        %1351 = vmatpush1.msra.mxu0 0.0
        %1352 = vmatprep.subr.mxu0 0.0
        %1353 = vmatpush1.msra.mxu0 0.0
        %1354 = vmatprep.subr.mxu0 0.0
        %1355 = vmatpush1.msra.mxu0 0.0
        %1356 = vmatprep.subr.mxu0 0.0
        %1357 = vmatpush1.msra.mxu0 0.0
        %1358 = vmatprep.subr.mxu0 0.0
        %1359 = vmatpush1.msra.mxu0 0.0
        %1360 = vmatprep.subr.mxu0 0.0
        %1361 = vmatpush1.msra.mxu0 0.0
        %1362 = vmatprep.subr.mxu0 0.0
        %1363 = vmatpush1.msra.mxu0 0.0
        %1364 = vmatprep.subr.mxu0 0.0
        %1365 = vmatpush1.msra.mxu0 0.0
        %1366 = vmatprep.subr.mxu0 0.0
        %1367 = vmatpush1.msra.mxu0 0.0
        %1368 = vmatprep.subr.mxu0 0.0
        %1369 = vmatpush1.msra.mxu0 0.0
        %1370 = vmatprep.subr.mxu0 0.0
        %1371 = vmatpush1.msra.mxu0 0.0
        %1372 = vmatprep.subr.mxu0 0.0
        %1373 = vmatpush1.msra.mxu0 0.0
        %1374 = vmatprep.subr.mxu0 0.0
        %1375 = vmatpush1.msra.mxu0 0.0
        %1376 = vmatprep.subr.mxu0 0.0
        %1377 = vmatpush1.msra.mxu0 0.0
        %1378 = vmatprep.subr.mxu0 0.0
        %1379 = vmatpush1.msra.mxu0 0.0
        %1380 = vmatprep.subr.mxu0 0.0
        %1381 = vmatpush1.msra.mxu0 0.0
        %1382 = vmatprep.subr.mxu0 0.0
        %1383 = vmatpush1.msra.mxu0 0.0
        %1384 = vmatprep.subr.mxu0 0.0
        %1385 = vmatpush1.msra.mxu0 0.0
        %1386 = vmatprep.subr.mxu0 0.0
        %1387 = vmatpush1.msra.mxu0 0.0
        %1388 = vmatprep.subr.mxu0 0.0
        %1389 = vmatpush1.msra.mxu0 0.0
        %1390 = vmatprep.mubr.f32.mxu0 0.0
        %1391 = vmatmul.mubr.f32.gmra.mrb[0].mxu0 %v894
        %v1392 = vpop.f32.mrb[0].mxu0
        %v1393 = vadd.f32 0.0, %v1392
        %v1394 = vpop.f32.mrb[0].mxu0
        %v1395 = vadd.f32 0.0, %v1394
        %1396 = vmatprep.mubr.f32.mxu0 0.0
        %1397 = vmatmul.mubr.f32.gmra.mrb[0].mxu0 %v897
        %v1398 = vpop.f32.mrb[0].mxu0
        %v1399 = vadd.f32 0.0, %v1398
        %v1400 = vpop.f32.mrb[0].mxu0
        %v1401 = vadd.f32 0.0, %v1400
        %1402 = vdwg.mxu0
        %1403 = vmatprep.subr.mxu0 %v793
        %1404 = vmatpush1.msra.mxu0 %v792
        %1405 = vmatprep.subr.mxu0 %v807
        %1406 = vmatpush1.msra.mxu0 %v806
        %1407 = vmatprep.subr.mxu0 %v821
        %1408 = vmatpush1.msra.mxu0 %v820
        %1409 = vmatprep.subr.mxu0 %v835
        %1410 = vmatpush1.msra.mxu0 %v834
        %1411 = vmatprep.subr.mxu0 %v849
        %1412 = vmatpush1.msra.mxu0 %v848
        %1413 = vmatprep.subr.mxu0 %v863
        %1414 = vmatpush1.msra.mxu0 %v862
        %1415 = vmatprep.subr.mxu0 %v877
        %1416 = vmatpush1.msra.mxu0 %v876
        %1417 = vmatprep.subr.mxu0 %v939
        %1418 = vmatpush1.msra.mxu0 %v936
        %1419 = vmatprep.subr.mxu0 0.0
        %1420 = vmatpush1.msra.mxu0 0.0
        %1421 = vmatprep.subr.mxu0 0.0
        %1422 = vmatpush1.msra.mxu0 0.0
        %1423 = vmatprep.subr.mxu0 0.0
        %1424 = vmatpush1.msra.mxu0 0.0
        %1425 = vmatprep.subr.mxu0 0.0
        %1426 = vmatpush1.msra.mxu0 0.0
        %1427 = vmatprep.subr.mxu0 0.0
        %1428 = vmatpush1.msra.mxu0 0.0
        %1429 = vmatprep.subr.mxu0 0.0
        %1430 = vmatpush1.msra.mxu0 0.0
        %1431 = vmatprep.subr.mxu0 0.0
        %1432 = vmatpush1.msra.mxu0 0.0
        %1433 = vmatprep.subr.mxu0 0.0
        %1434 = vmatpush1.msra.mxu0 0.0
        %1435 = vmatprep.subr.mxu0 0.0
        %1436 = vmatpush1.msra.mxu0 0.0
        %1437 = vmatprep.subr.mxu0 0.0
        %1438 = vmatpush1.msra.mxu0 0.0
        %1439 = vmatprep.subr.mxu0 0.0
        %1440 = vmatpush1.msra.mxu0 0.0
        %1441 = vmatprep.subr.mxu0 0.0
        %1442 = vmatpush1.msra.mxu0 0.0
        %1443 = vmatprep.subr.mxu0 0.0
        %1444 = vmatpush1.msra.mxu0 0.0
        %1445 = vmatprep.subr.mxu0 0.0
        %1446 = vmatpush1.msra.mxu0 0.0
        %1447 = vmatprep.subr.mxu0 0.0
        %1448 = vmatpush1.msra.mxu0 0.0
        %1449 = vmatprep.subr.mxu0 0.0
        %1450 = vmatpush1.msra.mxu0 0.0
        %1451 = vmatprep.subr.mxu0 0.0
        %1452 = vmatpush1.msra.mxu0 0.0
        %1453 = vmatprep.subr.mxu0 0.0
        %1454 = vmatpush1.msra.mxu0 0.0
        %1455 = vmatprep.subr.mxu0 0.0
        %1456 = vmatpush1.msra.mxu0 0.0
        %1457 = vmatprep.subr.mxu0 0.0
        %1458 = vmatpush1.msra.mxu0 0.0
        %1459 = vmatprep.subr.mxu0 0.0
        %1460 = vmatpush1.msra.mxu0 0.0
        %1461 = vmatprep.subr.mxu0 0.0
        %1462 = vmatpush1.msra.mxu0 0.0
        %1463 = vmatprep.subr.mxu0 0.0
        %1464 = vmatpush1.msra.mxu0 0.0
        %1465 = vmatprep.subr.mxu0 0.0
        %1466 = vmatpush1.msra.mxu0 0.0
        %1467 = vmatprep.mubr.f32.mxu0 0.0
        %1468 = vmatmul.mubr.f32.gmra.mrb[0].mxu0 %v894
        %v1469 = vpop.f32.mrb[0].mxu0
        %v1470 = vadd.f32 0.0, %v1469
        %v1471 = vpop.f32.mrb[0].mxu0
        %v1472 = vadd.f32 0.0, %v1471
        %1473 = vmatprep.mubr.f32.mxu0 0.0
        %1474 = vmatmul.mubr.f32.gmra.mrb[0].mxu0 %v897
        %v1475 = vpop.f32.mrb[0].mxu0
        %v1476 = vadd.f32 0.0, %v1475
        %v1477 = vpop.f32.mrb[0].mxu0
        %v1478 = vadd.f32 0.0, %v1477
        %1479 = vdwg.mxu0
        %v1480 = vld [vmem:[%s424] sm:$0x3]
        %v1482 = vlaneseq
        %v1483 = vshrl.u32 %v1482, 7
        %v1484 = vsub.s32 0, %v1483
        %v1485 = vrot.slane %v1480, %v1484
        %v1486 = vlaneseq
        %v1487 = vshrl.u32 %v1486, 7
        %v1488 = vsub.s32 1, %v1487
        %v1489 = vrot.slane %v1480, %v1488
        %1492 = vst [vmem:[#allocation3] sm:$0xff] %v1485
        %1493 = vst [vmem:[#allocation3 + $0x8] sm:$0xff] %v1489
        %1494 = vst [vmem:[#allocation3 + $0x10] sm:$0xff] %v1485
        %1495 = vst [vmem:[#allocation3 + $0x18] sm:$0xff] %v1489
        %1496 = vst [vmem:[#allocation3 + $0x20] sm:$0xff] %v1485
        %1497 = vst [vmem:[#allocation3 + $0x28] sm:$0xff] %v1489
        %v1498 = vld [vmem:[#allocation3] sm:$0xff]
        %v1499 = vld [vmem:[#allocation3 + $0x8] sm:$0xff]
        %v1500 = vld [vmem:[#allocation3 + $0x10] sm:$0xf]
        %v1501 = vld [vmem:[#allocation3 + $0x18] sm:$0xf]
        %v1502 = vadd.f32 %v1498, %v1008
        %v1503 = vadd.f32 %v1499, %v1010
        %v1504 = vadd.f32 %v1500, %v1014
        %v1505 = vadd.f32 %v1501, %v1016
        %1506 = vst [vmem:[#allocation3] sm:$0xff] %v1502
        %1507 = vst [vmem:[#allocation3 + $0x8] sm:$0xff] %v1503
        %1508 = vst [vmem:[#allocation3 + $0x10] sm:$0xf] %v1504
        %1509 = vst [vmem:[#allocation3 + $0x18] sm:$0xf] %v1505
        %v1510 = vld [vmem:[#allocation3] sm:$0xfc]
        %v1511 = vld [vmem:[#allocation3 + $0x8] sm:$0xfc]
        %v1512 = vld [vmem:[#allocation3 + $0x10] sm:$0x3f]
        %v1513 = vld [vmem:[#allocation3 + $0x18] sm:$0x3f]
        %vm1518 = vcmask 1041408
        %v1519 = vrot.slane %v1085, 6
        %v1520 = vrot.slane %v1087, 6
        %v1521 = vrot.slane %v1091, 6
        %v1522 = vsel %vm1518, %v1519, %v1521
        %v1523 = vrot.slane %v1093, 6
        %v1524 = vsel %vm1518, %v1520, %v1523
        %v1529 = vadd.f32 %v1510, %v1519
        %v1530 = vadd.f32 %v1511, %v1520
        %v1531 = vadd.f32 %v1512, %v1522
        %v1532 = vadd.f32 %v1513, %v1524
        %1533 = vst [vmem:[#allocation3] sm:$0xfc] %v1529
        %1534 = vst [vmem:[#allocation3 + $0x8] sm:$0xfc] %v1530
        %1535 = vst [vmem:[#allocation3 + $0x10] sm:$0x3f] %v1531
        %1536 = vst [vmem:[#allocation3 + $0x18] sm:$0x3f] %v1532
        %v1537 = vld [vmem:[#allocation3] sm:$0xf0]
        %v1538 = vld [vmem:[#allocation3 + $0x8] sm:$0xf0]
        %v1539 = vld [vmem:[#allocation3 + $0x10] sm:$0xff]
        %v1540 = vld [vmem:[#allocation3 + $0x18] sm:$0xff]
        %v1545 = vrot.slane %v1162, 4
        %v1546 = vrot.slane %v1164, 4
        %v1547 = vrot.slane %v1168, 4
        %v1548 = vsel %vm529, %v1545, %v1547
        %v1549 = vrot.slane %v1170, 4
        %v1550 = vsel %vm529, %v1546, %v1549
        %v1555 = vadd.f32 %v1537, %v1545
        %v1556 = vadd.f32 %v1538, %v1546
        %v1557 = vadd.f32 %v1539, %v1548
        %v1558 = vadd.f32 %v1540, %v1550
        %1559 = vst [vmem:[#allocation3] sm:$0xf0] %v1555
        %1560 = vst [vmem:[#allocation3 + $0x8] sm:$0xf0] %v1556
        %1561 = vst [vmem:[#allocation3 + $0x10] sm:$0xff] %v1557
        %1562 = vst [vmem:[#allocation3 + $0x18] sm:$0xff] %v1558
        %v1563 = vld [vmem:[#allocation3] sm:$0xc0]
        %v1564 = vld [vmem:[#allocation3 + $0x8] sm:$0xc0]
        %v1565 = vld [vmem:[#allocation3 + $0x10] sm:$0xff]
        %v1566 = vld [vmem:[#allocation3 + $0x18] sm:$0xff]
        %v1567 = vld [vmem:[#allocation3 + $0x20] sm:$0x3]
        %v1568 = vld [vmem:[#allocation3 + $0x28] sm:$0x3]
        %vm1573 = vcmask 1045504
        %v1574 = vrot.slane %v1239, 2
        %v1575 = vrot.slane %v1241, 2
        %v1576 = vrot.slane %v1245, 2
        %v1577 = vsel %vm1573, %v1574, %v1576
        %v1578 = vrot.slane %v1247, 2
        %v1579 = vsel %vm1573, %v1575, %v1578
        %v1586 = vadd.f32 %v1563, %v1574
        %v1587 = vadd.f32 %v1564, %v1575
        %v1588 = vadd.f32 %v1565, %v1577
        %v1589 = vadd.f32 %v1566, %v1579
        %v1590 = vadd.f32 %v1567, %v1576
        %v1591 = vadd.f32 %v1568, %v1578
        %1592 = vst [vmem:[#allocation3] sm:$0xc0] %v1586
        %1593 = vst [vmem:[#allocation3 + $0x8] sm:$0xc0] %v1587
        %1594 = vst [vmem:[#allocation3 + $0x10] sm:$0xff] %v1588
        %1595 = vst [vmem:[#allocation3 + $0x18] sm:$0xff] %v1589
        %1596 = vst [vmem:[#allocation3 + $0x20] sm:$0x3] %v1590
        %1597 = vst [vmem:[#allocation3 + $0x28] sm:$0x3] %v1591
        %v1598 = vld [vmem:[#allocation3 + $0x10] sm:$0xff]
        %v1599 = vld [vmem:[#allocation3 + $0x18] sm:$0xff]
        %v1600 = vld [vmem:[#allocation3 + $0x20] sm:$0xf]
        %v1601 = vld [vmem:[#allocation3 + $0x28] sm:$0xf]
        %v1602 = vadd.f32 %v1598, %v1316
        %v1603 = vadd.f32 %v1599, %v1318
        %v1604 = vadd.f32 %v1600, %v1322
        %v1605 = vadd.f32 %v1601, %v1324
        %1606 = vst [vmem:[#allocation3 + $0x10] sm:$0xff] %v1602
        %1607 = vst [vmem:[#allocation3 + $0x18] sm:$0xff] %v1603
        %1608 = vst [vmem:[#allocation3 + $0x20] sm:$0xf] %v1604
        %1609 = vst [vmem:[#allocation3 + $0x28] sm:$0xf] %v1605
        %v1610 = vld [vmem:[#allocation3 + $0x10] sm:$0xfc]
        %v1611 = vld [vmem:[#allocation3 + $0x18] sm:$0xfc]
        %v1612 = vld [vmem:[#allocation3 + $0x20] sm:$0x3f]
        %v1613 = vld [vmem:[#allocation3 + $0x28] sm:$0x3f]
        %v1618 = vrot.slane %v1393, 6
        %v1619 = vrot.slane %v1395, 6
        %v1620 = vrot.slane %v1399, 6
        %v1621 = vsel %vm1518, %v1618, %v1620
        %v1622 = vrot.slane %v1401, 6
        %v1623 = vsel %vm1518, %v1619, %v1622
        %v1628 = vadd.f32 %v1610, %v1618
        %v1629 = vadd.f32 %v1611, %v1619
        %v1630 = vadd.f32 %v1612, %v1621
        %v1631 = vadd.f32 %v1613, %v1623
        %1632 = vst [vmem:[#allocation3 + $0x10] sm:$0xfc] %v1628
        %1633 = vst [vmem:[#allocation3 + $0x18] sm:$0xfc] %v1629
        %1634 = vst [vmem:[#allocation3 + $0x20] sm:$0x3f] %v1630
        %1635 = vst [vmem:[#allocation3 + $0x28] sm:$0x3f] %v1631
        %v1636 = vld [vmem:[#allocation3 + $0x10] sm:$0xf0]
        %v1637 = vld [vmem:[#allocation3 + $0x18] sm:$0xf0]
        %v1638 = vld [vmem:[#allocation3 + $0x20] sm:$0xff]
        %v1639 = vld [vmem:[#allocation3 + $0x28] sm:$0xff]
        %v1644 = vrot.slane %v1470, 4
        %v1645 = vrot.slane %v1472, 4
        %v1646 = vrot.slane %v1476, 4
        %v1647 = vsel %vm529, %v1644, %v1646
        %v1648 = vrot.slane %v1478, 4
        %v1649 = vsel %vm529, %v1645, %v1648
        %v1654 = vadd.f32 %v1636, %v1644
        %v1655 = vadd.f32 %v1637, %v1645
        %v1656 = vadd.f32 %v1638, %v1647
        %v1657 = vadd.f32 %v1639, %v1649
        %1658 = vst [vmem:[#allocation3 + $0x10] sm:$0xf0] %v1654
        %1659 = vst [vmem:[#allocation3 + $0x18] sm:$0xf0] %v1655
        %1660 = vst [vmem:[#allocation3 + $0x20] sm:$0xff] %v1656
        %1661 = vst [vmem:[#allocation3 + $0x28] sm:$0xff] %v1657
        %v1662 = vld [vmem:[#allocation3] sm:$0xff]
        %v1663 = vld [vmem:[#allocation3 + $0x8] sm:$0xff]
        %v1664 = vld [vmem:[#allocation3 + $0x10] sm:$0xff]
        %v1665 = vld [vmem:[#allocation3 + $0x18] sm:$0xff]
        %v1666 = vld [vmem:[#allocation3 + $0x20] sm:$0xff]
        %v1667 = vld [vmem:[#allocation3 + $0x28] sm:$0xff]
        %v1668 = vmax.f32 %v1662, 0.0
        %v1669 = vmax.f32 %v1663, 0.0
        %v1670 = vmax.f32 %v1664, 0.0
        %v1671 = vmax.f32 %v1665, 0.0
        %v1672 = vmax.f32 %v1666, 0.0
        %v1673 = vmax.f32 %v1667, 0.0
        %v1674 = vld [vmem:[%s433] sm:$0xff]
        %v1675 = vld [vmem:[%s433 + $0x8] sm:$0xff]
        %v1676 = vld [vmem:[%s433 + $0x10] sm:$0xff]
        %v1677 = vld [vmem:[%s433 + $0x18] sm:$0xff]
        %v1678 = vld [vmem:[%s433 + $0x20] sm:$0xff]
        %v1679 = vld [vmem:[%s433 + $0x28] sm:$0xff]
        %v1680 = vld [vmem:[%s433 + $0x30] sm:$0xff]
        %v1681 = vld [vmem:[%s433 + $0x38] sm:$0xff]
        %v1682 = vld [vmem:[%s433 + $0x40] sm:$0xff]
        %v1683 = vld [vmem:[%s433 + $0x48] sm:$0xff]
        %v1684 = vld [vmem:[%s433 + $0x50] sm:$0xff]
        %v1685 = vld [vmem:[%s433 + $0x58] sm:$0xff]
        %v1686 = vld [vmem:[%s433 + $0x60] sm:$0xff]
        %v1687 = vld [vmem:[%s433 + $0x68] sm:$0xff]
        %v1688 = vld [vmem:[%s433 + $0x70] sm:$0xff]
        %v1689 = vld [vmem:[%s433 + $0x78] sm:$0xff]
        %v1690 = vld [vmem:[%s433 + $0x80] sm:$0xff]
        %v1691 = vld [vmem:[%s433 + $0x88] sm:$0xff]
        %v1692 = vld [vmem:[%s433 + $0x90] sm:$0xff]
        %v1693 = vld [vmem:[%s433 + $0x98] sm:$0xff]
        %v1694 = vld [vmem:[%s433 + $0xa0] sm:$0xff]
        %v1695 = vld [vmem:[%s433 + $0xa8] sm:$0xff]
        %v1696 = vld [vmem:[%s433 + $0xb0] sm:$0xff]
        %v1697 = vld [vmem:[%s433 + $0xb8] sm:$0xff]
        %v1698 = vld [vmem:[%s433 + $0xc0] sm:$0xff]
        %v1699 = vld [vmem:[%s433 + $0xc8] sm:$0xff]
        %v1700 = vld [vmem:[%s433 + $0xd0] sm:$0xff]
        %v1701 = vld [vmem:[%s433 + $0xd8] sm:$0xff]
        %v1702 = vld [vmem:[%s433 + $0xe0] sm:$0xff]
        %v1703 = vld [vmem:[%s433 + $0xe8] sm:$0xff]
        %v1704 = vld [vmem:[%s433 + $0xf0] sm:$0xff]
        %v1705 = vld [vmem:[%s433 + $0xf8] sm:$0xff]
        %v1706 = vld [vmem:[%s433 + $0x100] sm:$0xff]
        %v1707 = vld [vmem:[%s433 + $0x108] sm:$0xff]
        %v1708 = vld [vmem:[%s433 + $0x110] sm:$0xff]
        %v1709 = vld [vmem:[%s433 + $0x118] sm:$0xff]
        %v1710 = vld [vmem:[%s433 + $0x120] sm:$0xff]
        %v1711 = vld [vmem:[%s433 + $0x128] sm:$0xff]
        %v1712 = vld [vmem:[%s433 + $0x130] sm:$0xff]
        %v1713 = vld [vmem:[%s433 + $0x138] sm:$0xff]
        %v1714 = vld [vmem:[%s433 + $0x140] sm:$0xff]
        %v1715 = vld [vmem:[%s433 + $0x148] sm:$0xff]
        %v1716 = vld [vmem:[%s433 + $0x150] sm:$0xff]
        %v1717 = vld [vmem:[%s433 + $0x158] sm:$0xff]
        %v1718 = vld [vmem:[%s433 + $0x160] sm:$0xff]
        %v1719 = vld [vmem:[%s433 + $0x168] sm:$0xff]
        %v1720 = vld [vmem:[%s433 + $0x170] sm:$0xff]
        %v1721 = vld [vmem:[%s433 + $0x178] sm:$0xff]
        %v1722 = vld [vmem:[%s433 + $0x180] sm:$0xff]
        %v1723 = vld [vmem:[%s433 + $0x188] sm:$0xff]
        %v1724 = vld [vmem:[%s433 + $0x190] sm:$0xff]
        %v1725 = vld [vmem:[%s433 + $0x198] sm:$0xff]
        %v1726 = vld [vmem:[%s433 + $0x1a0] sm:$0xff]
        %v1727 = vld [vmem:[%s433 + $0x1a8] sm:$0xff]
        %v1728 = vld [vmem:[%s433 + $0x1b0] sm:$0xff]
        %v1729 = vld [vmem:[%s433 + $0x1b8] sm:$0xff]
        %v1730 = vld [vmem:[%s433 + $0x1c0] sm:$0xff]
        %v1731 = vld [vmem:[%s433 + $0x1c8] sm:$0xff]
        %v1732 = vld [vmem:[%s433 + $0x1d0] sm:$0xff]
        %v1733 = vld [vmem:[%s433 + $0x1d8] sm:$0xff]
        %v1734 = vld [vmem:[%s433 + $0x1e0] sm:$0xff]
        %v1735 = vld [vmem:[%s433 + $0x1e8] sm:$0xff]
        %v1736 = vld [vmem:[%s433 + $0x1f0] sm:$0xff]
        %v1737 = vld [vmem:[%s433 + $0x1f8] sm:$0xff]
        %v1738 = vld [vmem:[%s433 + $0x200] sm:$0xff]
        %v1739 = vld [vmem:[%s433 + $0x208] sm:$0xff]
        %v1740 = vld [vmem:[%s433 + $0x210] sm:$0xff]
        %v1741 = vld [vmem:[%s433 + $0x218] sm:$0xff]
        %v1742 = vld [vmem:[%s433 + $0x220] sm:$0xff]
        %v1743 = vld [vmem:[%s433 + $0x228] sm:$0xff]
        %v1744 = vld [vmem:[%s433 + $0x230] sm:$0xff]
        %v1745 = vld [vmem:[%s433 + $0x238] sm:$0xff]
        %v1746 = vld [vmem:[%s433 + $0x240] sm:$0xff]
        %v1747 = vld [vmem:[%s433 + $0x248] sm:$0xff]
        %v1748 = vld [vmem:[%s433 + $0x250] sm:$0xff]
        %v1749 = vld [vmem:[%s433 + $0x258] sm:$0xff]
        %v1750 = vld [vmem:[%s433 + $0x260] sm:$0xff]
        %v1751 = vld [vmem:[%s433 + $0x268] sm:$0xff]
        %v1752 = vld [vmem:[%s433 + $0x270] sm:$0xff]
        %v1753 = vld [vmem:[%s433 + $0x278] sm:$0xff]
        %v1754 = vld [vmem:[%s433 + $0x280] sm:$0xff]
        %v1755 = vld [vmem:[%s433 + $0x288] sm:$0xff]
        %v1756 = vld [vmem:[%s433 + $0x290] sm:$0xff]
        %v1757 = vld [vmem:[%s433 + $0x298] sm:$0xff]
        %v1758 = vld [vmem:[%s433 + $0x2a0] sm:$0xff]
        %v1759 = vld [vmem:[%s433 + $0x2a8] sm:$0xff]
        %v1760 = vld [vmem:[%s433 + $0x2b0] sm:$0xff]
        %v1761 = vld [vmem:[%s433 + $0x2b8] sm:$0xff]
        %v1762 = vld [vmem:[%s433 + $0x2c0] sm:$0xff]
        %v1763 = vld [vmem:[%s433 + $0x2c8] sm:$0xff]
        %v1764 = vld [vmem:[%s433 + $0x2d0] sm:$0xff]
        %v1765 = vld [vmem:[%s433 + $0x2d8] sm:$0xff]
        %v1766 = vld [vmem:[%s433 + $0x2e0] sm:$0xff]
        %v1767 = vld [vmem:[%s433 + $0x2e8] sm:$0xff]
        %v1768 = vld [vmem:[%s433 + $0x2f0] sm:$0xff]
        %v1769 = vld [vmem:[%s433 + $0x2f8] sm:$0xff]
        %v1770 = vld [vmem:[%s433 + $0x300] sm:$0xff]
        %v1771 = vld [vmem:[%s433 + $0x308] sm:$0xff]
        %v1772 = vld [vmem:[%s433 + $0x310] sm:$0xff]
        %v1773 = vld [vmem:[%s433 + $0x318] sm:$0xff]
        %v1774 = vld [vmem:[%s433 + $0x320] sm:$0xff]
        %v1775 = vld [vmem:[%s433 + $0x328] sm:$0xff]
        %v1776 = vld [vmem:[%s433 + $0x330] sm:$0xff]
        %v1777 = vld [vmem:[%s433 + $0x338] sm:$0xff]
        %v1778 = vld [vmem:[%s433 + $0x340] sm:$0xff]
        %v1779 = vld [vmem:[%s433 + $0x348] sm:$0xff]
        %v1780 = vld [vmem:[%s433 + $0x350] sm:$0xff]
        %v1781 = vld [vmem:[%s433 + $0x358] sm:$0xff]
        %v1782 = vld [vmem:[%s433 + $0x360] sm:$0xff]
        %v1783 = vld [vmem:[%s433 + $0x368] sm:$0xff]
        %v1784 = vld [vmem:[%s433 + $0x370] sm:$0xff]
        %v1785 = vld [vmem:[%s433 + $0x378] sm:$0xff]
        %v1786 = vld [vmem:[%s433 + $0x380] sm:$0xff]
        %v1787 = vld [vmem:[%s433 + $0x388] sm:$0xff]
        %v1788 = vld [vmem:[%s433 + $0x390] sm:$0xff]
        %v1789 = vld [vmem:[%s433 + $0x398] sm:$0xff]
        %v1790 = vld [vmem:[%s433 + $0x3a0] sm:$0xff]
        %v1791 = vld [vmem:[%s433 + $0x3a8] sm:$0xff]
        %v1792 = vld [vmem:[%s433 + $0x3b0] sm:$0xff]
        %v1793 = vld [vmem:[%s433 + $0x3b8] sm:$0xff]
        %v1794 = vld [vmem:[%s433 + $0x3c0] sm:$0xff]
        %v1795 = vld [vmem:[%s433 + $0x3c8] sm:$0xff]
        %v1796 = vld [vmem:[%s433 + $0x3d0] sm:$0xff]
        %v1797 = vld [vmem:[%s433 + $0x3d8] sm:$0xff]
        %v1798 = vld [vmem:[%s433 + $0x3e0] sm:$0xff]
        %v1799 = vld [vmem:[%s433 + $0x3e8] sm:$0xff]
        %v1800 = vld [vmem:[%s433 + $0x3f0] sm:$0xff]
        %v1801 = vld [vmem:[%s433 + $0x3f8] sm:$0xff]
        %v1802 = vld [vmem:[%s433 + $0x400] sm:$0xff]
        %v1803 = vld [vmem:[%s433 + $0x408] sm:$0xff]
        %v1804 = vld [vmem:[%s433 + $0x410] sm:$0xff]
        %v1805 = vld [vmem:[%s433 + $0x418] sm:$0xff]
        %v1806 = vld [vmem:[%s433 + $0x420] sm:$0xff]
        %v1807 = vld [vmem:[%s433 + $0x428] sm:$0xff]
        %v1808 = vld [vmem:[%s433 + $0x430] sm:$0xff]
        %v1809 = vld [vmem:[%s433 + $0x438] sm:$0xff]
        %v1810 = vld [vmem:[%s433 + $0x440] sm:$0xff]
        %v1811 = vld [vmem:[%s433 + $0x448] sm:$0xff]
        %v1812 = vld [vmem:[%s433 + $0x450] sm:$0xff]
        %v1813 = vld [vmem:[%s433 + $0x458] sm:$0xff]
        %v1814 = vld [vmem:[%s433 + $0x460] sm:$0xff]
        %v1815 = vld [vmem:[%s433 + $0x468] sm:$0xff]
        %v1816 = vld [vmem:[%s433 + $0x470] sm:$0xff]
        %v1817 = vld [vmem:[%s433 + $0x478] sm:$0xff]
        %v1818 = vld [vmem:[%s433 + $0x480] sm:$0xff]
        %v1819 = vld [vmem:[%s433 + $0x488] sm:$0xff]
        %v1820 = vld [vmem:[%s433 + $0x490] sm:$0xff]
        %v1821 = vld [vmem:[%s433 + $0x498] sm:$0xff]
        %v1822 = vld [vmem:[%s433 + $0x4a0] sm:$0xff]
        %v1823 = vld [vmem:[%s433 + $0x4a8] sm:$0xff]
        %v1824 = vld [vmem:[%s433 + $0x4b0] sm:$0xff]
        %v1825 = vld [vmem:[%s433 + $0x4b8] sm:$0xff]
        %v1826 = vld [vmem:[%s433 + $0x4c0] sm:$0xff]
        %v1827 = vld [vmem:[%s433 + $0x4c8] sm:$0xff]
        %v1828 = vld [vmem:[%s433 + $0x4d0] sm:$0xff]
        %v1829 = vld [vmem:[%s433 + $0x4d8] sm:$0xff]
        %v1830 = vld [vmem:[%s433 + $0x4e0] sm:$0xff]
        %v1831 = vld [vmem:[%s433 + $0x4e8] sm:$0xff]
        %v1832 = vld [vmem:[%s433 + $0x4f0] sm:$0xff]
        %v1833 = vld [vmem:[%s433 + $0x4f8] sm:$0xff]
        %v1834 = vld [vmem:[%s433 + $0x500] sm:$0xff]
        %v1835 = vld [vmem:[%s433 + $0x508] sm:$0xff]
        %v1836 = vld [vmem:[%s433 + $0x510] sm:$0xff]
        %v1837 = vld [vmem:[%s433 + $0x518] sm:$0xff]
        %v1838 = vld [vmem:[%s433 + $0x520] sm:$0xff]
        %v1839 = vld [vmem:[%s433 + $0x528] sm:$0xff]
        %v1840 = vld [vmem:[%s433 + $0x530] sm:$0xff]
        %v1841 = vld [vmem:[%s433 + $0x538] sm:$0xff]
        %v1842 = vld [vmem:[%s433 + $0x540] sm:$0xff]
        %v1843 = vld [vmem:[%s433 + $0x548] sm:$0xff]
        %v1844 = vld [vmem:[%s433 + $0x550] sm:$0xff]
        %v1845 = vld [vmem:[%s433 + $0x558] sm:$0xff]
        %v1846 = vld [vmem:[%s433 + $0x560] sm:$0xff]
        %v1847 = vld [vmem:[%s433 + $0x568] sm:$0xff]
        %v1848 = vld [vmem:[%s433 + $0x570] sm:$0xff]
        %v1849 = vld [vmem:[%s433 + $0x578] sm:$0xff]
        %v1850 = vld [vmem:[%s433 + $0x580] sm:$0xff]
        %v1851 = vld [vmem:[%s433 + $0x588] sm:$0xff]
        %v1852 = vld [vmem:[%s433 + $0x590] sm:$0xff]
        %v1853 = vld [vmem:[%s433 + $0x598] sm:$0xff]
        %v1854 = vld [vmem:[%s433 + $0x5a0] sm:$0xff]
        %v1855 = vld [vmem:[%s433 + $0x5a8] sm:$0xff]
        %v1856 = vld [vmem:[%s433 + $0x5b0] sm:$0xff]
        %v1857 = vld [vmem:[%s433 + $0x5b8] sm:$0xff]
        %v1858 = vld [vmem:[%s433 + $0x5c0] sm:$0xff]
        %v1859 = vld [vmem:[%s433 + $0x5c8] sm:$0xff]
        %v1860 = vld [vmem:[%s433 + $0x5d0] sm:$0xff]
        %v1861 = vld [vmem:[%s433 + $0x5d8] sm:$0xff]
        %v1862 = vld [vmem:[%s433 + $0x5e0] sm:$0xff]
        %v1863 = vld [vmem:[%s433 + $0x5e8] sm:$0xff]
        %v1864 = vld [vmem:[%s433 + $0x5f0] sm:$0xff]
        %v1865 = vld [vmem:[%s433 + $0x5f8] sm:$0xff]
        %v1866 = vld [vmem:[%s433 + $0x600] sm:$0xff]
        %v1867 = vld [vmem:[%s433 + $0x608] sm:$0xff]
        %v1868 = vld [vmem:[%s433 + $0x610] sm:$0xff]
        %v1869 = vld [vmem:[%s433 + $0x618] sm:$0xff]
        %v1870 = vld [vmem:[%s433 + $0x620] sm:$0xff]
        %v1871 = vld [vmem:[%s433 + $0x628] sm:$0xff]
        %v1872 = vld [vmem:[%s433 + $0x630] sm:$0xff]
        %v1873 = vld [vmem:[%s433 + $0x638] sm:$0xff]
        %v1874 = vld [vmem:[%s433 + $0x640] sm:$0xff]
        %v1875 = vld [vmem:[%s433 + $0x648] sm:$0xff]
        %v1876 = vld [vmem:[%s433 + $0x650] sm:$0xff]
        %v1877 = vld [vmem:[%s433 + $0x658] sm:$0xff]
        %v1878 = vld [vmem:[%s433 + $0x660] sm:$0xff]
        %v1879 = vld [vmem:[%s433 + $0x668] sm:$0xff]
        %v1880 = vld [vmem:[%s433 + $0x670] sm:$0xff]
        %v1881 = vld [vmem:[%s433 + $0x678] sm:$0xff]
        %v1882 = vld [vmem:[%s433 + $0x680] sm:$0xff]
        %v1883 = vld [vmem:[%s433 + $0x688] sm:$0xff]
        %v1884 = vld [vmem:[%s433 + $0x690] sm:$0xff]
        %v1885 = vld [vmem:[%s433 + $0x698] sm:$0xff]
        %v1886 = vld [vmem:[%s433 + $0x6a0] sm:$0xff]
        %v1887 = vld [vmem:[%s433 + $0x6a8] sm:$0xff]
        %v1888 = vld [vmem:[%s433 + $0x6b0] sm:$0xff]
        %v1889 = vld [vmem:[%s433 + $0x6b8] sm:$0xff]
        %v1890 = vld [vmem:[%s433 + $0x6c0] sm:$0xff]
        %v1891 = vld [vmem:[%s433 + $0x6c8] sm:$0xff]
        %v1892 = vld [vmem:[%s433 + $0x6d0] sm:$0xff]
        %v1893 = vld [vmem:[%s433 + $0x6d8] sm:$0xff]
        %v1894 = vld [vmem:[%s433 + $0x6e0] sm:$0xff]
        %v1895 = vld [vmem:[%s433 + $0x6e8] sm:$0xff]
        %v1896 = vld [vmem:[%s433 + $0x6f0] sm:$0xff]
        %v1897 = vld [vmem:[%s433 + $0x6f8] sm:$0xff]
        %v1898 = vld [vmem:[%s433 + $0x700] sm:$0xff]
        %v1899 = vld [vmem:[%s433 + $0x708] sm:$0xff]
        %v1900 = vld [vmem:[%s433 + $0x710] sm:$0xff]
        %v1901 = vld [vmem:[%s433 + $0x718] sm:$0xff]
        %v1902 = vld [vmem:[%s433 + $0x720] sm:$0xff]
        %v1903 = vld [vmem:[%s433 + $0x728] sm:$0xff]
        %v1904 = vld [vmem:[%s433 + $0x730] sm:$0xff]
        %v1905 = vld [vmem:[%s433 + $0x738] sm:$0xff]
        %v1906 = vld [vmem:[%s433 + $0x740] sm:$0xff]
        %v1907 = vld [vmem:[%s433 + $0x748] sm:$0xff]
        %v1908 = vld [vmem:[%s433 + $0x750] sm:$0xff]
        %v1909 = vld [vmem:[%s433 + $0x758] sm:$0xff]
        %v1910 = vld [vmem:[%s433 + $0x760] sm:$0xff]
        %v1911 = vld [vmem:[%s433 + $0x768] sm:$0xff]
        %v1912 = vld [vmem:[%s433 + $0x770] sm:$0xff]
        %v1913 = vld [vmem:[%s433 + $0x778] sm:$0xff]
        %v1914 = vld [vmem:[%s433 + $0x780] sm:$0xff]
        %v1915 = vld [vmem:[%s433 + $0x788] sm:$0xff]
        %v1916 = vld [vmem:[%s433 + $0x790] sm:$0xff]
        %v1917 = vld [vmem:[%s433 + $0x798] sm:$0xff]
        %v1918 = vld [vmem:[%s433 + $0x7a0] sm:$0xff]
        %v1919 = vld [vmem:[%s433 + $0x7a8] sm:$0xff]
        %v1920 = vld [vmem:[%s433 + $0x7b0] sm:$0xff]
        %v1921 = vld [vmem:[%s433 + $0x7b8] sm:$0xff]
        %v1922 = vld [vmem:[%s433 + $0x7c0] sm:$0xff]
        %v1923 = vld [vmem:[%s433 + $0x7c8] sm:$0xff]
        %v1924 = vld [vmem:[%s433 + $0x7d0] sm:$0xff]
        %v1925 = vld [vmem:[%s433 + $0x7d8] sm:$0xff]
        %v1926 = vld [vmem:[%s433 + $0x7e0] sm:$0xff]
        %v1927 = vld [vmem:[%s433 + $0x7e8] sm:$0xff]
        %v1928 = vld [vmem:[%s433 + $0x7f0] sm:$0xff]
        %v1929 = vld [vmem:[%s433 + $0x7f8] sm:$0xff]
        %v1930 = vld [vmem:[%s433 + $0x800] sm:$0xff]
        %v1931 = vld [vmem:[%s433 + $0x808] sm:$0xff]
        %v1932 = vld [vmem:[%s433 + $0x810] sm:$0xff]
        %v1933 = vld [vmem:[%s433 + $0x818] sm:$0xff]
        %v1934 = vld [vmem:[%s433 + $0x820] sm:$0xff]
        %v1935 = vld [vmem:[%s433 + $0x828] sm:$0xff]
        %v1936 = vld [vmem:[%s433 + $0x830] sm:$0xff]
        %v1937 = vld [vmem:[%s433 + $0x838] sm:$0xff]
        %v1938 = vld [vmem:[%s433 + $0x840] sm:$0xff]
        %v1939 = vld [vmem:[%s433 + $0x848] sm:$0xff]
        %v1940 = vld [vmem:[%s433 + $0x850] sm:$0xff]
        %v1941 = vld [vmem:[%s433 + $0x858] sm:$0xff]
        %v1942 = vld [vmem:[%s433 + $0x860] sm:$0xff]
        %v1943 = vld [vmem:[%s433 + $0x868] sm:$0xff]
        %v1944 = vld [vmem:[%s433 + $0x870] sm:$0xff]
        %v1945 = vld [vmem:[%s433 + $0x878] sm:$0xff]
        %v1946 = vld [vmem:[%s433 + $0x880] sm:$0xff]
        %v1947 = vld [vmem:[%s433 + $0x888] sm:$0xff]
        %v1948 = vld [vmem:[%s433 + $0x890] sm:$0xff]
        %v1949 = vld [vmem:[%s433 + $0x898] sm:$0xff]
        %v1950 = vld [vmem:[%s433 + $0x8a0] sm:$0xff]
        %v1951 = vld [vmem:[%s433 + $0x8a8] sm:$0xff]
        %v1952 = vld [vmem:[%s433 + $0x8b0] sm:$0xff]
        %v1953 = vld [vmem:[%s433 + $0x8b8] sm:$0xff]
        %v1954 = vld [vmem:[%s433 + $0x8c0] sm:$0xff]
        %v1955 = vld [vmem:[%s433 + $0x8c8] sm:$0xff]
        %v1956 = vld [vmem:[%s433 + $0x8d0] sm:$0xff]
        %v1957 = vld [vmem:[%s433 + $0x8d8] sm:$0xff]
        %v1958 = vld [vmem:[%s433 + $0x8e0] sm:$0xff]
        %v1959 = vld [vmem:[%s433 + $0x8e8] sm:$0xff]
        %v1960 = vld [vmem:[%s433 + $0x8f0] sm:$0xff]
        %v1961 = vld [vmem:[%s433 + $0x8f8] sm:$0xff]
        %v1962 = vld [vmem:[%s433 + $0x900] sm:$0xff]
        %v1963 = vld [vmem:[%s433 + $0x908] sm:$0xff]
        %v1964 = vld [vmem:[%s433 + $0x910] sm:$0xff]
        %v1965 = vld [vmem:[%s433 + $0x918] sm:$0xff]
        %v1966 = vld [vmem:[%s433 + $0x920] sm:$0xff]
        %v1967 = vld [vmem:[%s433 + $0x928] sm:$0xff]
        %v1968 = vld [vmem:[%s433 + $0x930] sm:$0xff]
        %v1969 = vld [vmem:[%s433 + $0x938] sm:$0xff]
        %v1970 = vld [vmem:[%s433 + $0x940] sm:$0xff]
        %v1971 = vld [vmem:[%s433 + $0x948] sm:$0xff]
        %v1972 = vld [vmem:[%s433 + $0x950] sm:$0xff]
        %v1973 = vld [vmem:[%s433 + $0x958] sm:$0xff]
        %vm1974 = vcmask 916480
        %v1976 = vsel %vm1974, %v1669, 0
        %v1979 = vsel %vm1974, %v1671, 0
        %v1982 = vsel %vm1974, %v1673, 0
        %1984 = vmatprep.subr.mxu0 %v1675
        %1985 = vmatpush1.msra.mxu0 %v1674
        %1986 = vmatprep.subr.mxu0 %v1685
        %1987 = vmatpush1.msra.mxu0 %v1684
        %1988 = vmatprep.subr.mxu0 %v1695
        %1989 = vmatpush1.msra.mxu0 %v1694
        %1990 = vmatprep.subr.mxu0 %v1705
        %1991 = vmatpush1.msra.mxu0 %v1704
        %1992 = vmatprep.subr.mxu0 %v1715
        %1993 = vmatpush1.msra.mxu0 %v1714
        %1994 = vmatprep.subr.mxu0 %v1725
        %1995 = vmatpush1.msra.mxu0 %v1724
        %1996 = vmatprep.subr.mxu0 %v1735
        %1997 = vmatpush1.msra.mxu0 %v1734
        %1998 = vmatprep.subr.mxu0 %v1745
        %1999 = vmatpush1.msra.mxu0 %v1744
        %2000 = vmatprep.subr.mxu0 %v1755
        %2001 = vmatpush1.msra.mxu0 %v1754
        %2002 = vmatprep.subr.mxu0 %v1765
        %2003 = vmatpush1.msra.mxu0 %v1764
        %2004 = vmatprep.subr.mxu0 %v1775
        %2005 = vmatpush1.msra.mxu0 %v1774
        %2006 = vmatprep.subr.mxu0 %v1785
        %2007 = vmatpush1.msra.mxu0 %v1784
        %2008 = vmatprep.subr.mxu0 %v1795
        %2009 = vmatpush1.msra.mxu0 %v1794
        %2010 = vmatprep.subr.mxu0 %v1805
        %2011 = vmatpush1.msra.mxu0 %v1804
        %2012 = vmatprep.subr.mxu0 %v1815
        %2013 = vmatpush1.msra.mxu0 %v1814
        %2014 = vmatprep.subr.mxu0 %v1825
        %2015 = vmatpush1.msra.mxu0 %v1824
        %2016 = vmatprep.subr.mxu0 %v1835
        %2017 = vmatpush1.msra.mxu0 %v1834
        %2018 = vmatprep.subr.mxu0 %v1845
        %2019 = vmatpush1.msra.mxu0 %v1844
        %2020 = vmatprep.subr.mxu0 %v1855
        %2021 = vmatpush1.msra.mxu0 %v1854
        %2022 = vmatprep.subr.mxu0 %v1865
        %2023 = vmatpush1.msra.mxu0 %v1864
        %2024 = vmatprep.subr.mxu0 %v1875
        %2025 = vmatpush1.msra.mxu0 %v1874
        %2026 = vmatprep.subr.mxu0 %v1885
        %2027 = vmatpush1.msra.mxu0 %v1884
        %2028 = vmatprep.subr.mxu0 %v1895
        %2029 = vmatpush1.msra.mxu0 %v1894
        %2030 = vmatprep.subr.mxu0 %v1905
        %2031 = vmatpush1.msra.mxu0 %v1904
        %2032 = vmatprep.subr.mxu0 %v1915
        %2033 = vmatpush1.msra.mxu0 %v1914
        %2034 = vmatprep.subr.mxu0 %v1925
        %2035 = vmatpush1.msra.mxu0 %v1924
        %2036 = vmatprep.subr.mxu0 %v1935
        %2037 = vmatpush1.msra.mxu0 %v1934
        %2038 = vmatprep.subr.mxu0 %v1945
        %2039 = vmatpush1.msra.mxu0 %v1944
        %2040 = vmatprep.subr.mxu0 %v1955
        %2041 = vmatpush1.msra.mxu0 %v1954
        %2042 = vmatprep.subr.mxu0 %v1965
        %2043 = vmatpush1.msra.mxu0 %v1964
        %2044 = vmatprep.subr.mxu0 0.0
        %2045 = vmatpush1.msra.mxu0 0.0
        %2046 = vmatprep.subr.mxu0 0.0
        %2047 = vmatpush1.msra.mxu0 0.0
        %2048 = vmatprep.mubr.f32.mxu0 %v1976
        %2049 = vmatmul.mubr.f32.gmra.mrb[0].mxu0 %v1668
        %v2050 = vpop.f32.mrb[0].mxu0
        %v2051 = vadd.f32 0.0, %v2050
        %v2052 = vpop.f32.mrb[0].mxu0
        %v2053 = vadd.f32 0.0, %v2052
        %2054 = vmatprep.mubr.f32.mxu0 %v1979
        %2055 = vmatmul.mubr.f32.gmra.mrb[0].mxu0 %v1670
        %v2056 = vpop.f32.mrb[0].mxu0
        %v2057 = vadd.f32 0.0, %v2056
        %v2058 = vpop.f32.mrb[0].mxu0
        %v2059 = vadd.f32 0.0, %v2058
        %2060 = vmatprep.mubr.f32.mxu0 %v1982
        %2061 = vmatmul.mubr.f32.gmra.mrb[0].mxu0 %v1672
        %v2062 = vpop.f32.mrb[0].mxu0
        %v2063 = vadd.f32 0.0, %v2062
        %v2064 = vpop.f32.mrb[0].mxu0
        %v2065 = vadd.f32 0.0, %v2064
        %2066 = vdwg.mxu0
        %2067 = vmatprep.subr.mxu0 %v1677
        %2068 = vmatpush1.msra.mxu0 %v1676
        %2069 = vmatprep.subr.mxu0 %v1687
        %2070 = vmatpush1.msra.mxu0 %v1686
        %2071 = vmatprep.subr.mxu0 %v1697
        %2072 = vmatpush1.msra.mxu0 %v1696
        %2073 = vmatprep.subr.mxu0 %v1707
        %2074 = vmatpush1.msra.mxu0 %v1706
        %2075 = vmatprep.subr.mxu0 %v1717
        %2076 = vmatpush1.msra.mxu0 %v1716
        %2077 = vmatprep.subr.mxu0 %v1727
        %2078 = vmatpush1.msra.mxu0 %v1726
        %2079 = vmatprep.subr.mxu0 %v1737
        %2080 = vmatpush1.msra.mxu0 %v1736
        %2081 = vmatprep.subr.mxu0 %v1747
        %2082 = vmatpush1.msra.mxu0 %v1746
        %2083 = vmatprep.subr.mxu0 %v1757
        %2084 = vmatpush1.msra.mxu0 %v1756
        %2085 = vmatprep.subr.mxu0 %v1767
        %2086 = vmatpush1.msra.mxu0 %v1766
        %2087 = vmatprep.subr.mxu0 %v1777
        %2088 = vmatpush1.msra.mxu0 %v1776
        %2089 = vmatprep.subr.mxu0 %v1787
        %2090 = vmatpush1.msra.mxu0 %v1786
        %2091 = vmatprep.subr.mxu0 %v1797
        %2092 = vmatpush1.msra.mxu0 %v1796
        %2093 = vmatprep.subr.mxu0 %v1807
        %2094 = vmatpush1.msra.mxu0 %v1806
        %2095 = vmatprep.subr.mxu0 %v1817
        %2096 = vmatpush1.msra.mxu0 %v1816
        %2097 = vmatprep.subr.mxu0 %v1827
        %2098 = vmatpush1.msra.mxu0 %v1826
        %2099 = vmatprep.subr.mxu0 %v1837
        %2100 = vmatpush1.msra.mxu0 %v1836
        %2101 = vmatprep.subr.mxu0 %v1847
        %2102 = vmatpush1.msra.mxu0 %v1846
        %2103 = vmatprep.subr.mxu0 %v1857
        %2104 = vmatpush1.msra.mxu0 %v1856
        %2105 = vmatprep.subr.mxu0 %v1867
        %2106 = vmatpush1.msra.mxu0 %v1866
        %2107 = vmatprep.subr.mxu0 %v1877
        %2108 = vmatpush1.msra.mxu0 %v1876
        %2109 = vmatprep.subr.mxu0 %v1887
        %2110 = vmatpush1.msra.mxu0 %v1886
        %2111 = vmatprep.subr.mxu0 %v1897
        %2112 = vmatpush1.msra.mxu0 %v1896
        %2113 = vmatprep.subr.mxu0 %v1907
        %2114 = vmatpush1.msra.mxu0 %v1906
        %2115 = vmatprep.subr.mxu0 %v1917
        %2116 = vmatpush1.msra.mxu0 %v1916
        %2117 = vmatprep.subr.mxu0 %v1927
        %2118 = vmatpush1.msra.mxu0 %v1926
        %2119 = vmatprep.subr.mxu0 %v1937
        %2120 = vmatpush1.msra.mxu0 %v1936
        %2121 = vmatprep.subr.mxu0 %v1947
        %2122 = vmatpush1.msra.mxu0 %v1946
        %2123 = vmatprep.subr.mxu0 %v1957
        %2124 = vmatpush1.msra.mxu0 %v1956
        %2125 = vmatprep.subr.mxu0 %v1967
        %2126 = vmatpush1.msra.mxu0 %v1966
        %2127 = vmatprep.subr.mxu0 0.0
        %2128 = vmatpush1.msra.mxu0 0.0
        %2129 = vmatprep.subr.mxu0 0.0
        %2130 = vmatpush1.msra.mxu0 0.0
        %2131 = vmatprep.mubr.f32.mxu0 %v1976
        %2132 = vmatmul.mubr.f32.gmra.mrb[0].mxu0 %v1668
        %v2133 = vpop.f32.mrb[0].mxu0
        %v2134 = vadd.f32 0.0, %v2133
        %v2135 = vpop.f32.mrb[0].mxu0
        %v2136 = vadd.f32 0.0, %v2135
        %2137 = vmatprep.mubr.f32.mxu0 %v1979
        %2138 = vmatmul.mubr.f32.gmra.mrb[0].mxu0 %v1670
        %v2139 = vpop.f32.mrb[0].mxu0
        %v2140 = vadd.f32 0.0, %v2139
        %v2141 = vpop.f32.mrb[0].mxu0
        %v2142 = vadd.f32 0.0, %v2141
        %2143 = vmatprep.mubr.f32.mxu0 %v1982
        %2144 = vmatmul.mubr.f32.gmra.mrb[0].mxu0 %v1672
        %v2145 = vpop.f32.mrb[0].mxu0
        %v2146 = vadd.f32 0.0, %v2145
        %v2147 = vpop.f32.mrb[0].mxu0
        %v2148 = vadd.f32 0.0, %v2147
        %2149 = vdwg.mxu0
        %2150 = vmatprep.subr.mxu0 %v1679
        %2151 = vmatpush1.msra.mxu0 %v1678
        %2152 = vmatprep.subr.mxu0 %v1689
        %2153 = vmatpush1.msra.mxu0 %v1688
        %2154 = vmatprep.subr.mxu0 %v1699
        %2155 = vmatpush1.msra.mxu0 %v1698
        %2156 = vmatprep.subr.mxu0 %v1709
        %2157 = vmatpush1.msra.mxu0 %v1708
        %2158 = vmatprep.subr.mxu0 %v1719
        %2159 = vmatpush1.msra.mxu0 %v1718
        %2160 = vmatprep.subr.mxu0 %v1729
        %2161 = vmatpush1.msra.mxu0 %v1728
        %2162 = vmatprep.subr.mxu0 %v1739
        %2163 = vmatpush1.msra.mxu0 %v1738
        %2164 = vmatprep.subr.mxu0 %v1749
        %2165 = vmatpush1.msra.mxu0 %v1748
        %2166 = vmatprep.subr.mxu0 %v1759
        %2167 = vmatpush1.msra.mxu0 %v1758
        %2168 = vmatprep.subr.mxu0 %v1769
        %2169 = vmatpush1.msra.mxu0 %v1768
        %2170 = vmatprep.subr.mxu0 %v1779
        %2171 = vmatpush1.msra.mxu0 %v1778
        %2172 = vmatprep.subr.mxu0 %v1789
        %2173 = vmatpush1.msra.mxu0 %v1788
        %2174 = vmatprep.subr.mxu0 %v1799
        %2175 = vmatpush1.msra.mxu0 %v1798
        %2176 = vmatprep.subr.mxu0 %v1809
        %2177 = vmatpush1.msra.mxu0 %v1808
        %2178 = vmatprep.subr.mxu0 %v1819
        %2179 = vmatpush1.msra.mxu0 %v1818
        %2180 = vmatprep.subr.mxu0 %v1829
        %2181 = vmatpush1.msra.mxu0 %v1828
        %2182 = vmatprep.subr.mxu0 %v1839
        %2183 = vmatpush1.msra.mxu0 %v1838
        %2184 = vmatprep.subr.mxu0 %v1849
        %2185 = vmatpush1.msra.mxu0 %v1848
        %2186 = vmatprep.subr.mxu0 %v1859
        %2187 = vmatpush1.msra.mxu0 %v1858
        %2188 = vmatprep.subr.mxu0 %v1869
        %2189 = vmatpush1.msra.mxu0 %v1868
        %2190 = vmatprep.subr.mxu0 %v1879
        %2191 = vmatpush1.msra.mxu0 %v1878
        %2192 = vmatprep.subr.mxu0 %v1889
        %2193 = vmatpush1.msra.mxu0 %v1888
        %2194 = vmatprep.subr.mxu0 %v1899
        %2195 = vmatpush1.msra.mxu0 %v1898
        %2196 = vmatprep.subr.mxu0 %v1909
        %2197 = vmatpush1.msra.mxu0 %v1908
        %2198 = vmatprep.subr.mxu0 %v1919
        %2199 = vmatpush1.msra.mxu0 %v1918
        %2200 = vmatprep.subr.mxu0 %v1929
        %2201 = vmatpush1.msra.mxu0 %v1928
        %2202 = vmatprep.subr.mxu0 %v1939
        %2203 = vmatpush1.msra.mxu0 %v1938
        %2204 = vmatprep.subr.mxu0 %v1949
        %2205 = vmatpush1.msra.mxu0 %v1948
        %2206 = vmatprep.subr.mxu0 %v1959
        %2207 = vmatpush1.msra.mxu0 %v1958
        %2208 = vmatprep.subr.mxu0 %v1969
        %2209 = vmatpush1.msra.mxu0 %v1968
        %2210 = vmatprep.subr.mxu0 0.0
        %2211 = vmatpush1.msra.mxu0 0.0
        %2212 = vmatprep.subr.mxu0 0.0
        %2213 = vmatpush1.msra.mxu0 0.0
        %2214 = vmatprep.mubr.f32.mxu0 %v1976
        %2215 = vmatmul.mubr.f32.gmra.mrb[0].mxu0 %v1668
        %v2216 = vpop.f32.mrb[0].mxu0
        %v2217 = vadd.f32 0.0, %v2216
        %v2218 = vpop.f32.mrb[0].mxu0
        %v2219 = vadd.f32 0.0, %v2218
        %2220 = vmatprep.mubr.f32.mxu0 %v1979
        %2221 = vmatmul.mubr.f32.gmra.mrb[0].mxu0 %v1670
        %v2222 = vpop.f32.mrb[0].mxu0
        %v2223 = vadd.f32 0.0, %v2222
        %v2224 = vpop.f32.mrb[0].mxu0
        %v2225 = vadd.f32 0.0, %v2224
        %2226 = vmatprep.mubr.f32.mxu0 %v1982
        %2227 = vmatmul.mubr.f32.gmra.mrb[0].mxu0 %v1672
        %v2228 = vpop.f32.mrb[0].mxu0
        %v2229 = vadd.f32 0.0, %v2228
        %v2230 = vpop.f32.mrb[0].mxu0
        %v2231 = vadd.f32 0.0, %v2230
        %2232 = vdwg.mxu0
        %2233 = vmatprep.subr.mxu0 %v1681
        %2234 = vmatpush1.msra.mxu0 %v1680
        %2235 = vmatprep.subr.mxu0 %v1691
        %2236 = vmatpush1.msra.mxu0 %v1690
        %2237 = vmatprep.subr.mxu0 %v1701
        %2238 = vmatpush1.msra.mxu0 %v1700
        %2239 = vmatprep.subr.mxu0 %v1711
        %2240 = vmatpush1.msra.mxu0 %v1710
        %2241 = vmatprep.subr.mxu0 %v1721
        %2242 = vmatpush1.msra.mxu0 %v1720
        %2243 = vmatprep.subr.mxu0 %v1731
        %2244 = vmatpush1.msra.mxu0 %v1730
        %2245 = vmatprep.subr.mxu0 %v1741
        %2246 = vmatpush1.msra.mxu0 %v1740
        %2247 = vmatprep.subr.mxu0 %v1751
        %2248 = vmatpush1.msra.mxu0 %v1750
        %2249 = vmatprep.subr.mxu0 %v1761
        %2250 = vmatpush1.msra.mxu0 %v1760
        %2251 = vmatprep.subr.mxu0 %v1771
        %2252 = vmatpush1.msra.mxu0 %v1770
        %2253 = vmatprep.subr.mxu0 %v1781
        %2254 = vmatpush1.msra.mxu0 %v1780
        %2255 = vmatprep.subr.mxu0 %v1791
        %2256 = vmatpush1.msra.mxu0 %v1790
        %2257 = vmatprep.subr.mxu0 %v1801
        %2258 = vmatpush1.msra.mxu0 %v1800
        %2259 = vmatprep.subr.mxu0 %v1811
        %2260 = vmatpush1.msra.mxu0 %v1810
        %2261 = vmatprep.subr.mxu0 %v1821
        %2262 = vmatpush1.msra.mxu0 %v1820
        %2263 = vmatprep.subr.mxu0 %v1831
        %2264 = vmatpush1.msra.mxu0 %v1830
        %2265 = vmatprep.subr.mxu0 %v1841
        %2266 = vmatpush1.msra.mxu0 %v1840
        %2267 = vmatprep.subr.mxu0 %v1851
        %2268 = vmatpush1.msra.mxu0 %v1850
        %2269 = vmatprep.subr.mxu0 %v1861
        %2270 = vmatpush1.msra.mxu0 %v1860
        %2271 = vmatprep.subr.mxu0 %v1871
        %2272 = vmatpush1.msra.mxu0 %v1870
        %2273 = vmatprep.subr.mxu0 %v1881
        %2274 = vmatpush1.msra.mxu0 %v1880
        %2275 = vmatprep.subr.mxu0 %v1891
        %2276 = vmatpush1.msra.mxu0 %v1890
        %2277 = vmatprep.subr.mxu0 %v1901
        %2278 = vmatpush1.msra.mxu0 %v1900
        %2279 = vmatprep.subr.mxu0 %v1911
        %2280 = vmatpush1.msra.mxu0 %v1910
        %2281 = vmatprep.subr.mxu0 %v1921
        %2282 = vmatpush1.msra.mxu0 %v1920
        %2283 = vmatprep.subr.mxu0 %v1931
        %2284 = vmatpush1.msra.mxu0 %v1930
        %2285 = vmatprep.subr.mxu0 %v1941
        %2286 = vmatpush1.msra.mxu0 %v1940
        %2287 = vmatprep.subr.mxu0 %v1951
        %2288 = vmatpush1.msra.mxu0 %v1950
        %2289 = vmatprep.subr.mxu0 %v1961
        %2290 = vmatpush1.msra.mxu0 %v1960
        %2291 = vmatprep.subr.mxu0 %v1971
        %2292 = vmatpush1.msra.mxu0 %v1970
        %2293 = vmatprep.subr.mxu0 0.0
        %2294 = vmatpush1.msra.mxu0 0.0
        %2295 = vmatprep.subr.mxu0 0.0
        %2296 = vmatpush1.msra.mxu0 0.0
        %2297 = vmatprep.mubr.f32.mxu0 %v1976
        %2298 = vmatmul.mubr.f32.gmra.mrb[0].mxu0 %v1668
        %v2299 = vpop.f32.mrb[0].mxu0
        %v2300 = vadd.f32 0.0, %v2299
        %v2301 = vpop.f32.mrb[0].mxu0
        %v2302 = vadd.f32 0.0, %v2301
        %2303 = vmatprep.mubr.f32.mxu0 %v1979
        %2304 = vmatmul.mubr.f32.gmra.mrb[0].mxu0 %v1670
        %v2305 = vpop.f32.mrb[0].mxu0
        %v2306 = vadd.f32 0.0, %v2305
        %v2307 = vpop.f32.mrb[0].mxu0
        %v2308 = vadd.f32 0.0, %v2307
        %2309 = vmatprep.mubr.f32.mxu0 %v1982
        %2310 = vmatmul.mubr.f32.gmra.mrb[0].mxu0 %v1672
        %v2311 = vpop.f32.mrb[0].mxu0
        %v2312 = vadd.f32 0.0, %v2311
        %v2313 = vpop.f32.mrb[0].mxu0
        %v2314 = vadd.f32 0.0, %v2313
        %2315 = vdwg.mxu0
        %2316 = vmatprep.subr.mxu0 %v1683
        %2317 = vmatpush1.msra.mxu0 %v1682
        %2318 = vmatprep.subr.mxu0 %v1693
        %2319 = vmatpush1.msra.mxu0 %v1692
        %2320 = vmatprep.subr.mxu0 %v1703
        %2321 = vmatpush1.msra.mxu0 %v1702
        %2322 = vmatprep.subr.mxu0 %v1713
        %2323 = vmatpush1.msra.mxu0 %v1712
        %2324 = vmatprep.subr.mxu0 %v1723
        %2325 = vmatpush1.msra.mxu0 %v1722
        %2326 = vmatprep.subr.mxu0 %v1733
        %2327 = vmatpush1.msra.mxu0 %v1732
        %2328 = vmatprep.subr.mxu0 %v1743
        %2329 = vmatpush1.msra.mxu0 %v1742
        %2330 = vmatprep.subr.mxu0 %v1753
        %2331 = vmatpush1.msra.mxu0 %v1752
        %2332 = vmatprep.subr.mxu0 %v1763
        %2333 = vmatpush1.msra.mxu0 %v1762
        %2334 = vmatprep.subr.mxu0 %v1773
        %2335 = vmatpush1.msra.mxu0 %v1772
        %2336 = vmatprep.subr.mxu0 %v1783
        %2337 = vmatpush1.msra.mxu0 %v1782
        %2338 = vmatprep.subr.mxu0 %v1793
        %2339 = vmatpush1.msra.mxu0 %v1792
        %2340 = vmatprep.subr.mxu0 %v1803
        %2341 = vmatpush1.msra.mxu0 %v1802
        %2342 = vmatprep.subr.mxu0 %v1813
        %2343 = vmatpush1.msra.mxu0 %v1812
        %2344 = vmatprep.subr.mxu0 %v1823
        %2345 = vmatpush1.msra.mxu0 %v1822
        %2346 = vmatprep.subr.mxu0 %v1833
        %2347 = vmatpush1.msra.mxu0 %v1832
        %2348 = vmatprep.subr.mxu0 %v1843
        %2349 = vmatpush1.msra.mxu0 %v1842
        %2350 = vmatprep.subr.mxu0 %v1853
        %2351 = vmatpush1.msra.mxu0 %v1852
        %2352 = vmatprep.subr.mxu0 %v1863
        %2353 = vmatpush1.msra.mxu0 %v1862
        %2354 = vmatprep.subr.mxu0 %v1873
        %2355 = vmatpush1.msra.mxu0 %v1872
        %2356 = vmatprep.subr.mxu0 %v1883
        %2357 = vmatpush1.msra.mxu0 %v1882
        %2358 = vmatprep.subr.mxu0 %v1893
        %2359 = vmatpush1.msra.mxu0 %v1892
        %2360 = vmatprep.subr.mxu0 %v1903
        %2361 = vmatpush1.msra.mxu0 %v1902
        %2362 = vmatprep.subr.mxu0 %v1913
        %2363 = vmatpush1.msra.mxu0 %v1912
        %2364 = vmatprep.subr.mxu0 %v1923
        %2365 = vmatpush1.msra.mxu0 %v1922
        %2366 = vmatprep.subr.mxu0 %v1933
        %2367 = vmatpush1.msra.mxu0 %v1932
        %2368 = vmatprep.subr.mxu0 %v1943
        %2369 = vmatpush1.msra.mxu0 %v1942
        %2370 = vmatprep.subr.mxu0 %v1953
        %2371 = vmatpush1.msra.mxu0 %v1952
        %2372 = vmatprep.subr.mxu0 %v1963
        %2373 = vmatpush1.msra.mxu0 %v1962
        %2374 = vmatprep.subr.mxu0 %v1973
        %2375 = vmatpush1.msra.mxu0 %v1972
        %2376 = vmatprep.subr.mxu0 0.0
        %2377 = vmatpush1.msra.mxu0 0.0
        %2378 = vmatprep.subr.mxu0 0.0
        %2379 = vmatpush1.msra.mxu0 0.0
        %2380 = vmatprep.mubr.f32.mxu0 %v1976
        %2381 = vmatmul.mubr.f32.gmra.mrb[0].mxu0 %v1668
        %v2382 = vpop.f32.mrb[0].mxu0
        %v2383 = vadd.f32 0.0, %v2382
        %v2384 = vpop.f32.mrb[0].mxu0
        %v2385 = vadd.f32 0.0, %v2384
        %2386 = vmatprep.mubr.f32.mxu0 %v1979
        %2387 = vmatmul.mubr.f32.gmra.mrb[0].mxu0 %v1670
        %v2388 = vpop.f32.mrb[0].mxu0
        %v2389 = vadd.f32 0.0, %v2388
        %v2390 = vpop.f32.mrb[0].mxu0
        %v2391 = vadd.f32 0.0, %v2390
        %2392 = vmatprep.mubr.f32.mxu0 %v1982
        %2393 = vmatmul.mubr.f32.gmra.mrb[0].mxu0 %v1672
        %v2394 = vpop.f32.mrb[0].mxu0
        %v2395 = vadd.f32 0.0, %v2394
        %v2396 = vpop.f32.mrb[0].mxu0
        %v2397 = vadd.f32 0.0, %v2396
        %2398 = vdwg.mxu0
        %v2399 = vld [vmem:[%s441] sm:$0x1]
        %v2401 = vlaneseq
        %v2402 = vshrl.u32 %v2401, 7
        %v2403 = vsub.s32 0, %v2402
        %v2404 = vrot.slane %v2399, %v2403
        %2406 = vst [vmem:[%s515] sm:$0xff] %v2404
        %2407 = vst [vmem:[%s515 + $0x8] sm:$0xff] %v2404
        %2408 = vst [vmem:[%s515 + $0x10] sm:$0xff] %v2404
        %2409 = vst [vmem:[%s515 + $0x18] sm:$0xff] %v2404
        %2410 = vst [vmem:[%s515 + $0x20] sm:$0xff] %v2404
        %2411 = vst [vmem:[%s515 + $0x28] sm:$0xff] %v2404
        %2412 = vst [vmem:[%s515 + $0x30] sm:$0x3] %v2404
        %v2413 = vld [vmem:[%s515] sm:$0xff]
        %v2414 = vld [vmem:[%s515 + $0x8] sm:$0xff]
        %v2415 = vld [vmem:[%s515 + $0x10] sm:$0xff]
        %v2416 = vadd.f32 %v2413, %v2051
        %v2417 = vadd.f32 %v2414, %v2057
        %v2418 = vadd.f32 %v2415, %v2063
        %2419 = vst [vmem:[%s515] sm:$0xff] %v2416
        %2420 = vst [vmem:[%s515 + $0x8] sm:$0xff] %v2417
        %2421 = vst [vmem:[%s515 + $0x10] sm:$0xff] %v2418
        %v2422 = vld [vmem:[%s515 + $0x3] sm:$0xff]
        %v2423 = vld [vmem:[%s515 + $0xb] sm:$0xff]
        %v2424 = vld [vmem:[%s515 + $0x13] sm:$0xff]
        %v2425 = vadd.f32 %v2422, %v2053
        %v2426 = vadd.f32 %v2423, %v2059
        %v2427 = vadd.f32 %v2424, %v2065
        %2428 = vst [vmem:[%s515 + $0x3] sm:$0xff] %v2425
        %2429 = vst [vmem:[%s515 + $0xb] sm:$0xff] %v2426
        %2430 = vst [vmem:[%s515 + $0x13] sm:$0xff] %v2427
        %v2431 = vld [vmem:[%s515 + $0x6] sm:$0xff]
        %v2432 = vld [vmem:[%s515 + $0xe] sm:$0xff]
        %v2433 = vld [vmem:[%s515 + $0x16] sm:$0xff]
        %v2434 = vadd.f32 %v2431, %v2134
        %v2435 = vadd.f32 %v2432, %v2140
        %v2436 = vadd.f32 %v2433, %v2146
        %2437 = vst [vmem:[%s515 + $0x6] sm:$0xff] %v2434
        %2438 = vst [vmem:[%s515 + $0xe] sm:$0xff] %v2435
        %2439 = vst [vmem:[%s515 + $0x16] sm:$0xff] %v2436
        %v2440 = vld [vmem:[%s515 + $0x9] sm:$0xff]
        %v2441 = vld [vmem:[%s515 + $0x11] sm:$0xff]
        %v2442 = vld [vmem:[%s515 + $0x19] sm:$0xff]
        %v2443 = vadd.f32 %v2440, %v2136
        %v2444 = vadd.f32 %v2441, %v2142
        %v2445 = vadd.f32 %v2442, %v2148
        %2446 = vst [vmem:[%s515 + $0x9] sm:$0xff] %v2443
        %2447 = vst [vmem:[%s515 + $0x11] sm:$0xff] %v2444
        %2448 = vst [vmem:[%s515 + $0x19] sm:$0xff] %v2445
        %v2449 = vld [vmem:[%s515 + $0xc] sm:$0xff]
        %v2450 = vld [vmem:[%s515 + $0x14] sm:$0xff]
        %v2451 = vld [vmem:[%s515 + $0x1c] sm:$0xff]
        %v2452 = vadd.f32 %v2449, %v2217
        %v2453 = vadd.f32 %v2450, %v2223
        %v2454 = vadd.f32 %v2451, %v2229
        %2455 = vst [vmem:[%s515 + $0xc] sm:$0xff] %v2452
        %2456 = vst [vmem:[%s515 + $0x14] sm:$0xff] %v2453
        %2457 = vst [vmem:[%s515 + $0x1c] sm:$0xff] %v2454
        %v2458 = vld [vmem:[%s515 + $0xf] sm:$0xff]
        %v2459 = vld [vmem:[%s515 + $0x17] sm:$0xff]
        %v2460 = vld [vmem:[%s515 + $0x1f] sm:$0xff]
        %v2461 = vadd.f32 %v2458, %v2219
        %v2462 = vadd.f32 %v2459, %v2225
        %v2463 = vadd.f32 %v2460, %v2231
        %2464 = vst [vmem:[%s515 + $0xf] sm:$0xff] %v2461
        %2465 = vst [vmem:[%s515 + $0x17] sm:$0xff] %v2462
        %2466 = vst [vmem:[%s515 + $0x1f] sm:$0xff] %v2463
        %v2467 = vld [vmem:[%s515 + $0x12] sm:$0xff]
        %v2468 = vld [vmem:[%s515 + $0x1a] sm:$0xff]
        %v2469 = vld [vmem:[%s515 + $0x22] sm:$0xff]
        %v2470 = vadd.f32 %v2467, %v2300
        %v2471 = vadd.f32 %v2468, %v2306
        %v2472 = vadd.f32 %v2469, %v2312
        %2473 = vst [vmem:[%s515 + $0x12] sm:$0xff] %v2470
        %2474 = vst [vmem:[%s515 + $0x1a] sm:$0xff] %v2471
        %2475 = vst [vmem:[%s515 + $0x22] sm:$0xff] %v2472
        %v2476 = vld [vmem:[%s515 + $0x15] sm:$0xff]
        %v2477 = vld [vmem:[%s515 + $0x1d] sm:$0xff]
        %v2478 = vld [vmem:[%s515 + $0x25] sm:$0xff]
        %v2479 = vadd.f32 %v2476, %v2302
        %v2480 = vadd.f32 %v2477, %v2308
        %v2481 = vadd.f32 %v2478, %v2314
        %2482 = vst [vmem:[%s515 + $0x15] sm:$0xff] %v2479
        %2483 = vst [vmem:[%s515 + $0x1d] sm:$0xff] %v2480
        %2484 = vst [vmem:[%s515 + $0x25] sm:$0xff] %v2481
        %v2485 = vld [vmem:[%s515 + $0x18] sm:$0xff]
        %v2486 = vld [vmem:[%s515 + $0x20] sm:$0xff]
        %v2487 = vld [vmem:[%s515 + $0x28] sm:$0xff]
        %v2488 = vadd.f32 %v2485, %v2383
        %v2489 = vadd.f32 %v2486, %v2389
        %v2490 = vadd.f32 %v2487, %v2395
        %2491 = vst [vmem:[%s515 + $0x18] sm:$0xff] %v2488
        %2492 = vst [vmem:[%s515 + $0x20] sm:$0xff] %v2489
        %2493 = vst [vmem:[%s515 + $0x28] sm:$0xff] %v2490
        %v2494 = vld [vmem:[%s515 + $0x1b] sm:$0xff]
        %v2495 = vld [vmem:[%s515 + $0x23] sm:$0xff]
        %v2496 = vld [vmem:[%s515 + $0x2b] sm:$0x7f]
        %v2497 = vadd.f32 %v2494, %v2385
        %v2498 = vadd.f32 %v2495, %v2391
        %v2499 = vadd.f32 %v2496, %v2397
        %2500 = vst [vmem:[%s515 + $0x1b] sm:$0xff] %v2497
        %2501 = vst [vmem:[%s515 + $0x23] sm:$0xff] %v2498
        %2502 = vst [vmem:[%s515 + $0x2b] sm:$0x7f] %v2499
        %p2503 = scmp.lt.s32.totalorder %s34, 2
        %s2504 = scalar_select %p2503, %s34, 2
        %p2505 = scmp.lt.s32.totalorder %s35, 1
        %s2506 = scalar_select %p2505, %s35, 1
        %s2507 = smul.addr %s2506, 7
        %s2508 = smul.addr %s2504, 14
        %s2509 = sadd.s32 %s2507, %s2508
        %s2510 = smul.addr %s2509, 8
        %s2511 = scalar_lea.vmem %s7, %s2510
        // Predicated region
        $region73: #{decoder_forward.1} parent=47 // pred_check
          %p2512 = pneg %p244
        $region74: #{decoder_forward.1} parent=47 // pred_check_branch
          %2514 = sbr.rel (%p2512) target = $region76
        $region75: #{decoder_forward.1} parent=47 // pred_region
          _
        $region76: #{decoder_forward.1} parent=47 // pred_fallthru
          _
      $region48: #{decoder_forward.1} parent=5 // pred_fallthru
        _
      %p2515 = scmp.le.s32.totalorder 2, %s25
      // Predicated region
      $region77: #{decoder_forward.1} parent=5 // pred_check
        %p2516 = pneg %p2515
      $region78: #{decoder_forward.1} parent=5 // pred_check_branch
        %2518 = sbr.rel (%p2516) target = $region80
      $region79: #{decoder_forward.1} parent=5 // pred_region
        %s2519 = ssub.s32 %s25, 2
        // Predicated region
        $region81: #{decoder_forward.1} parent=79 // pred_check
          %p2520 = pneg %p250
        $region82: #{decoder_forward.1} parent=79 // pred_check_branch
          %2522 = sbr.rel (%p2520) target = $region84
        $region83: #{decoder_forward.1} parent=79 // pred_region
          %p2523 = scmp.lt.s32.totalorder %s36, 2
          %s2524 = scalar_select %p2523, %s36, 2
          %p2525 = scmp.lt.s32.totalorder %s37, 1
          %s2526 = scalar_select %p2525, %s37, 1
          %s2527 = smul.addr %s2526, 7
          %s2528 = smul.addr %s2524, 14
          %s2529 = sadd.s32 %s2527, %s2528
          %s2530 = smul.addr %s2529, 8
          %s2531 = scalar_lea.vmem %s7, %s2530
        $region84: #{decoder_forward.1} parent=79 // pred_fallthru
          _
      $region80: #{decoder_forward.1} parent=5 // pred_fallthru
        _
    $region6: #{decoder_forward.1} parent=1 // loop_footer
      %s29 = sadd.s32 1, %s25
    $region7: #{decoder_forward.1} parent=1 // loop_footer_branch
      %24 = sbr.rel target = $region3
    $region8: #{decoder_forward.1} parent=1 // loop_exit
      _
    %2532 = vsyncpa [#allocation5], 1
    %s2533 = scalar_lea.sflag [#allocation5], 1
    %2534 = vsyncpa %s2533, 1
    %2535 = vsyncpa [#allocation7], 1
    %s2536 = scalar_lea.sflag [#allocation7], 1
    %2537 = vsyncpa %s2536, 1
    %2538 = vsyncpa [#allocation10], 1
    %s2539 = scalar_lea.sflag [#allocation10], 1
    %2540 = vsyncpa %s2539, 1
    %2541 = vsyncpa [#allocation13], 1
    %s2542 = scalar_lea.sflag [#allocation13], 1
    %2543 = vsyncpa %s2542, 1

</llo_original>
